<compile_context>
chip_gen: v7x
topology: tpu7x:2x2x1
jax: 0.10.0
libtpu: 0.0.40
codegen_flags: <defaults>
</compile_context>

<pallas_src>
import functools
from typing import NamedTuple

import jax
import jax.numpy as jnp
from jax import lax
from jax.experimental import pallas as pl
from jax.experimental.pallas import tpu as pltpu


# --------------------------- generation-aware budgets ------------------------

def _tpu_vmem_capacity_bytes():
    # Physical VMEM per TensorCore (v5e/v6e: 128 MiB, v7x: 64 MiB).
    try:
        cap = getattr(pltpu.get_tpu_info(), "vmem_capacity_bytes", None)
        if cap:
            return int(cap)
    except Exception:
        pass
    return 64 * 1024 * 1024       # conservative fallback


_VMEM_CAP = _tpu_vmem_capacity_bytes()
# Explicit scoped-VMEM request: 3/4 of physical, clamped to [32, 100] MiB
# (v5e's default scoped VMEM is only 16 MiB, so always request explicitly).
_VMEM_LIMIT_BYTES = max(32 << 20, min((_VMEM_CAP * 3) // 4, 100 << 20))
# Budget the batch-tile chooser works against (headroom for compiler temps).
_BLOCK_BUDGET = int(_VMEM_LIMIT_BYTES * 0.8)


def _compiler_params():
    return pltpu.CompilerParams(dimension_semantics=("parallel",),
                                vmem_limit_bytes=_VMEM_LIMIT_BYTES)


def _choose_batch_tile(n, per_item_bytes, fixed_bytes, budget):
    """Largest divisor of n whose fused working set fits `budget`.

    per_item_bytes includes double-buffered in/out blocks, the halo'd scratch
    and the in-kernel f32 intermediates; fixed_bytes is the (double-buffered)
    weight/bias footprint.  No forced grid splitting: v5e/v6e are single-TC,
    so extra grid steps are pure pipeline overhead.
    TODO(synk): cap at n//2 on v7x megacore so both TensorCores get work.
    """
    best = 1
    for cand in range(1, n + 1):
        if n % cand:
            continue
        if fixed_bytes + cand * per_item_bytes <= budget:
            best = cand
    return best


# ------------------------------ fused kernel ---------------------------------

def _bottleneck_kernel(x_ref, w1_ref, b1_ref, w2_ref, b2_ref, w3_ref, b3_ref,
                       *rest, hh, ww, tap_accum, has_ds):
    # refs: inputs..., [wd], output, halo'd conv1 scratch
    if has_ds:
        wd_ref, o_ref, h1_ref = rest
    else:
        wd_ref = None
        o_ref, h1_ref = rest

    tb = x_ref.shape[0]
    cin = x_ref.shape[-1]
    cb = w1_ref.shape[1]
    cout = w3_ref.shape[1]
    m = tb * hh * ww

    # Zero the halo'd scratch every step: its border is conv2's zero padding.
    # (Unconditional so correctness holds even when the grid is sharded across
    # TensorCores and program_id(0)==0 never runs on the second core.)
    h1_ref[...] = jnp.zeros_like(h1_ref)

    x_flat = x_ref[...].reshape(m, cin)                     # bf16 (M, Cin)

    # ---- conv1 (1x1) + bn1 + ReLU -> interior of the halo'd scratch --------
    y1 = jnp.dot(x_flat, w1_ref[...], preferred_element_type=jnp.float32)
    y1 = jnp.maximum(y1 + b1_ref[...], 0.0)
    h1_ref[:, 1:hh + 1, 1:ww + 1, :] = (
        y1.reshape(tb, hh, ww, cb).astype(h1_ref.dtype))

    # ---- conv2 (3x3, pad=1, stride=1) + bn2 + ReLU --------------------------
    if tap_accum:
        # Large Cb: each per-tap K already saturates the MXU; accumulate the
        # nine tap matmuls into one f32 accumulator (no im2col copies).
        y2 = jnp.zeros((m, cb), jnp.float32)
        for dy in range(3):
            for dx in range(3):
                t = dy * 3 + dx
                tap = h1_ref[:, dy:dy + hh, dx:dx + ww, :].reshape(m, cb)
                y2 += jnp.dot(tap, w2_ref[t * cb:(t + 1) * cb, :],
                              preferred_element_type=jnp.float32)
    else:
        # Small Cb: a single long-K (9*Cb) matmul keeps the MXU busy.
        taps = [h1_ref[:, dy:dy + hh, dx:dx + ww, :].reshape(m, cb)
                for dy in range(3) for dx in range(3)]
        patches = jnp.concatenate(taps, axis=-1)            # (M, 9*Cb)
        y2 = jnp.dot(patches, w2_ref[...], preferred_element_type=jnp.float32)
    y2 = jnp.maximum(y2 + b2_ref[...], 0.0).astype(x_ref.dtype)

    # ---- conv3 (1x1) + bn3 + residual (+ fused downsample) + ReLU ----------
    y3 = jnp.dot(y2, w3_ref[...], preferred_element_type=jnp.float32)
    if has_ds:
        # b3_ref already holds (b3 + bd); both GEMMs share one f32 accumulator.
        y3 += jnp.dot(x_flat, wd_ref[...], preferred_element_type=jnp.float32)
    else:
        y3 += x_flat.astype(jnp.float32)                    # identity residual
    y3 = jnp.maximum(y3 + b3_ref[...], 0.0)
    o_ref[...] = y3.reshape(tb, hh, ww, cout).astype(o_ref.dtype)


# ------------------------------ model assembly -------------------------------

class StageSpec(NamedTuple):
    index: int
    block_count: int


def bottleneck_forward(x, p, stride):
    """x: NHWC bf16.  One fused pallas_call per bottleneck, blocked over batch."""
    # stride_in_1x1=True: a stride-s 1x1 conv == subsample then 1x1 conv.
    # TODO(synk): fold this subsample into the kernel (strided load / index_map)
    # to remove the one extra HBM pass on the first block of the head.
    x1 = x[:, ::stride, ::stride, :] if stride > 1 else x
    n, hh, ww, cin = x1.shape
    cb = p["w1"].shape[1]
    cout = p["w3"].shape[1]
    has_ds = "wd" in p
    tap_accum = cb >= 256
    ab = 2  # bf16 bytes

    # Per-batch-item working set: double-buffered in/out blocks, halo'd
    # scratch and the in-kernel f32 matmul intermediates.
    per_item = 2 * hh * ww * cin * ab                 # x block (double-buffered)
    per_item += 2 * hh * ww * cout * ab               # output block
    per_item += (hh + 2) * (ww + 2) * cb * ab         # halo'd conv1 scratch
    per_item += hh * ww * (2 * cb + cout) * 4         # f32 accumulators
    if not tap_accum:
        per_item += hh * ww * 9 * cb * ab             # in-kernel im2col patches
    fixed = 2 * (p["w1"].size + p["w2"].size + p["w3"].size
                 + (p["wd"].size if has_ds else 0)) * ab
    fixed += (p["b1"].size + p["b2"].size + 2 * p["b3"].size) * 4
    tb = _choose_batch_tile(n, per_item, fixed, _BLOCK_BUDGET - fixed
                            if _BLOCK_BUDGET > fixed else _BLOCK_BUDGET)

    b3_eff = (p["b3"] + p["bd"]) if has_ds else p["b3"]

    def w_spec(shape):
        return pl.BlockSpec(shape, lambda i: (0, 0))

    in_specs = [
        pl.BlockSpec((tb, hh, ww, cin), lambda i: (i, 0, 0, 0)),
        w_spec((cin, cb)), w_spec((1, cb)),
        w_spec((9 * cb, cb)), w_spec((1, cb)),
        w_spec((cb, cout)), w_spec((1, cout)),
    ]
    args = [x1, p["w1"], p["b1"], p["w2"], p["b2"], p["w3"], b3_eff]
    if has_ds:
        in_specs.append(w_spec((cin, cout)))
        args.append(p["wd"])

    # NOTE: for the toy config Cout < 128, so output stores are lane-masked;
    # real res5 heads (Cout = 512 / 2048) are lane-dense.
    return pl.pallas_call(
        functools.partial(_bottleneck_kernel, hh=hh, ww=ww,
                          tap_accum=tap_accum, has_ds=has_ds),
        out_shape=jax.ShapeDtypeStruct((n, hh, ww, cout), x1.dtype),
        grid=(n // tb,),
        in_specs=in_specs,
        out_specs=pl.BlockSpec((tb, hh, ww, cout), lambda i: (i, 0, 0, 0)),
        scratch_shapes=[pltpu.VMEM((tb, hh + 2, ww + 2, cb), x1.dtype)],
        compiler_params=_compiler_params(),
    )(*args)


def resnet_head_forward(x_nchw, blocks):
    # NCHW in/out (PyTorch convention); NHWC + bf16 internally.
    x = jnp.transpose(x_nchw, (0, 2, 3, 1)).astype(jnp.bfloat16)
    for params, stride in blocks:
        x = bottleneck_forward(x, params, stride)
    return jnp.transpose(x, (0, 3, 1, 2)).astype(jnp.float32)


# --------------------------- deterministic init ------------------------------

def _kaiming_uniform(key, shape, fan_in):
    # nn.init.kaiming_uniform_(w, a=1): bound = sqrt(6 / ((1+a^2)*fan_in))
    bound = (3.0 / fan_in) ** 0.5
    return jax.random.uniform(key, shape, jnp.float32, -bound, bound)


def _frozen_bn(key, c):
    k1, k2, k3, k4 = jax.random.split(key, 4)
    weight = jax.random.uniform(k1, (c,), jnp.float32, 0.5, 1.5)
    bias = jax.random.uniform(k2, (c,), jnp.float32, -0.1, 0.1)
    mean = jax.random.uniform(k3, (c,), jnp.float32, -0.1, 0.1)
    var = jax.random.uniform(k4, (c,), jnp.float32, 0.5, 1.5)
    scale = weight / jnp.sqrt(var)       # FrozenBatchNorm2d semantics (no eps)
    return scale, bias - mean * scale


def _init_bottleneck(key, cin, cb, cout, has_downsample):
    # BN scale folded into the conv weights (frozen BN -> free), weights bf16.
    ks = jax.random.split(key, 8)
    p = {}
    w1 = _kaiming_uniform(ks[0], (cin, cb), cin)                 # 1x1
    s1, b1 = _frozen_bn(ks[1], cb)
    p["w1"] = (w1 * s1[None, :]).astype(jnp.bfloat16)
    p["b1"] = b1.reshape(1, cb)
    w2 = _kaiming_uniform(ks[2], (3, 3, cb, cb), cb * 9)         # 3x3 HWIO
    s2, b2 = _frozen_bn(ks[3], cb)
    p["w2"] = (w2 * s2[None, None, None, :]).reshape(9 * cb, cb).astype(jnp.bfloat16)
    p["b2"] = b2.reshape(1, cb)
    w3 = _kaiming_uniform(ks[4], (cb, cout), cb)                 # 1x1
    s3, b3 = _frozen_bn(ks[5], cout)
    p["w3"] = (w3 * s3[None, :]).astype(jnp.bfloat16)
    p["b3"] = b3.reshape(1, cout)
    if has_downsample:
        wd = _kaiming_uniform(ks[6], (cin, cout), cin)           # 1x1 downsample
        sd, bd = _frozen_bn(ks[7], cout)
        p["wd"] = (wd * sd[None, :]).astype(jnp.bfloat16)
        p["bd"] = bd.reshape(1, cout)
    return p


def build_resnet_head(key, stages, num_groups=1, width_per_group=64,
                      stride_in_1x1=True, stride_init=None,
                      res2_out_channels=256, dilation=1):
    # TODO(synk): only num_groups=1, dilation=1, stride_in_1x1=True and the
    # FrozenBatchNorm block variant are implemented (GN / grouped conv omitted).
    assert num_groups == 1 and dilation == 1 and stride_in_1x1
    stage2_relative_factor = 2 ** (stages[0].index - 1)
    stage2_bottleneck_channels = num_groups * width_per_group
    out_channels = res2_out_channels * stage2_relative_factor
    in_channels = out_channels // 2
    bottleneck_channels = stage2_bottleneck_channels * stage2_relative_factor

    n_blocks = sum(s.block_count for s in stages)
    keys = jax.random.split(key, n_blocks)
    blocks, ki = [], 0
    stride = stride_init
    for stage in stages:
        if not stride:
            stride = int(stage.index > 1) + 1
        s = stride
        cin = in_channels
        for _ in range(stage.block_count):
            has_ds = cin != out_channels      # matches the PyTorch module
            blocks.append((_init_bottleneck(keys[ki], cin, bottleneck_channels,
                                            out_channels, has_ds), s))
            ki += 1
            s = 1
            cin = out_channels
        stride = None
    return blocks, out_channels


# ------------------------------ plain-JAX reference --------------------------
# Mirrors the kernel numerics (bf16 operands, f32 accumulate/affine).

def _ref_conv(x, w_hwio, stride, pad):
    return lax.conv_general_dilated(
        x, w_hwio, window_strides=(stride, stride),
        padding=[(pad, pad), (pad, pad)],
        dimension_numbers=("NHWC", "HWIO", "NHWC"),
        preferred_element_type=jnp.float32)


def _ref_bottleneck(x, p, stride):
    cin = x.shape[-1]
    cb = p["w1"].shape[1]
    cout = p["w3"].shape[1]
    out = _ref_conv(x, p["w1"].reshape(1, 1, cin, cb), stride, 0) + p["b1"]
    out = jnp.maximum(out, 0.0).astype(jnp.bfloat16)
    out = _ref_conv(out, p["w2"].reshape(3, 3, cb, cb), 1, 1) + p["b2"]
    out = jnp.maximum(out, 0.0).astype(jnp.bfloat16)
    out = _ref_conv(out, p["w3"].reshape(1, 1, cb, cout), 1, 0) + p["b3"]
    if "wd" in p:
        ident = _ref_conv(x, p["wd"].reshape(1, 1, cin, cout), stride, 0) + p["bd"]
    else:
        ident = x.astype(jnp.float32)
    return jnp.maximum(out + ident, 0.0).astype(jnp.bfloat16)


def ref_forward(x_nchw, blocks):
    x = jnp.transpose(x_nchw, (0, 2, 3, 1)).astype(jnp.bfloat16)
    for p, stride in blocks:
        x = _ref_bottleneck(x, p, stride)
    return jnp.transpose(x, (0, 3, 1, 2)).astype(jnp.float32)


# ----------------------------------- main ------------------------------------

if __name__ == "__main__":
    key = jax.random.PRNGKey(0)
    kx, kp = jax.random.split(key)

    # Small synthetic config: stage index 2, 2 bottleneck blocks.
    # factor=2 -> out_channels=64, in_channels=32, bottleneck_channels=16.
    stages = [StageSpec(index=2, block_count=2)]
    blocks, out_c = build_resnet_head(kp, stages, num_groups=1,
                                      width_per_group=8, res2_out_channels=32)
    in_c = out_c // 2

    N, H, W = 2, 16, 16
    x = jax.random.normal(kx, (N, in_c, H, W), jnp.float32)   # NCHW like torch

    fwd = jax.jit(lambda inp: resnet_head_forward(inp, blocks))
    y = jax.block_until_ready(fwd(x))

    assert y.shape == (N, out_c, H // 2, W // 2), y.shape

    y_ref = ref_forward(x, blocks)
    scale = float(jnp.max(jnp.abs(y_ref))) + 1.0
    err = float(jnp.max(jnp.abs(y - y_ref)))
    assert err <= 2e-2 * scale, f"max abs err vs reference: {err} (scale {scale})"

    print("KERNEL_OK")
</pallas_src>

<mosaic_0001>
module attributes {stable_mosaic.version = 11 : i64} {
  func.func @_bottleneck_kernel(%arg0: i32, %arg1: memref<2x8x8x32xbf16, #tpu.memory_space<vmem>>, %arg2: memref<32x16xbf16, #tpu.memory_space<vmem>>, %arg3: memref<1x16xf32, #tpu.memory_space<vmem>>, %arg4: memref<144x16xbf16, #tpu.memory_space<vmem>>, %arg5: memref<1x16xf32, #tpu.memory_space<vmem>>, %arg6: memref<16x64xbf16, #tpu.memory_space<vmem>>, %arg7: memref<1x64xf32, #tpu.memory_space<vmem>>, %arg8: memref<32x64xbf16, #tpu.memory_space<vmem>>, %arg9: memref<2x8x8x64xbf16, #tpu.memory_space<vmem>>, %arg10: memref<2x10x10x16xbf16, #tpu.memory_space<vmem>>) attributes {dimension_semantics = [#tpu.dimension_semantics<parallel>], iteration_bounds = array<i64: 1>, scalar_prefetch = 0 : i64, scratch_operands = 1 : i64, tpu.core_type = #tpu.core_type<tc>, window_params = [{transform_indices = @transform_0, window_bounds = array<i64: 2, 8, 8, 32>}, {pipeline_mode = #tpu.pipeline_mode<synchronous>, transform_indices = @transform_1, window_bounds = array<i64: 32, 16>}, {pipeline_mode = #tpu.pipeline_mode<synchronous>, transform_indices = @transform_2, window_bounds = array<i64: 1, 16>}, {pipeline_mode = #tpu.pipeline_mode<synchronous>, transform_indices = @transform_3, window_bounds = array<i64: 144, 16>}, {pipeline_mode = #tpu.pipeline_mode<synchronous>, transform_indices = @transform_4, window_bounds = array<i64: 1, 16>}, {pipeline_mode = #tpu.pipeline_mode<synchronous>, transform_indices = @transform_5, window_bounds = array<i64: 16, 64>}, {pipeline_mode = #tpu.pipeline_mode<synchronous>, transform_indices = @transform_6, window_bounds = array<i64: 1, 64>}, {pipeline_mode = #tpu.pipeline_mode<synchronous>, transform_indices = @transform_7, window_bounds = array<i64: 32, 64>}, {transform_indices = @transform_8, window_bounds = array<i64: 2, 8, 8, 64>}]} {
    %cst = arith.constant 0.000000e+00 : bf16
    %0 = vector.broadcast %cst : bf16 to vector<2x10x10x16xbf16>
    %c0 = arith.constant 0 : index
    %c0_0 = arith.constant 0 : index
    %c0_1 = arith.constant 0 : index
    %c0_2 = arith.constant 0 : index
    %1 = vector.load %arg10[%c0, %c0_0, %c0_1, %c0_2] : memref<2x10x10x16xbf16, #tpu.memory_space<vmem>>, vector<2x10x10x16xbf16>
    tpu.vector_store %arg10[%c0, %c0_0, %c0_1, %c0_2], %0 {strides = array<i32>} : memref<2x10x10x16xbf16, #tpu.memory_space<vmem>>, vector<2x10x10x16xbf16>,
    %c0_3 = arith.constant 0 : index
    %c0_4 = arith.constant 0 : index
    %c0_5 = arith.constant 0 : index
    %c0_6 = arith.constant 0 : index
    %2 = vector.load %arg1[%c0_3, %c0_4, %c0_5, %c0_6] : memref<2x8x8x32xbf16, #tpu.memory_space<vmem>>, vector<2x8x8x32xbf16>
    %3 = vector.shape_cast %2 : vector<2x8x8x32xbf16> to vector<128x32xbf16>
    %c0_7 = arith.constant 0 : index
    %c0_8 = arith.constant 0 : index
    %4 = vector.load %arg2[%c0_7, %c0_8] : memref<32x16xbf16, #tpu.memory_space<vmem>>, vector<32x16xbf16>
    %cst_9 = arith.constant dense<0.000000e+00> : vector<128x16xf32>
    %5 = tpu.matmul %3, %4, %cst_9 {dimension_numbers = #tpu.dot_dimension_numbers<[1], [0], [0], [1], [0, 0, 1, 1], [], []>} : vector<128x32xbf16>, vector<32x16xbf16>, vector<128x16xf32> -> vector<128x16xf32>
    %c0_10 = arith.constant 0 : index
    %c0_11 = arith.constant 0 : index
    %6 = vector.load %arg3[%c0_10, %c0_11] : memref<1x16xf32, #tpu.memory_space<vmem>>, vector<1x16xf32>
    %7 = vector.broadcast %6 : vector<1x16xf32> to vector<128x16xf32>
    %8 = arith.addf %5, %7 : vector<128x16xf32>
    %cst_12 = arith.constant 0.000000e+00 : f32
    %9 = vector.broadcast %cst_12 : f32 to vector<128x16xf32>
    %10 = arith.maximumf %8, %9 : vector<128x16xf32>
    %11 = vector.shape_cast %10 : vector<128x16xf32> to vector<2x8x8x16xf32>
    %12 = arith.truncf %11 : vector<2x8x8x16xf32> to vector<2x8x8x16xbf16>
    %c0_13 = arith.constant 0 : index
    %c1 = arith.constant 1 : index
    %c1_14 = arith.constant 1 : index
    %c0_15 = arith.constant 0 : index
    %13 = vector.load %arg10[%c0_13, %c1, %c1_14, %c0_15] : memref<2x10x10x16xbf16, #tpu.memory_space<vmem>>, vector<2x8x8x16xbf16>
    tpu.vector_store %arg10[%c0_13, %c1, %c1_14, %c0_15], %12 {strides = array<i32>} : memref<2x10x10x16xbf16, #tpu.memory_space<vmem>>, vector<2x8x8x16xbf16>,
    %c0_16 = arith.constant 0 : index
    %c0_17 = arith.constant 0 : index
    %c0_18 = arith.constant 0 : index
    %c0_19 = arith.constant 0 : index
    %14 = vector.load %arg10[%c0_16, %c0_17, %c0_18, %c0_19] : memref<2x10x10x16xbf16, #tpu.memory_space<vmem>>, vector<2x8x8x16xbf16>
    %15 = vector.shape_cast %14 : vector<2x8x8x16xbf16> to vector<128x16xbf16>
    %c0_20 = arith.constant 0 : index
    %c0_21 = arith.constant 0 : index
    %c1_22 = arith.constant 1 : index
    %c0_23 = arith.constant 0 : index
    %16 = vector.load %arg10[%c0_20, %c0_21, %c1_22, %c0_23] : memref<2x10x10x16xbf16, #tpu.memory_space<vmem>>, vector<2x8x8x16xbf16>
    %17 = vector.shape_cast %16 : vector<2x8x8x16xbf16> to vector<128x16xbf16>
    %c0_24 = arith.constant 0 : index
    %c0_25 = arith.constant 0 : index
    %c2 = arith.constant 2 : index
    %c0_26 = arith.constant 0 : index
    %18 = vector.load %arg10[%c0_24, %c0_25, %c2, %c0_26] : memref<2x10x10x16xbf16, #tpu.memory_space<vmem>>, vector<2x8x8x16xbf16>
    %19 = vector.shape_cast %18 : vector<2x8x8x16xbf16> to vector<128x16xbf16>
    %c0_27 = arith.constant 0 : index
    %c1_28 = arith.constant 1 : index
    %c0_29 = arith.constant 0 : index
    %c0_30 = arith.constant 0 : index
    %20 = vector.load %arg10[%c0_27, %c1_28, %c0_29, %c0_30] : memref<2x10x10x16xbf16, #tpu.memory_space<vmem>>, vector<2x8x8x16xbf16>
    %21 = vector.shape_cast %20 : vector<2x8x8x16xbf16> to vector<128x16xbf16>
    %c0_31 = arith.constant 0 : index
    %c1_32 = arith.constant 1 : index
    %c1_33 = arith.constant 1 : index
    %c0_34 = arith.constant 0 : index
    %22 = vector.load %arg10[%c0_31, %c1_32, %c1_33, %c0_34] : memref<2x10x10x16xbf16, #tpu.memory_space<vmem>>, vector<2x8x8x16xbf16>
    %23 = vector.shape_cast %22 : vector<2x8x8x16xbf16> to vector<128x16xbf16>
    %c0_35 = arith.constant 0 : index
    %c1_36 = arith.constant 1 : index
    %c2_37 = arith.constant 2 : index
    %c0_38 = arith.constant 0 : index
    %24 = vector.load %arg10[%c0_35, %c1_36, %c2_37, %c0_38] : memref<2x10x10x16xbf16, #tpu.memory_space<vmem>>, vector<2x8x8x16xbf16>
    %25 = vector.shape_cast %24 : vector<2x8x8x16xbf16> to vector<128x16xbf16>
    %c0_39 = arith.constant 0 : index
    %c2_40 = arith.constant 2 : index
    %c0_41 = arith.constant 0 : index
    %c0_42 = arith.constant 0 : index
    %26 = vector.load %arg10[%c0_39, %c2_40, %c0_41, %c0_42] : memref<2x10x10x16xbf16, #tpu.memory_space<vmem>>, vector<2x8x8x16xbf16>
    %27 = vector.shape_cast %26 : vector<2x8x8x16xbf16> to vector<128x16xbf16>
    %c0_43 = arith.constant 0 : index
    %c2_44 = arith.constant 2 : index
    %c1_45 = arith.constant 1 : index
    %c0_46 = arith.constant 0 : index
    %28 = vector.load %arg10[%c0_43, %c2_44, %c1_45, %c0_46] : memref<2x10x10x16xbf16, #tpu.memory_space<vmem>>, vector<2x8x8x16xbf16>
    %29 = vector.shape_cast %28 : vector<2x8x8x16xbf16> to vector<128x16xbf16>
    %c0_47 = arith.constant 0 : index
    %c2_48 = arith.constant 2 : index
    %c2_49 = arith.constant 2 : index
    %c0_50 = arith.constant 0 : index
    %30 = vector.load %arg10[%c0_47, %c2_48, %c2_49, %c0_50] : memref<2x10x10x16xbf16, #tpu.memory_space<vmem>>, vector<2x8x8x16xbf16>
    %31 = vector.shape_cast %30 : vector<2x8x8x16xbf16> to vector<128x16xbf16>
    %32 = tpu.concatenate %15, %17, %19, %21, %23, %25, %27, %29, %31 in 1 : vector<128x16xbf16>, vector<128x16xbf16>, vector<128x16xbf16>, vector<128x16xbf16>, vector<128x16xbf16>, vector<128x16xbf16>, vector<128x16xbf16>, vector<128x16xbf16>, vector<128x16xbf16> -> vector<128x144xbf16>
    %c0_51 = arith.constant 0 : index
    %c0_52 = arith.constant 0 : index
    %33 = vector.load %arg4[%c0_51, %c0_52] : memref<144x16xbf16, #tpu.memory_space<vmem>>, vector<144x16xbf16>
    %cst_53 = arith.constant dense<0.000000e+00> : vector<128x16xf32>
    %34 = tpu.matmul %32, %33, %cst_53 {dimension_numbers = #tpu.dot_dimension_numbers<[1], [0], [0], [1], [0, 0, 1, 1], [], []>} : vector<128x144xbf16>, vector<144x16xbf16>, vector<128x16xf32> -> vector<128x16xf32>
    %c0_54 = arith.constant 0 : index
    %c0_55 = arith.constant 0 : index
    %35 = vector.load %arg5[%c0_54, %c0_55] : memref<1x16xf32, #tpu.memory_space<vmem>>, vector<1x16xf32>
    %36 = vector.broadcast %35 : vector<1x16xf32> to vector<128x16xf32>
    %37 = arith.addf %34, %36 : vector<128x16xf32>
    %cst_56 = arith.constant 0.000000e+00 : f32
    %38 = vector.broadcast %cst_56 : f32 to vector<128x16xf32>
    %39 = arith.maximumf %37, %38 : vector<128x16xf32>
    %40 = arith.truncf %39 : vector<128x16xf32> to vector<128x16xbf16>
    %c0_57 = arith.constant 0 : index
    %c0_58 = arith.constant 0 : index
    %41 = vector.load %arg6[%c0_57, %c0_58] : memref<16x64xbf16, #tpu.memory_space<vmem>>, vector<16x64xbf16>
    %cst_59 = arith.constant dense<0.000000e+00> : vector<128x64xf32>
    %42 = tpu.matmul %40, %41, %cst_59 {dimension_numbers = #tpu.dot_dimension_numbers<[1], [0], [0], [1], [0, 0, 1, 1], [], []>} : vector<128x16xbf16>, vector<16x64xbf16>, vector<128x64xf32> -> vector<128x64xf32>
    %c0_60 = arith.constant 0 : index
    %c0_61 = arith.constant 0 : index
    %43 = vector.load %arg8[%c0_60, %c0_61] : memref<32x64xbf16, #tpu.memory_space<vmem>>, vector<32x64xbf16>
    %cst_62 = arith.constant dense<0.000000e+00> : vector<128x64xf32>
    %44 = tpu.matmul %3, %43, %cst_62 {dimension_numbers = #tpu.dot_dimension_numbers<[1], [0], [0], [1], [0, 0, 1, 1], [], []>} : vector<128x32xbf16>, vector<32x64xbf16>, vector<128x64xf32> -> vector<128x64xf32>
    %45 = arith.addf %42, %44 : vector<128x64xf32>
    %c0_63 = arith.constant 0 : index
    %c0_64 = arith.constant 0 : index
    %46 = vector.load %arg7[%c0_63, %c0_64] : memref<1x64xf32, #tpu.memory_space<vmem>>, vector<1x64xf32>
    %47 = vector.broadcast %46 : vector<1x64xf32> to vector<128x64xf32>
    %48 = arith.addf %45, %47 : vector<128x64xf32>
    %cst_65 = arith.constant 0.000000e+00 : f32
    %49 = vector.broadcast %cst_65 : f32 to vector<128x64xf32>
    %50 = arith.maximumf %48, %49 : vector<128x64xf32>
    %51 = vector.shape_cast %50 : vector<128x64xf32> to vector<2x8x8x64xf32>
    %52 = arith.truncf %51 : vector<2x8x8x64xf32> to vector<2x8x8x64xbf16>
    %c0_66 = arith.constant 0 : index
    %c0_67 = arith.constant 0 : index
    %c0_68 = arith.constant 0 : index
    %c0_69 = arith.constant 0 : index
    %53 = vector.load %arg9[%c0_66, %c0_67, %c0_68, %c0_69] : memref<2x8x8x64xbf16, #tpu.memory_space<vmem>>, vector<2x8x8x64xbf16>
    tpu.vector_store %arg9[%c0_66, %c0_67, %c0_68, %c0_69], %52 {strides = array<i32>} : memref<2x8x8x64xbf16, #tpu.memory_space<vmem>>, vector<2x8x8x64xbf16>,
    return
  }
  func.func @transform_0(%arg0: i32) -> (i32, i32, i32, i32) {
    %c0_i32 = arith.constant 0 : i32
    %c0_i32_0 = arith.constant 0 : i32
    %c0_i32_1 = arith.constant 0 : i32
    %c0_i32_2 = arith.constant 0 : i32
    return %arg0, %c0_i32, %c0_i32_0, %c0_i32_1 : i32, i32, i32, i32
  }
  func.func @transform_1(%arg0: i32) -> (i32, i32) {
    %c0_i32 = arith.constant 0 : i32
    %c0_i32_0 = arith.constant 0 : i32
    %c0_i32_1 = arith.constant 0 : i32
    return %c0_i32, %c0_i32_0 : i32, i32
  }
  func.func @transform_2(%arg0: i32) -> (i32, i32) {
    %c0_i32 = arith.constant 0 : i32
    %c0_i32_0 = arith.constant 0 : i32
    %c0_i32_1 = arith.constant 0 : i32
    return %c0_i32, %c0_i32_0 : i32, i32
  }
  func.func @transform_3(%arg0: i32) -> (i32, i32) {
    %c0_i32 = arith.constant 0 : i32
    %c0_i32_0 = arith.constant 0 : i32
    %c0_i32_1 = arith.constant 0 : i32
    return %c0_i32, %c0_i32_0 : i32, i32
  }
  func.func @transform_4(%arg0: i32) -> (i32, i32) {
    %c0_i32 = arith.constant 0 : i32
    %c0_i32_0 = arith.constant 0 : i32
    %c0_i32_1 = arith.constant 0 : i32
    return %c0_i32, %c0_i32_0 : i32, i32
  }
  func.func @transform_5(%arg0: i32) -> (i32, i32) {
    %c0_i32 = arith.constant 0 : i32
    %c0_i32_0 = arith.constant 0 : i32
    %c0_i32_1 = arith.constant 0 : i32
    return %c0_i32, %c0_i32_0 : i32, i32
  }
  func.func @transform_6(%arg0: i32) -> (i32, i32) {
    %c0_i32 = arith.constant 0 : i32
    %c0_i32_0 = arith.constant 0 : i32
    %c0_i32_1 = arith.constant 0 : i32
    return %c0_i32, %c0_i32_0 : i32, i32
  }
  func.func @transform_7(%arg0: i32) -> (i32, i32) {
    %c0_i32 = arith.constant 0 : i32
    %c0_i32_0 = arith.constant 0 : i32
    %c0_i32_1 = arith.constant 0 : i32
    return %c0_i32, %c0_i32_0 : i32, i32
  }
  func.func @transform_8(%arg0: i32) -> (i32, i32, i32, i32) {
    %c0_i32 = arith.constant 0 : i32
    %c0_i32_0 = arith.constant 0 : i32
    %c0_i32_1 = arith.constant 0 : i32
    %c0_i32_2 = arith.constant 0 : i32
    return %arg0, %c0_i32, %c0_i32_0, %c0_i32_1 : i32, i32, i32, i32
  }
}

module attributes {stable_mosaic.version = 11 : i64} {
  func.func @_bottleneck_kernel(%arg0: i32, %arg1: memref<2x8x8x64xbf16, #tpu.memory_space<vmem>>, %arg2: memref<64x16xbf16, #tpu.memory_space<vmem>>, %arg3: memref<1x16xf32, #tpu.memory_space<vmem>>, %arg4: memref<144x16xbf16, #tpu.memory_space<vmem>>, %arg5: memref<1x16xf32, #tpu.memory_space<vmem>>, %arg6: memref<16x64xbf16, #tpu.memory_space<vmem>>, %arg7: memref<1x64xf32, #tpu.memory_space<vmem>>, %arg8: memref<2x8x8x64xbf16, #tpu.memory_space<vmem>>, %arg9: memref<2x10x10x16xbf16, #tpu.memory_space<vmem>>) attributes {dimension_semantics = [#tpu.dimension_semantics<parallel>], iteration_bounds = array<i64: 1>, scalar_prefetch = 0 : i64, scratch_operands = 1 : i64, tpu.core_type = #tpu.core_type<tc>, window_params = [{transform_indices = @transform_0, window_bounds = array<i64: 2, 8, 8, 64>}, {pipeline_mode = #tpu.pipeline_mode<synchronous>, transform_indices = @transform_1, window_bounds = array<i64: 64, 16>}, {pipeline_mode = #tpu.pipeline_mode<synchronous>, transform_indices = @transform_2, window_bounds = array<i64: 1, 16>}, {pipeline_mode = #tpu.pipeline_mode<synchronous>, transform_indices = @transform_3, window_bounds = array<i64: 144, 16>}, {pipeline_mode = #tpu.pipeline_mode<synchronous>, transform_indices = @transform_4, window_bounds = array<i64: 1, 16>}, {pipeline_mode = #tpu.pipeline_mode<synchronous>, transform_indices = @transform_5, window_bounds = array<i64: 16, 64>}, {pipeline_mode = #tpu.pipeline_mode<synchronous>, transform_indices = @transform_6, window_bounds = array<i64: 1, 64>}, {transform_indices = @transform_7, window_bounds = array<i64: 2, 8, 8, 64>}]} {
    %cst = arith.constant 0.000000e+00 : bf16
    %0 = vector.broadcast %cst : bf16 to vector<2x10x10x16xbf16>
    %c0 = arith.constant 0 : index
    %c0_0 = arith.constant 0 : index
    %c0_1 = arith.constant 0 : index
    %c0_2 = arith.constant 0 : index
    %1 = vector.load %arg9[%c0, %c0_0, %c0_1, %c0_2] : memref<2x10x10x16xbf16, #tpu.memory_space<vmem>>, vector<2x10x10x16xbf16>
    tpu.vector_store %arg9[%c0, %c0_0, %c0_1, %c0_2], %0 {strides = array<i32>} : memref<2x10x10x16xbf16, #tpu.memory_space<vmem>>, vector<2x10x10x16xbf16>,
    %c0_3 = arith.constant 0 : index
    %c0_4 = arith.constant 0 : index
    %c0_5 = arith.constant 0 : index
    %c0_6 = arith.constant 0 : index
    %2 = vector.load %arg1[%c0_3, %c0_4, %c0_5, %c0_6] : memref<2x8x8x64xbf16, #tpu.memory_space<vmem>>, vector<2x8x8x64xbf16>
    %3 = vector.shape_cast %2 : vector<2x8x8x64xbf16> to vector<128x64xbf16>
    %c0_7 = arith.constant 0 : index
    %c0_8 = arith.constant 0 : index
    %4 = vector.load %arg2[%c0_7, %c0_8] : memref<64x16xbf16, #tpu.memory_space<vmem>>, vector<64x16xbf16>
    %cst_9 = arith.constant dense<0.000000e+00> : vector<128x16xf32>
    %5 = tpu.matmul %3, %4, %cst_9 {dimension_numbers = #tpu.dot_dimension_numbers<[1], [0], [0], [1], [0, 0, 1, 1], [], []>} : vector<128x64xbf16>, vector<64x16xbf16>, vector<128x16xf32> -> vector<128x16xf32>
    %c0_10 = arith.constant 0 : index
    %c0_11 = arith.constant 0 : index
    %6 = vector.load %arg3[%c0_10, %c0_11] : memref<1x16xf32, #tpu.memory_space<vmem>>, vector<1x16xf32>
    %7 = vector.broadcast %6 : vector<1x16xf32> to vector<128x16xf32>
    %8 = arith.addf %5, %7 : vector<128x16xf32>
    %cst_12 = arith.constant 0.000000e+00 : f32
    %9 = vector.broadcast %cst_12 : f32 to vector<128x16xf32>
    %10 = arith.maximumf %8, %9 : vector<128x16xf32>
    %11 = vector.shape_cast %10 : vector<128x16xf32> to vector<2x8x8x16xf32>
    %12 = arith.truncf %11 : vector<2x8x8x16xf32> to vector<2x8x8x16xbf16>
    %c0_13 = arith.constant 0 : index
    %c1 = arith.constant 1 : index
    %c1_14 = arith.constant 1 : index
    %c0_15 = arith.constant 0 : index
    %13 = vector.load %arg9[%c0_13, %c1, %c1_14, %c0_15] : memref<2x10x10x16xbf16, #tpu.memory_space<vmem>>, vector<2x8x8x16xbf16>
    tpu.vector_store %arg9[%c0_13, %c1, %c1_14, %c0_15], %12 {strides = array<i32>} : memref<2x10x10x16xbf16, #tpu.memory_space<vmem>>, vector<2x8x8x16xbf16>,
    %c0_16 = arith.constant 0 : index
    %c0_17 = arith.constant 0 : index
    %c0_18 = arith.constant 0 : index
    %c0_19 = arith.constant 0 : index
    %14 = vector.load %arg9[%c0_16, %c0_17, %c0_18, %c0_19] : memref<2x10x10x16xbf16, #tpu.memory_space<vmem>>, vector<2x8x8x16xbf16>
    %15 = vector.shape_cast %14 : vector<2x8x8x16xbf16> to vector<128x16xbf16>
    %c0_20 = arith.constant 0 : index
    %c0_21 = arith.constant 0 : index
    %c1_22 = arith.constant 1 : index
    %c0_23 = arith.constant 0 : index
    %16 = vector.load %arg9[%c0_20, %c0_21, %c1_22, %c0_23] : memref<2x10x10x16xbf16, #tpu.memory_space<vmem>>, vector<2x8x8x16xbf16>
    %17 = vector.shape_cast %16 : vector<2x8x8x16xbf16> to vector<128x16xbf16>
    %c0_24 = arith.constant 0 : index
    %c0_25 = arith.constant 0 : index
    %c2 = arith.constant 2 : index
    %c0_26 = arith.constant 0 : index
    %18 = vector.load %arg9[%c0_24, %c0_25, %c2, %c0_26] : memref<2x10x10x16xbf16, #tpu.memory_space<vmem>>, vector<2x8x8x16xbf16>
    %19 = vector.shape_cast %18 : vector<2x8x8x16xbf16> to vector<128x16xbf16>
    %c0_27 = arith.constant 0 : index
    %c1_28 = arith.constant 1 : index
    %c0_29 = arith.constant 0 : index
    %c0_30 = arith.constant 0 : index
    %20 = vector.load %arg9[%c0_27, %c1_28, %c0_29, %c0_30] : memref<2x10x10x16xbf16, #tpu.memory_space<vmem>>, vector<2x8x8x16xbf16>
    %21 = vector.shape_cast %20 : vector<2x8x8x16xbf16> to vector<128x16xbf16>
    %c0_31 = arith.constant 0 : index
    %c1_32 = arith.constant 1 : index
    %c1_33 = arith.constant 1 : index
    %c0_34 = arith.constant 0 : index
    %22 = vector.load %arg9[%c0_31, %c1_32, %c1_33, %c0_34] : memref<2x10x10x16xbf16, #tpu.memory_space<vmem>>, vector<2x8x8x16xbf16>
    %23 = vector.shape_cast %22 : vector<2x8x8x16xbf16> to vector<128x16xbf16>
    %c0_35 = arith.constant 0 : index
    %c1_36 = arith.constant 1 : index
    %c2_37 = arith.constant 2 : index
    %c0_38 = arith.constant 0 : index
    %24 = vector.load %arg9[%c0_35, %c1_36, %c2_37, %c0_38] : memref<2x10x10x16xbf16, #tpu.memory_space<vmem>>, vector<2x8x8x16xbf16>
    %25 = vector.shape_cast %24 : vector<2x8x8x16xbf16> to vector<128x16xbf16>
    %c0_39 = arith.constant 0 : index
    %c2_40 = arith.constant 2 : index
    %c0_41 = arith.constant 0 : index
    %c0_42 = arith.constant 0 : index
    %26 = vector.load %arg9[%c0_39, %c2_40, %c0_41, %c0_42] : memref<2x10x10x16xbf16, #tpu.memory_space<vmem>>, vector<2x8x8x16xbf16>
    %27 = vector.shape_cast %26 : vector<2x8x8x16xbf16> to vector<128x16xbf16>
    %c0_43 = arith.constant 0 : index
    %c2_44 = arith.constant 2 : index
    %c1_45 = arith.constant 1 : index
    %c0_46 = arith.constant 0 : index
    %28 = vector.load %arg9[%c0_43, %c2_44, %c1_45, %c0_46] : memref<2x10x10x16xbf16, #tpu.memory_space<vmem>>, vector<2x8x8x16xbf16>
    %29 = vector.shape_cast %28 : vector<2x8x8x16xbf16> to vector<128x16xbf16>
    %c0_47 = arith.constant 0 : index
    %c2_48 = arith.constant 2 : index
    %c2_49 = arith.constant 2 : index
    %c0_50 = arith.constant 0 : index
    %30 = vector.load %arg9[%c0_47, %c2_48, %c2_49, %c0_50] : memref<2x10x10x16xbf16, #tpu.memory_space<vmem>>, vector<2x8x8x16xbf16>
    %31 = vector.shape_cast %30 : vector<2x8x8x16xbf16> to vector<128x16xbf16>
    %32 = tpu.concatenate %15, %17, %19, %21, %23, %25, %27, %29, %31 in 1 : vector<128x16xbf16>, vector<128x16xbf16>, vector<128x16xbf16>, vector<128x16xbf16>, vector<128x16xbf16>, vector<128x16xbf16>, vector<128x16xbf16>, vector<128x16xbf16>, vector<128x16xbf16> -> vector<128x144xbf16>
    %c0_51 = arith.constant 0 : index
    %c0_52 = arith.constant 0 : index
    %33 = vector.load %arg4[%c0_51, %c0_52] : memref<144x16xbf16, #tpu.memory_space<vmem>>, vector<144x16xbf16>
    %cst_53 = arith.constant dense<0.000000e+00> : vector<128x16xf32>
    %34 = tpu.matmul %32, %33, %cst_53 {dimension_numbers = #tpu.dot_dimension_numbers<[1], [0], [0], [1], [0, 0, 1, 1], [], []>} : vector<128x144xbf16>, vector<144x16xbf16>, vector<128x16xf32> -> vector<128x16xf32>
    %c0_54 = arith.constant 0 : index
    %c0_55 = arith.constant 0 : index
    %35 = vector.load %arg5[%c0_54, %c0_55] : memref<1x16xf32, #tpu.memory_space<vmem>>, vector<1x16xf32>
    %36 = vector.broadcast %35 : vector<1x16xf32> to vector<128x16xf32>
    %37 = arith.addf %34, %36 : vector<128x16xf32>
    %cst_56 = arith.constant 0.000000e+00 : f32
    %38 = vector.broadcast %cst_56 : f32 to vector<128x16xf32>
    %39 = arith.maximumf %37, %38 : vector<128x16xf32>
    %40 = arith.truncf %39 : vector<128x16xf32> to vector<128x16xbf16>
    %c0_57 = arith.constant 0 : index
    %c0_58 = arith.constant 0 : index
    %41 = vector.load %arg6[%c0_57, %c0_58] : memref<16x64xbf16, #tpu.memory_space<vmem>>, vector<16x64xbf16>
    %cst_59 = arith.constant dense<0.000000e+00> : vector<128x64xf32>
    %42 = tpu.matmul %40, %41, %cst_59 {dimension_numbers = #tpu.dot_dimension_numbers<[1], [0], [0], [1], [0, 0, 1, 1], [], []>} : vector<128x16xbf16>, vector<16x64xbf16>, vector<128x64xf32> -> vector<128x64xf32>
    %43 = arith.extf %3 : vector<128x64xbf16> to vector<128x64xf32>
    %44 = arith.addf %42, %43 : vector<128x64xf32>
    %c0_60 = arith.constant 0 : index
    %c0_61 = arith.constant 0 : index
    %45 = vector.load %arg7[%c0_60, %c0_61] : memref<1x64xf32, #tpu.memory_space<vmem>>, vector<1x64xf32>
    %46 = vector.broadcast %45 : vector<1x64xf32> to vector<128x64xf32>
    %47 = arith.addf %44, %46 : vector<128x64xf32>
    %cst_62 = arith.constant 0.000000e+00 : f32
    %48 = vector.broadcast %cst_62 : f32 to vector<128x64xf32>
    %49 = arith.maximumf %47, %48 : vector<128x64xf32>
    %50 = vector.shape_cast %49 : vector<128x64xf32> to vector<2x8x8x64xf32>
    %51 = arith.truncf %50 : vector<2x8x8x64xf32> to vector<2x8x8x64xbf16>
    %c0_63 = arith.constant 0 : index
    %c0_64 = arith.constant 0 : index
    %c0_65 = arith.constant 0 : index
    %c0_66 = arith.constant 0 : index
    %52 = vector.load %arg8[%c0_63, %c0_64, %c0_65, %c0_66] : memref<2x8x8x64xbf16, #tpu.memory_space<vmem>>, vector<2x8x8x64xbf16>
    tpu.vector_store %arg8[%c0_63, %c0_64, %c0_65, %c0_66], %51 {strides = array<i32>} : memref<2x8x8x64xbf16, #tpu.memory_space<vmem>>, vector<2x8x8x64xbf16>,
    return
  }
  func.func @transform_0(%arg0: i32) -> (i32, i32, i32, i32) {
    %c0_i32 = arith.constant 0 : i32
    %c0_i32_0 = arith.constant 0 : i32
    %c0_i32_1 = arith.constant 0 : i32
    %c0_i32_2 = arith.constant 0 : i32
    return %arg0, %c0_i32, %c0_i32_0, %c0_i32_1 : i32, i32, i32, i32
  }
  func.func @transform_1(%arg0: i32) -> (i32, i32) {
    %c0_i32 = arith.constant 0 : i32
    %c0_i32_0 = arith.constant 0 : i32
    %c0_i32_1 = arith.constant 0 : i32
    return %c0_i32, %c0_i32_0 : i32, i32
  }
  func.func @transform_2(%arg0: i32) -> (i32, i32) {
    %c0_i32 = arith.constant 0 : i32
    %c0_i32_0 = arith.constant 0 : i32
    %c0_i32_1 = arith.constant 0 : i32
    return %c0_i32, %c0_i32_0 : i32, i32
  }
  func.func @transform_3(%arg0: i32) -> (i32, i32) {
    %c0_i32 = arith.constant 0 : i32
    %c0_i32_0 = arith.constant 0 : i32
    %c0_i32_1 = arith.constant 0 : i32
    return %c0_i32, %c0_i32_0 : i32, i32
  }
  func.func @transform_4(%arg0: i32) -> (i32, i32) {
    %c0_i32 = arith.constant 0 : i32
    %c0_i32_0 = arith.constant 0 : i32
    %c0_i32_1 = arith.constant 0 : i32
    return %c0_i32, %c0_i32_0 : i32, i32
  }
  func.func @transform_5(%arg0: i32) -> (i32, i32) {
    %c0_i32 = arith.constant 0 : i32
    %c0_i32_0 = arith.constant 0 : i32
    %c0_i32_1 = arith.constant 0 : i32
    return %c0_i32, %c0_i32_0 : i32, i32
  }
  func.func @transform_6(%arg0: i32) -> (i32, i32) {
    %c0_i32 = arith.constant 0 : i32
    %c0_i32_0 = arith.constant 0 : i32
    %c0_i32_1 = arith.constant 0 : i32
    return %c0_i32, %c0_i32_0 : i32, i32
  }
  func.func @transform_7(%arg0: i32) -> (i32, i32, i32, i32) {
    %c0_i32 = arith.constant 0 : i32
    %c0_i32_0 = arith.constant 0 : i32
    %c0_i32_1 = arith.constant 0 : i32
    %c0_i32_2 = arith.constant 0 : i32
    return %arg0, %c0_i32, %c0_i32_0, %c0_i32_1 : i32, i32, i32, i32
  }
}

</mosaic_0001>

<llo_original>
// kernel: _lambda_.2
$region0: #{_lambda_.2}
  #allocation0 [shape = 'u32[]', space=smem, size = 0x4, offset = 0x4, fixed_abs, tag = 'smem constant byte address 0x4 - core index']
  #allocation1 [shape = 'u32[144,128]{1,0:T(1,128)}', space=vmem, size = 0x12000, scoped, tag = 'internal scratch']
  #allocation2 [shape = 'bf16[2,10,10,16]{3,2,1,0:T(8,128)(2,1)}', space=vmem, size = 0x14000, scoped, tag = 'scratch operand']
  %s0 = inlined_call_operand.vmem [shape: bf16[2,8,8,32], index: 0, kind: input, shape index: {}]
  %s1 = inlined_call_operand.vmem [shape: bf16[32,16], index: 1, kind: input, shape index: {}]
  %s2 = inlined_call_operand.vmem [shape: f32[1,16], index: 2, kind: input, shape index: {}]
  %s3 = inlined_call_operand.vmem [shape: bf16[144,16], index: 3, kind: input, shape index: {}]
  %s4 = inlined_call_operand.vmem [shape: f32[1,16], index: 4, kind: input, shape index: {}]
  %s5 = inlined_call_operand.vmem [shape: bf16[16,64], index: 5, kind: input, shape index: {}]
  %s6 = inlined_call_operand.vmem [shape: f32[1,64], index: 6, kind: input, shape index: {}]
  %s7 = inlined_call_operand.vmem [shape: bf16[32,64], index: 7, kind: input, shape index: {}]
  %s8 = inlined_call_operand.vmem [shape: bf16[2,8,8,64], index: 8, kind: output, shape index: {}]
  %s9 = sld [smem:[#allocation0]]
  $region42: #{_lambda_.2} parent=0
    _
  %s11 = ssub.s32 1, %s9
  %s12 = scalar_select 0, %s11, %s9
  // Predicated region
  $region2: #{_lambda_.2} parent=0 // pred_check
    _
  $region3: #{_lambda_.2} parent=0 // pred_check_branch
    %14 = sbr.rel (0) target = $region5
  $region4: #{_lambda_.2} parent=0 // pred_region
    _
  $region5: #{_lambda_.2} parent=0 // pred_fallthru
    _
  // Predicated region
  $region6: #{_lambda_.2} parent=0 // pred_check
    _
  $region7: #{_lambda_.2} parent=0 // pred_check_branch
    %16 = sbr.rel (0) target = $region9
  $region8: #{_lambda_.2} parent=0 // pred_region
    _
  $region9: #{_lambda_.2} parent=0 // pred_fallthru
    _
  // Predicated region
  $region10: #{_lambda_.2} parent=0 // pred_check
    _
  $region11: #{_lambda_.2} parent=0 // pred_check_branch
    %18 = sbr.rel (0) target = $region13
  $region12: #{_lambda_.2} parent=0 // pred_region
    _
  $region13: #{_lambda_.2} parent=0 // pred_fallthru
    _
  // Predicated region
  $region14: #{_lambda_.2} parent=0 // pred_check
    _
  $region15: #{_lambda_.2} parent=0 // pred_check_branch
    %20 = sbr.rel (0) target = $region17
  $region16: #{_lambda_.2} parent=0 // pred_region
    _
  $region17: #{_lambda_.2} parent=0 // pred_fallthru
    _
  // Predicated region
  $region18: #{_lambda_.2} parent=0 // pred_check
    _
  $region19: #{_lambda_.2} parent=0 // pred_check_branch
    %22 = sbr.rel (0) target = $region21
  $region20: #{_lambda_.2} parent=0 // pred_region
    _
  $region21: #{_lambda_.2} parent=0 // pred_fallthru
    _
  // Predicated region
  $region22: #{_lambda_.2} parent=0 // pred_check
    _
  $region23: #{_lambda_.2} parent=0 // pred_check_branch
    %24 = sbr.rel (0) target = $region25
  $region24: #{_lambda_.2} parent=0 // pred_region
    _
  $region25: #{_lambda_.2} parent=0 // pred_fallthru
    _
  // Predicated region
  $region26: #{_lambda_.2} parent=0 // pred_check
    _
  $region27: #{_lambda_.2} parent=0 // pred_check_branch
    %26 = sbr.rel (0) target = $region29
  $region28: #{_lambda_.2} parent=0 // pred_region
    _
  $region29: #{_lambda_.2} parent=0 // pred_fallthru
    _
  // Predicated region
  $region30: #{_lambda_.2} parent=0 // pred_check
    _
  $region31: #{_lambda_.2} parent=0 // pred_check_branch
    %28 = sbr.rel (0) target = $region33
  $region32: #{_lambda_.2} parent=0 // pred_region
    _
  $region33: #{_lambda_.2} parent=0 // pred_fallthru
    _
  %vm30 = vcmask 125952
  %31 = vst.msk [vmem:[#allocation2] sm:$0xf] %vm30, 0
  %vm32 = vcmask 122880
  %33 = vst.msk [vmem:[#allocation2 + $0x4] sm:$0x1] %vm32, 0
  %34 = vst.msk [vmem:[#allocation2 + $0x8] sm:$0xf] %vm30, 0
  %35 = vst.msk [vmem:[#allocation2 + $0xc] sm:$0x1] %vm32, 0
  %36 = vst.msk [vmem:[#allocation2 + $0x10] sm:$0xf] %vm30, 0
  %37 = vst.msk [vmem:[#allocation2 + $0x14] sm:$0x1] %vm32, 0
  %38 = vst.msk [vmem:[#allocation2 + $0x18] sm:$0xf] %vm30, 0
  %39 = vst.msk [vmem:[#allocation2 + $0x1c] sm:$0x1] %vm32, 0
  %40 = vst.msk [vmem:[#allocation2 + $0x20] sm:$0xf] %vm30, 0
  %41 = vst.msk [vmem:[#allocation2 + $0x24] sm:$0x1] %vm32, 0
  %42 = vst.msk [vmem:[#allocation2 + $0x28] sm:$0xf] %vm30, 0
  %43 = vst.msk [vmem:[#allocation2 + $0x2c] sm:$0x1] %vm32, 0
  %44 = vst.msk [vmem:[#allocation2 + $0x30] sm:$0xf] %vm30, 0
  %45 = vst.msk [vmem:[#allocation2 + $0x34] sm:$0x1] %vm32, 0
  %46 = vst.msk [vmem:[#allocation2 + $0x38] sm:$0xf] %vm30, 0
  %47 = vst.msk [vmem:[#allocation2 + $0x3c] sm:$0x1] %vm32, 0
  %48 = vst.msk [vmem:[#allocation2 + $0x40] sm:$0xf] %vm30, 0
  %49 = vst.msk [vmem:[#allocation2 + $0x44] sm:$0x1] %vm32, 0
  %50 = vst.msk [vmem:[#allocation2 + $0x48] sm:$0xf] %vm30, 0
  %51 = vst.msk [vmem:[#allocation2 + $0x4c] sm:$0x1] %vm32, 0
  %52 = vst.msk [vmem:[#allocation2 + $0x50] sm:$0xf] %vm30, 0
  %53 = vst.msk [vmem:[#allocation2 + $0x54] sm:$0x1] %vm32, 0
  %54 = vst.msk [vmem:[#allocation2 + $0x58] sm:$0xf] %vm30, 0
  %55 = vst.msk [vmem:[#allocation2 + $0x5c] sm:$0x1] %vm32, 0
  %56 = vst.msk [vmem:[#allocation2 + $0x60] sm:$0xf] %vm30, 0
  %57 = vst.msk [vmem:[#allocation2 + $0x64] sm:$0x1] %vm32, 0
  %58 = vst.msk [vmem:[#allocation2 + $0x68] sm:$0xf] %vm30, 0
  %59 = vst.msk [vmem:[#allocation2 + $0x6c] sm:$0x1] %vm32, 0
  %60 = vst.msk [vmem:[#allocation2 + $0x70] sm:$0xf] %vm30, 0
  %61 = vst.msk [vmem:[#allocation2 + $0x74] sm:$0x1] %vm32, 0
  %62 = vst.msk [vmem:[#allocation2 + $0x78] sm:$0xf] %vm30, 0
  %63 = vst.msk [vmem:[#allocation2 + $0x7c] sm:$0x1] %vm32, 0
  %64 = vst.msk [vmem:[#allocation2 + $0x80] sm:$0xf] %vm30, 0
  %65 = vst.msk [vmem:[#allocation2 + $0x84] sm:$0x1] %vm32, 0
  %66 = vst.msk [vmem:[#allocation2 + $0x88] sm:$0xf] %vm30, 0
  %67 = vst.msk [vmem:[#allocation2 + $0x8c] sm:$0x1] %vm32, 0
  %68 = vst.msk [vmem:[#allocation2 + $0x90] sm:$0xf] %vm30, 0
  %69 = vst.msk [vmem:[#allocation2 + $0x94] sm:$0x1] %vm32, 0
  %70 = vst.msk [vmem:[#allocation2 + $0x98] sm:$0xf] %vm30, 0
  %71 = vst.msk [vmem:[#allocation2 + $0x9c] sm:$0x1] %vm32, 0
  %v72 = vld [vmem:[%s0] sm:$0xf]
  %v73 = vld [vmem:[%s0 + $0x4] sm:$0xf]
  %v74 = vld [vmem:[%s0 + $0x8] sm:$0xf]
  %v75 = vld [vmem:[%s0 + $0xc] sm:$0xf]
  %v76 = vld [vmem:[%s0 + $0x10] sm:$0xf]
  %v77 = vld [vmem:[%s0 + $0x14] sm:$0xf]
  %v78 = vld [vmem:[%s0 + $0x18] sm:$0xf]
  %v79 = vld [vmem:[%s0 + $0x1c] sm:$0xf]
  %v80 = vld [vmem:[%s0 + $0x20] sm:$0xf]
  %v81 = vld [vmem:[%s0 + $0x24] sm:$0xf]
  %v82 = vld [vmem:[%s0 + $0x28] sm:$0xf]
  %v83 = vld [vmem:[%s0 + $0x2c] sm:$0xf]
  %v84 = vld [vmem:[%s0 + $0x30] sm:$0xf]
  %v85 = vld [vmem:[%s0 + $0x34] sm:$0xf]
  %v86 = vld [vmem:[%s0 + $0x38] sm:$0xf]
  %v87 = vld [vmem:[%s0 + $0x3c] sm:$0xf]
  %v88 = vld [vmem:[%s1] sm:$0xf]
  %v89 = vld [vmem:[%s1 + $0x4] sm:$0xf]
  %v90 = vld [vmem:[%s1 + $0x8] sm:$0xf]
  %v91 = vld [vmem:[%s1 + $0xc] sm:$0xf]
  %v92 = vld [vmem:[%s2] sm:$0x1]
  %v94 = vlaneseq
  %v95 = vshrl.u32 %v94, 7
  %v96 = vsub.s32 0, %v95
  %v97 = vrot.slane %v92, %v96
  %v115 = vunpack.c.l.b16 %v72
  %v116 = vunpack.c.l.b16 %v73
  %v117 = vunpack.c.l.b16 %v74
  %v118 = vunpack.c.l.b16 %v75
  %v119 = vunpack.c.l.b16 %v76
  %v120 = vunpack.c.l.b16 %v77
  %v121 = vunpack.c.l.b16 %v78
  %v122 = vunpack.c.l.b16 %v79
  %v123 = vunpack.c.l.b16 %v80
  %v124 = vunpack.c.l.b16 %v81
  %v125 = vunpack.c.l.b16 %v82
  %v126 = vunpack.c.l.b16 %v83
  %v127 = vunpack.c.l.b16 %v84
  %v128 = vunpack.c.l.b16 %v85
  %v129 = vunpack.c.l.b16 %v86
  %v130 = vunpack.c.l.b16 %v87
  %v131 = vpack.c.b16 %v116, %v115
  %v132 = vpack.c.b16 %v118, %v117
  %v133 = vpack.c.b16 %v120, %v119
  %v134 = vpack.c.b16 %v122, %v121
  %v135 = vpack.c.b16 %v124, %v123
  %v136 = vpack.c.b16 %v126, %v125
  %v137 = vpack.c.b16 %v128, %v127
  %v138 = vpack.c.b16 %v130, %v129
  %v143 = vunpack.c.l.b16 %v88
  %v144 = vunpack.c.l.b16 %v89
  %v145 = vunpack.c.l.b16 %v90
  %v146 = vunpack.c.l.b16 %v91
  %v147 = vpack.c.b16 %v144, %v143
  %v148 = vpack.c.b16 %v146, %v145
  %vm151 = vcmask 261120
  %v153 = vsel %vm151, %v131, 0
  %v156 = vsel %vm151, %v132, 0
  %v159 = vsel %vm151, %v133, 0
  %v162 = vsel %vm151, %v134, 0
  %v165 = vsel %vm151, %v135, 0
  %v168 = vsel %vm151, %v136, 0
  %v171 = vsel %vm151, %v137, 0
  %v174 = vsel %vm151, %v138, 0
  %176 = vmatprep.subr.bf16.mxu0 0
  %177 = vmatpush1.bf16.msra.mxu0 %v147
  %178 = vmatprep.subr.bf16.mxu0 0
  %179 = vmatpush1.bf16.msra.mxu0 %v148
  %180 = vmatprep.subr.bf16.mxu0 0
  %181 = vmatpush1.bf16.msra.mxu0 0
  %182 = vmatprep.subr.bf16.mxu0 0
  %183 = vmatpush1.bf16.msra.mxu0 0
  %184 = vmatprep.subr.bf16.mxu0 0
  %185 = vmatpush1.bf16.msra.mxu0 0
  %186 = vmatprep.subr.bf16.mxu0 0
  %187 = vmatpush1.bf16.msra.mxu0 0
  %188 = vmatprep.subr.bf16.mxu0 0
  %189 = vmatpush1.bf16.msra.mxu0 0
  %190 = vmatprep.subr.bf16.mxu0 0
  %191 = vmatpush1.bf16.msra.mxu0 0
  %192 = vmatprep.subr.bf16.mxu0 0
  %193 = vmatpush1.bf16.msra.mxu0 0
  %194 = vmatprep.subr.bf16.mxu0 0
  %195 = vmatpush1.bf16.msra.mxu0 0
  %196 = vmatprep.subr.bf16.mxu0 0
  %197 = vmatpush1.bf16.msra.mxu0 0
  %198 = vmatprep.subr.bf16.mxu0 0
  %199 = vmatpush1.bf16.msra.mxu0 0
  %200 = vmatprep.subr.bf16.mxu0 0
  %201 = vmatpush1.bf16.msra.mxu0 0
  %202 = vmatprep.subr.bf16.mxu0 0
  %203 = vmatpush1.bf16.msra.mxu0 0
  %204 = vmatprep.subr.bf16.mxu0 0
  %205 = vmatpush1.bf16.msra.mxu0 0
  %206 = vmatprep.subr.bf16.mxu0 0
  %207 = vmatpush1.bf16.msra.mxu0 0
  %208 = vmatprep.mubr.bf16.mxu0 0
  %209 = vmatmul.mubr.bf16.gmra.mrb[0].mxu0 %v153
  %v210 = vpop.f32.mrb[0].mxu0
  %v211 = vadd.f32 %v97, %v210
  %v212 = vpop.f32.mrb[0].mxu0
  %v213 = vpop.f32.mrb[0].mxu0
  %v214 = vadd.f32 %v97, %v213
  %v215 = vpop.f32.mrb[0].mxu0
  %216 = vmatprep.mubr.bf16.mxu0 0
  %217 = vmatmul.mubr.bf16.gmra.mrb[0].mxu0 %v156
  %v218 = vpop.f32.mrb[0].mxu0
  %v219 = vadd.f32 %v97, %v218
  %v220 = vpop.f32.mrb[0].mxu0
  %v221 = vpop.f32.mrb[0].mxu0
  %v222 = vadd.f32 %v97, %v221
  %v223 = vpop.f32.mrb[0].mxu0
  %224 = vmatprep.mubr.bf16.mxu0 0
  %225 = vmatmul.mubr.bf16.gmra.mrb[0].mxu0 %v159
  %v226 = vpop.f32.mrb[0].mxu0
  %v227 = vadd.f32 %v97, %v226
  %v228 = vpop.f32.mrb[0].mxu0
  %v229 = vpop.f32.mrb[0].mxu0
  %v230 = vadd.f32 %v97, %v229
  %v231 = vpop.f32.mrb[0].mxu0
  %232 = vmatprep.mubr.bf16.mxu0 0
  %233 = vmatmul.mubr.bf16.gmra.mrb[0].mxu0 %v162
  %v234 = vpop.f32.mrb[0].mxu0
  %v235 = vadd.f32 %v97, %v234
  %v236 = vpop.f32.mrb[0].mxu0
  %v237 = vpop.f32.mrb[0].mxu0
  %v238 = vadd.f32 %v97, %v237
  %v239 = vpop.f32.mrb[0].mxu0
  %240 = vmatprep.mubr.bf16.mxu0 0
  %241 = vmatmul.mubr.bf16.gmra.mrb[0].mxu0 %v165
  %v242 = vpop.f32.mrb[0].mxu0
  %v243 = vadd.f32 %v97, %v242
  %v244 = vpop.f32.mrb[0].mxu0
  %v245 = vpop.f32.mrb[0].mxu0
  %v246 = vadd.f32 %v97, %v245
  %v247 = vpop.f32.mrb[0].mxu0
  %248 = vmatprep.mubr.bf16.mxu0 0
  %249 = vmatmul.mubr.bf16.gmra.mrb[0].mxu0 %v168
  %v250 = vpop.f32.mrb[0].mxu0
  %v251 = vadd.f32 %v97, %v250
  %v252 = vpop.f32.mrb[0].mxu0
  %v253 = vpop.f32.mrb[0].mxu0
  %v254 = vadd.f32 %v97, %v253
  %v255 = vpop.f32.mrb[0].mxu0
  %256 = vmatprep.mubr.bf16.mxu0 0
  %257 = vmatmul.mubr.bf16.gmra.mrb[0].mxu0 %v171
  %v258 = vpop.f32.mrb[0].mxu0
  %v259 = vadd.f32 %v97, %v258
  %v260 = vpop.f32.mrb[0].mxu0
  %v261 = vpop.f32.mrb[0].mxu0
  %v262 = vadd.f32 %v97, %v261
  %v263 = vpop.f32.mrb[0].mxu0
  %264 = vmatprep.mubr.bf16.mxu0 0
  %265 = vmatmul.mubr.bf16.gmra.mrb[0].mxu0 %v174
  %v266 = vpop.f32.mrb[0].mxu0
  %v267 = vadd.f32 %v97, %v266
  %v268 = vpop.f32.mrb[0].mxu0
  %v269 = vpop.f32.mrb[0].mxu0
  %v270 = vadd.f32 %v97, %v269
  %v271 = vpop.f32.mrb[0].mxu0
  %272 = vdwg.mxu0
  %v273 = vmax.f32 %v211, 0.0
  %v274 = vmax.f32 %v214, 0.0
  %v275 = vmax.f32 %v219, 0.0
  %v276 = vmax.f32 %v222, 0.0
  %v277 = vmax.f32 %v227, 0.0
  %v278 = vmax.f32 %v230, 0.0
  %v279 = vmax.f32 %v235, 0.0
  %v280 = vmax.f32 %v238, 0.0
  %v281 = vmax.f32 %v243, 0.0
  %v282 = vmax.f32 %v246, 0.0
  %v283 = vmax.f32 %v251, 0.0
  %v284 = vmax.f32 %v254, 0.0
  %v285 = vmax.f32 %v259, 0.0
  %v286 = vmax.f32 %v262, 0.0
  %v287 = vmax.f32 %v267, 0.0
  %v288 = vmax.f32 %v270, 0.0
  %v289 = vpack.c.bf16 %v273, %v273
  %v290 = vpack.c.bf16 %v274, %v274
  %v291 = vpack.c.bf16 %v275, %v275
  %v292 = vpack.c.bf16 %v276, %v276
  %v293 = vpack.c.bf16 %v277, %v277
  %v294 = vpack.c.bf16 %v278, %v278
  %v295 = vpack.c.bf16 %v279, %v279
  %v296 = vpack.c.bf16 %v280, %v280
  %v297 = vpack.c.bf16 %v281, %v281
  %v298 = vpack.c.bf16 %v282, %v282
  %v299 = vpack.c.bf16 %v283, %v283
  %v300 = vpack.c.bf16 %v284, %v284
  %v301 = vpack.c.bf16 %v285, %v285
  %v302 = vpack.c.bf16 %v286, %v286
  %v303 = vpack.c.bf16 %v287, %v287
  %v304 = vpack.c.bf16 %v288, %v288
  %v321 = vunpack.c.l.b16 %v289
  %v322 = vunpack.c.l.b16 %v290
  %v323 = vunpack.c.l.b16 %v291
  %v324 = vunpack.c.l.b16 %v292
  %v325 = vunpack.c.l.b16 %v293
  %v326 = vunpack.c.l.b16 %v294
  %v327 = vunpack.c.l.b16 %v295
  %v328 = vunpack.c.l.b16 %v296
  %v329 = vunpack.c.l.b16 %v297
  %v330 = vunpack.c.l.b16 %v298
  %v331 = vunpack.c.l.b16 %v299
  %v332 = vunpack.c.l.b16 %v300
  %v333 = vunpack.c.l.b16 %v301
  %v334 = vunpack.c.l.b16 %v302
  %v335 = vunpack.c.l.b16 %v303
  %v336 = vunpack.c.l.b16 %v304
  %v337 = vpack.c.b16 %v321, %v321
  %v338 = vpack.c.b16 %v322, %v322
  %v339 = vpack.c.b16 %v323, %v323
  %v340 = vpack.c.b16 %v324, %v324
  %v341 = vpack.c.b16 %v325, %v325
  %v342 = vpack.c.b16 %v326, %v326
  %v343 = vpack.c.b16 %v327, %v327
  %v344 = vpack.c.b16 %v328, %v328
  %v345 = vpack.c.b16 %v329, %v329
  %v346 = vpack.c.b16 %v330, %v330
  %v347 = vpack.c.b16 %v331, %v331
  %v348 = vpack.c.b16 %v332, %v332
  %v349 = vpack.c.b16 %v333, %v333
  %v350 = vpack.c.b16 %v334, %v334
  %v351 = vpack.c.b16 %v335, %v335
  %v352 = vpack.c.b16 %v336, %v336
  %v354 = vshrl.u32 %v337, 16
  %v356 = vrot.slane %v354, 7
  %v357 = vshll.u32 %v337, 16
  %v359 = vor.u32 %v356, %v357
  %v360 = vrot.slane %v356, 4
  %v362 = vshrl.u32 %v338, 16
  %v364 = vrot.slane %v362, 7
  %v365 = vshll.u32 %v338, 16
  %v367 = vor.u32 %v364, %v365
  %v368 = vrot.slane %v364, 4
  %v370 = vshrl.u32 %v339, 16
  %v372 = vrot.slane %v370, 7
  %v373 = vshll.u32 %v339, 16
  %v375 = vor.u32 %v372, %v373
  %v376 = vrot.slane %v372, 4
  %v378 = vshrl.u32 %v340, 16
  %v380 = vrot.slane %v378, 7
  %v381 = vshll.u32 %v340, 16
  %v383 = vor.u32 %v380, %v381
  %v384 = vrot.slane %v380, 4
  %v386 = vshrl.u32 %v341, 16
  %v388 = vrot.slane %v386, 7
  %v389 = vshll.u32 %v341, 16
  %v391 = vor.u32 %v388, %v389
  %v392 = vrot.slane %v388, 4
  %v394 = vshrl.u32 %v342, 16
  %v396 = vrot.slane %v394, 7
  %v397 = vshll.u32 %v342, 16
  %v399 = vor.u32 %v396, %v397
  %v400 = vrot.slane %v396, 4
  %v402 = vshrl.u32 %v343, 16
  %v404 = vrot.slane %v402, 7
  %v405 = vshll.u32 %v343, 16
  %v407 = vor.u32 %v404, %v405
  %v408 = vrot.slane %v404, 4
  %v410 = vshrl.u32 %v344, 16
  %v412 = vrot.slane %v410, 7
  %v413 = vshll.u32 %v344, 16
  %v415 = vor.u32 %v412, %v413
  %v416 = vrot.slane %v412, 4
  %v418 = vshrl.u32 %v345, 16
  %v420 = vrot.slane %v418, 7
  %v421 = vshll.u32 %v345, 16
  %v423 = vor.u32 %v420, %v421
  %v424 = vrot.slane %v420, 4
  %v426 = vshrl.u32 %v346, 16
  %v428 = vrot.slane %v426, 7
  %v429 = vshll.u32 %v346, 16
  %v431 = vor.u32 %v428, %v429
  %v432 = vrot.slane %v428, 4
  %v434 = vshrl.u32 %v347, 16
  %v436 = vrot.slane %v434, 7
  %v437 = vshll.u32 %v347, 16
  %v439 = vor.u32 %v436, %v437
  %v440 = vrot.slane %v436, 4
  %v442 = vshrl.u32 %v348, 16
  %v444 = vrot.slane %v442, 7
  %v445 = vshll.u32 %v348, 16
  %v447 = vor.u32 %v444, %v445
  %v448 = vrot.slane %v444, 4
  %v450 = vshrl.u32 %v349, 16
  %v452 = vrot.slane %v450, 7
  %v453 = vshll.u32 %v349, 16
  %v455 = vor.u32 %v452, %v453
  %v456 = vrot.slane %v452, 4
  %v458 = vshrl.u32 %v350, 16
  %v460 = vrot.slane %v458, 7
  %v461 = vshll.u32 %v350, 16
  %v463 = vor.u32 %v460, %v461
  %v464 = vrot.slane %v460, 4
  %v466 = vshrl.u32 %v351, 16
  %v468 = vrot.slane %v466, 7
  %v469 = vshll.u32 %v351, 16
  %v471 = vor.u32 %v468, %v469
  %v472 = vrot.slane %v468, 4
  %v474 = vshrl.u32 %v352, 16
  %v476 = vrot.slane %v474, 7
  %v477 = vshll.u32 %v352, 16
  %v479 = vor.u32 %v476, %v477
  %v480 = vrot.slane %v476, 4
  %s513 = scalar_lea.vmem [#allocation2], 8
  %vm514 = vcmask 125952
  %vm515 = vsmask.f32 7938
  %vm516 = vmand %vm514, %vm515
  %v517 = vld [vmem:[%s513] sm:$0xf]
  %v518 = vsel %vm516, %v359, %v517
  %519 = vst [vmem:[%s513] sm:$0xf] %v518
  %vm520 = vcmask 122880
  %vm521 = vsmask.f32 256
  %vm522 = vmand %vm520, %vm521
  %v523 = vld [vmem:[%s513 + $0x4] sm:$0x1]
  %v524 = vsel %vm522, %v360, %v523
  %525 = vst [vmem:[%s513 + $0x4] sm:$0x1] %v524
  %v526 = vld [vmem:[%s513 + $0x8] sm:$0xf]
  %v527 = vsel %vm516, %v367, %v526
  %528 = vst [vmem:[%s513 + $0x8] sm:$0xf] %v527
  %v529 = vld [vmem:[%s513 + $0xc] sm:$0x1]
  %v530 = vsel %vm522, %v368, %v529
  %531 = vst [vmem:[%s513 + $0xc] sm:$0x1] %v530
  %v532 = vld [vmem:[%s513 + $0x10] sm:$0xf]
  %v533 = vsel %vm516, %v375, %v532
  %534 = vst [vmem:[%s513 + $0x10] sm:$0xf] %v533
  %v535 = vld [vmem:[%s513 + $0x14] sm:$0x1]
  %v536 = vsel %vm522, %v376, %v535
  %537 = vst [vmem:[%s513 + $0x14] sm:$0x1] %v536
  %v538 = vld [vmem:[%s513 + $0x18] sm:$0xf]
  %v539 = vsel %vm516, %v383, %v538
  %540 = vst [vmem:[%s513 + $0x18] sm:$0xf] %v539
  %v541 = vld [vmem:[%s513 + $0x1c] sm:$0x1]
  %v542 = vsel %vm522, %v384, %v541
  %543 = vst [vmem:[%s513 + $0x1c] sm:$0x1] %v542
  %v544 = vld [vmem:[%s513 + $0x20] sm:$0xf]
  %v545 = vsel %vm516, %v391, %v544
  %546 = vst [vmem:[%s513 + $0x20] sm:$0xf] %v545
  %v547 = vld [vmem:[%s513 + $0x24] sm:$0x1]
  %v548 = vsel %vm522, %v392, %v547
  %549 = vst [vmem:[%s513 + $0x24] sm:$0x1] %v548
  %v550 = vld [vmem:[%s513 + $0x28] sm:$0xf]
  %v551 = vsel %vm516, %v399, %v550
  %552 = vst [vmem:[%s513 + $0x28] sm:$0xf] %v551
  %v553 = vld [vmem:[%s513 + $0x2c] sm:$0x1]
  %v554 = vsel %vm522, %v400, %v553
  %555 = vst [vmem:[%s513 + $0x2c] sm:$0x1] %v554
  %v556 = vld [vmem:[%s513 + $0x30] sm:$0xf]
  %v557 = vsel %vm516, %v407, %v556
  %558 = vst [vmem:[%s513 + $0x30] sm:$0xf] %v557
  %v559 = vld [vmem:[%s513 + $0x34] sm:$0x1]
  %v560 = vsel %vm522, %v408, %v559
  %561 = vst [vmem:[%s513 + $0x34] sm:$0x1] %v560
  %v562 = vld [vmem:[%s513 + $0x38] sm:$0xf]
  %v563 = vsel %vm516, %v415, %v562
  %564 = vst [vmem:[%s513 + $0x38] sm:$0xf] %v563
  %v565 = vld [vmem:[%s513 + $0x3c] sm:$0x1]
  %v566 = vsel %vm522, %v416, %v565
  %567 = vst [vmem:[%s513 + $0x3c] sm:$0x1] %v566
  %v568 = vld [vmem:[%s513 + $0x50] sm:$0xf]
  %v569 = vsel %vm516, %v423, %v568
  %570 = vst [vmem:[%s513 + $0x50] sm:$0xf] %v569
  %v571 = vld [vmem:[%s513 + $0x54] sm:$0x1]
  %v572 = vsel %vm522, %v424, %v571
  %573 = vst [vmem:[%s513 + $0x54] sm:$0x1] %v572
  %v574 = vld [vmem:[%s513 + $0x58] sm:$0xf]
  %v575 = vsel %vm516, %v431, %v574
  %576 = vst [vmem:[%s513 + $0x58] sm:$0xf] %v575
  %v577 = vld [vmem:[%s513 + $0x5c] sm:$0x1]
  %v578 = vsel %vm522, %v432, %v577
  %579 = vst [vmem:[%s513 + $0x5c] sm:$0x1] %v578
  %v580 = vld [vmem:[%s513 + $0x60] sm:$0xf]
  %v581 = vsel %vm516, %v439, %v580
  %582 = vst [vmem:[%s513 + $0x60] sm:$0xf] %v581
  %v583 = vld [vmem:[%s513 + $0x64] sm:$0x1]
  %v584 = vsel %vm522, %v440, %v583
  %585 = vst [vmem:[%s513 + $0x64] sm:$0x1] %v584
  %v586 = vld [vmem:[%s513 + $0x68] sm:$0xf]
  %v587 = vsel %vm516, %v447, %v586
  %588 = vst [vmem:[%s513 + $0x68] sm:$0xf] %v587
  %v589 = vld [vmem:[%s513 + $0x6c] sm:$0x1]
  %v590 = vsel %vm522, %v448, %v589
  %591 = vst [vmem:[%s513 + $0x6c] sm:$0x1] %v590
  %v592 = vld [vmem:[%s513 + $0x70] sm:$0xf]
  %v593 = vsel %vm516, %v455, %v592
  %594 = vst [vmem:[%s513 + $0x70] sm:$0xf] %v593
  %v595 = vld [vmem:[%s513 + $0x74] sm:$0x1]
  %v596 = vsel %vm522, %v456, %v595
  %597 = vst [vmem:[%s513 + $0x74] sm:$0x1] %v596
  %v598 = vld [vmem:[%s513 + $0x78] sm:$0xf]
  %v599 = vsel %vm516, %v463, %v598
  %600 = vst [vmem:[%s513 + $0x78] sm:$0xf] %v599
  %v601 = vld [vmem:[%s513 + $0x7c] sm:$0x1]
  %v602 = vsel %vm522, %v464, %v601
  %603 = vst [vmem:[%s513 + $0x7c] sm:$0x1] %v602
  %v604 = vld [vmem:[%s513 + $0x80] sm:$0xf]
  %v605 = vsel %vm516, %v471, %v604
  %606 = vst [vmem:[%s513 + $0x80] sm:$0xf] %v605
  %v607 = vld [vmem:[%s513 + $0x84] sm:$0x1]
  %v608 = vsel %vm522, %v472, %v607
  %609 = vst [vmem:[%s513 + $0x84] sm:$0x1] %v608
  %v610 = vld [vmem:[%s513 + $0x88] sm:$0xf]
  %v611 = vsel %vm516, %v479, %v610
  %612 = vst [vmem:[%s513 + $0x88] sm:$0xf] %v611
  %v613 = vld [vmem:[%s513 + $0x8c] sm:$0x1]
  %v614 = vsel %vm522, %v480, %v613
  %615 = vst [vmem:[%s513 + $0x8c] sm:$0x1] %v614
  %v616 = vld [vmem:[#allocation2] sm:$0xf]
  %v617 = vld [vmem:[#allocation2 + $0x8] sm:$0xf]
  %v618 = vld [vmem:[#allocation2 + $0x10] sm:$0xf]
  %v619 = vld [vmem:[#allocation2 + $0x18] sm:$0xf]
  %v620 = vld [vmem:[#allocation2 + $0x20] sm:$0xf]
  %v621 = vld [vmem:[#allocation2 + $0x28] sm:$0xf]
  %v622 = vld [vmem:[#allocation2 + $0x30] sm:$0xf]
  %v623 = vld [vmem:[#allocation2 + $0x38] sm:$0xf]
  %v624 = vld [vmem:[#allocation2 + $0x50] sm:$0xf]
  %v625 = vld [vmem:[#allocation2 + $0x58] sm:$0xf]
  %v626 = vld [vmem:[#allocation2 + $0x60] sm:$0xf]
  %v627 = vld [vmem:[#allocation2 + $0x68] sm:$0xf]
  %v628 = vld [vmem:[#allocation2 + $0x70] sm:$0xf]
  %v629 = vld [vmem:[#allocation2 + $0x78] sm:$0xf]
  %v630 = vld [vmem:[#allocation2 + $0x80] sm:$0xf]
  %v631 = vld [vmem:[#allocation2 + $0x88] sm:$0xf]
  %v632 = vld [vmem:[#allocation2 + $0x4] sm:$0x1]
  %v633 = vld [vmem:[#allocation2 + $0xc] sm:$0x1]
  %v634 = vld [vmem:[#allocation2 + $0x14] sm:$0x1]
  %v635 = vld [vmem:[#allocation2 + $0x1c] sm:$0x1]
  %v636 = vld [vmem:[#allocation2 + $0x24] sm:$0x1]
  %v637 = vld [vmem:[#allocation2 + $0x2c] sm:$0x1]
  %v638 = vld [vmem:[#allocation2 + $0x34] sm:$0x1]
  %v639 = vld [vmem:[#allocation2 + $0x3c] sm:$0x1]
  %v640 = vld [vmem:[#allocation2 + $0x54] sm:$0x1]
  %v641 = vld [vmem:[#allocation2 + $0x5c] sm:$0x1]
  %v642 = vld [vmem:[#allocation2 + $0x64] sm:$0x1]
  %v643 = vld [vmem:[#allocation2 + $0x6c] sm:$0x1]
  %v644 = vld [vmem:[#allocation2 + $0x74] sm:$0x1]
  %v645 = vld [vmem:[#allocation2 + $0x7c] sm:$0x1]
  %v646 = vld [vmem:[#allocation2 + $0x84] sm:$0x1]
  %v647 = vld [vmem:[#allocation2 + $0x8c] sm:$0x1]
  %vm648 = vsmask.f32 3328
  %vm649 = vsmask.f32 7440
  %vm650 = vmor %vm648, %vm649
  %v652 = vshrl.u32 %v616, 16
  %v654 = vrot.slane %v652, 4
  %v655 = vshll.u32 %v616, 16
  %v657 = vrot.slane %v655, 5
  %v658 = vor.u32 %v654, %v657
  %v659 = vrot.slane %v658, 4
  %v661 = vshll.u32 %v632, 16
  %v663 = vrot.slane %v661, 5
  %v664 = vsel %vm650, %v659, %v663
  %v666 = vshrl.u32 %v617, 16
  %v668 = vrot.slane %v666, 4
  %v669 = vshll.u32 %v617, 16
  %v671 = vrot.slane %v669, 5
  %v672 = vor.u32 %v668, %v671
  %v673 = vrot.slane %v672, 4
  %v675 = vshll.u32 %v633, 16
  %v677 = vrot.slane %v675, 5
  %v678 = vsel %vm650, %v673, %v677
  %v680 = vshrl.u32 %v618, 16
  %v682 = vrot.slane %v680, 4
  %v683 = vshll.u32 %v618, 16
  %v685 = vrot.slane %v683, 5
  %v686 = vor.u32 %v682, %v685
  %v687 = vrot.slane %v686, 4
  %v689 = vshll.u32 %v634, 16
  %v691 = vrot.slane %v689, 5
  %v692 = vsel %vm650, %v687, %v691
  %v694 = vshrl.u32 %v619, 16
  %v696 = vrot.slane %v694, 4
  %v697 = vshll.u32 %v619, 16
  %v699 = vrot.slane %v697, 5
  %v700 = vor.u32 %v696, %v699
  %v701 = vrot.slane %v700, 4
  %v703 = vshll.u32 %v635, 16
  %v705 = vrot.slane %v703, 5
  %v706 = vsel %vm650, %v701, %v705
  %v708 = vshrl.u32 %v620, 16
  %v710 = vrot.slane %v708, 4
  %v711 = vshll.u32 %v620, 16
  %v713 = vrot.slane %v711, 5
  %v714 = vor.u32 %v710, %v713
  %v715 = vrot.slane %v714, 4
  %v717 = vshll.u32 %v636, 16
  %v719 = vrot.slane %v717, 5
  %v720 = vsel %vm650, %v715, %v719
  %v722 = vshrl.u32 %v621, 16
  %v724 = vrot.slane %v722, 4
  %v725 = vshll.u32 %v621, 16
  %v727 = vrot.slane %v725, 5
  %v728 = vor.u32 %v724, %v727
  %v729 = vrot.slane %v728, 4
  %v731 = vshll.u32 %v637, 16
  %v733 = vrot.slane %v731, 5
  %v734 = vsel %vm650, %v729, %v733
  %v736 = vshrl.u32 %v622, 16
  %v738 = vrot.slane %v736, 4
  %v739 = vshll.u32 %v622, 16
  %v741 = vrot.slane %v739, 5
  %v742 = vor.u32 %v738, %v741
  %v743 = vrot.slane %v742, 4
  %v745 = vshll.u32 %v638, 16
  %v747 = vrot.slane %v745, 5
  %v748 = vsel %vm650, %v743, %v747
  %v750 = vshrl.u32 %v623, 16
  %v752 = vrot.slane %v750, 4
  %v753 = vshll.u32 %v623, 16
  %v755 = vrot.slane %v753, 5
  %v756 = vor.u32 %v752, %v755
  %v757 = vrot.slane %v756, 4
  %v759 = vshll.u32 %v639, 16
  %v761 = vrot.slane %v759, 5
  %v762 = vsel %vm650, %v757, %v761
  %v764 = vshrl.u32 %v624, 16
  %v766 = vrot.slane %v764, 4
  %v767 = vshll.u32 %v624, 16
  %v769 = vrot.slane %v767, 5
  %v770 = vor.u32 %v766, %v769
  %v771 = vrot.slane %v770, 4
  %v773 = vshll.u32 %v640, 16
  %v775 = vrot.slane %v773, 5
  %v776 = vsel %vm650, %v771, %v775
  %v778 = vshrl.u32 %v625, 16
  %v780 = vrot.slane %v778, 4
  %v781 = vshll.u32 %v625, 16
  %v783 = vrot.slane %v781, 5
  %v784 = vor.u32 %v780, %v783
  %v785 = vrot.slane %v784, 4
  %v787 = vshll.u32 %v641, 16
  %v789 = vrot.slane %v787, 5
  %v790 = vsel %vm650, %v785, %v789
  %v792 = vshrl.u32 %v626, 16
  %v794 = vrot.slane %v792, 4
  %v795 = vshll.u32 %v626, 16
  %v797 = vrot.slane %v795, 5
  %v798 = vor.u32 %v794, %v797
  %v799 = vrot.slane %v798, 4
  %v801 = vshll.u32 %v642, 16
  %v803 = vrot.slane %v801, 5
  %v804 = vsel %vm650, %v799, %v803
  %v806 = vshrl.u32 %v627, 16
  %v808 = vrot.slane %v806, 4
  %v809 = vshll.u32 %v627, 16
  %v811 = vrot.slane %v809, 5
  %v812 = vor.u32 %v808, %v811
  %v813 = vrot.slane %v812, 4
  %v815 = vshll.u32 %v643, 16
  %v817 = vrot.slane %v815, 5
  %v818 = vsel %vm650, %v813, %v817
  %v820 = vshrl.u32 %v628, 16
  %v822 = vrot.slane %v820, 4
  %v823 = vshll.u32 %v628, 16
  %v825 = vrot.slane %v823, 5
  %v826 = vor.u32 %v822, %v825
  %v827 = vrot.slane %v826, 4
  %v829 = vshll.u32 %v644, 16
  %v831 = vrot.slane %v829, 5
  %v832 = vsel %vm650, %v827, %v831
  %v834 = vshrl.u32 %v629, 16
  %v836 = vrot.slane %v834, 4
  %v837 = vshll.u32 %v629, 16
  %v839 = vrot.slane %v837, 5
  %v840 = vor.u32 %v836, %v839
  %v841 = vrot.slane %v840, 4
  %v843 = vshll.u32 %v645, 16
  %v845 = vrot.slane %v843, 5
  %v846 = vsel %vm650, %v841, %v845
  %v848 = vshrl.u32 %v630, 16
  %v850 = vrot.slane %v848, 4
  %v851 = vshll.u32 %v630, 16
  %v853 = vrot.slane %v851, 5
  %v854 = vor.u32 %v850, %v853
  %v855 = vrot.slane %v854, 4
  %v857 = vshll.u32 %v646, 16
  %v859 = vrot.slane %v857, 5
  %v860 = vsel %vm650, %v855, %v859
  %v862 = vshrl.u32 %v631, 16
  %v864 = vrot.slane %v862, 4
  %v865 = vshll.u32 %v631, 16
  %v867 = vrot.slane %v865, 5
  %v868 = vor.u32 %v864, %v867
  %v869 = vrot.slane %v868, 4
  %v871 = vshll.u32 %v647, 16
  %v873 = vrot.slane %v871, 5
  %v874 = vsel %vm650, %v869, %v873
  %v875 = vld [vmem:[#allocation2] sm:$0xe]
  %v876 = vld [vmem:[#allocation2 + $0x8] sm:$0xe]
  %v877 = vld [vmem:[#allocation2 + $0x10] sm:$0xe]
  %v878 = vld [vmem:[#allocation2 + $0x18] sm:$0xe]
  %v879 = vld [vmem:[#allocation2 + $0x20] sm:$0xe]
  %v880 = vld [vmem:[#allocation2 + $0x28] sm:$0xe]
  %v881 = vld [vmem:[#allocation2 + $0x30] sm:$0xe]
  %v882 = vld [vmem:[#allocation2 + $0x38] sm:$0xe]
  %v883 = vld [vmem:[#allocation2 + $0x50] sm:$0xe]
  %v884 = vld [vmem:[#allocation2 + $0x58] sm:$0xe]
  %v885 = vld [vmem:[#allocation2 + $0x60] sm:$0xe]
  %v886 = vld [vmem:[#allocation2 + $0x68] sm:$0xe]
  %v887 = vld [vmem:[#allocation2 + $0x70] sm:$0xe]
  %v888 = vld [vmem:[#allocation2 + $0x78] sm:$0xe]
  %v889 = vld [vmem:[#allocation2 + $0x80] sm:$0xe]
  %v890 = vld [vmem:[#allocation2 + $0x88] sm:$0xe]
  %vm923 = vcmask 1042432
  %vm924 = vcmask 1046532
  %vm925 = vmor %vm923, %vm924
  %v926 = vrot.slane %v875, 5
  %v927 = vrot.slane %v926, 4
  %v928 = vrot.slane %v632, 5
  %v929 = vsel %vm925, %v927, %v928
  %v930 = vrot.slane %v876, 5
  %v931 = vrot.slane %v930, 4
  %v932 = vrot.slane %v633, 5
  %v933 = vsel %vm925, %v931, %v932
  %v934 = vrot.slane %v877, 5
  %v935 = vrot.slane %v934, 4
  %v936 = vrot.slane %v634, 5
  %v937 = vsel %vm925, %v935, %v936
  %v938 = vrot.slane %v878, 5
  %v939 = vrot.slane %v938, 4
  %v940 = vrot.slane %v635, 5
  %v941 = vsel %vm925, %v939, %v940
  %v942 = vrot.slane %v879, 5
  %v943 = vrot.slane %v942, 4
  %v944 = vrot.slane %v636, 5
  %v945 = vsel %vm925, %v943, %v944
  %v946 = vrot.slane %v880, 5
  %v947 = vrot.slane %v946, 4
  %v948 = vrot.slane %v637, 5
  %v949 = vsel %vm925, %v947, %v948
  %v950 = vrot.slane %v881, 5
  %v951 = vrot.slane %v950, 4
  %v952 = vrot.slane %v638, 5
  %v953 = vsel %vm925, %v951, %v952
  %v954 = vrot.slane %v882, 5
  %v955 = vrot.slane %v954, 4
  %v956 = vrot.slane %v639, 5
  %v957 = vsel %vm925, %v955, %v956
  %v958 = vrot.slane %v883, 5
  %v959 = vrot.slane %v958, 4
  %v960 = vrot.slane %v640, 5
  %v961 = vsel %vm925, %v959, %v960
  %v962 = vrot.slane %v884, 5
  %v963 = vrot.slane %v962, 4
  %v964 = vrot.slane %v641, 5
  %v965 = vsel %vm925, %v963, %v964
  %v966 = vrot.slane %v885, 5
  %v967 = vrot.slane %v966, 4
  %v968 = vrot.slane %v642, 5
  %v969 = vsel %vm925, %v967, %v968
  %v970 = vrot.slane %v886, 5
  %v971 = vrot.slane %v970, 4
  %v972 = vrot.slane %v643, 5
  %v973 = vsel %vm925, %v971, %v972
  %v974 = vrot.slane %v887, 5
  %v975 = vrot.slane %v974, 4
  %v976 = vrot.slane %v644, 5
  %v977 = vsel %vm925, %v975, %v976
  %v978 = vrot.slane %v888, 5
  %v979 = vrot.slane %v978, 4
  %v980 = vrot.slane %v645, 5
  %v981 = vsel %vm925, %v979, %v980
  %v982 = vrot.slane %v889, 5
  %v983 = vrot.slane %v982, 4
  %v984 = vrot.slane %v646, 5
  %v985 = vsel %vm925, %v983, %v984
  %v986 = vrot.slane %v890, 5
  %v987 = vrot.slane %v986, 4
  %v988 = vrot.slane %v647, 5
  %v989 = vsel %vm925, %v987, %v988
  %v990 = vld [vmem:[%s513] sm:$0xf]
  %v991 = vld [vmem:[%s513 + $0x8] sm:$0xf]
  %v992 = vld [vmem:[%s513 + $0x10] sm:$0xf]
  %v993 = vld [vmem:[%s513 + $0x18] sm:$0xf]
  %v994 = vld [vmem:[%s513 + $0x20] sm:$0xf]
  %v995 = vld [vmem:[%s513 + $0x28] sm:$0xf]
  %v996 = vld [vmem:[%s513 + $0x30] sm:$0xf]
  %v997 = vld [vmem:[%s513 + $0x38] sm:$0xf]
  %v998 = vld [vmem:[%s513 + $0x50] sm:$0xf]
  %v999 = vld [vmem:[%s513 + $0x58] sm:$0xf]
  %v1000 = vld [vmem:[%s513 + $0x60] sm:$0xf]
  %v1001 = vld [vmem:[%s513 + $0x68] sm:$0xf]
  %v1002 = vld [vmem:[%s513 + $0x70] sm:$0xf]
  %v1003 = vld [vmem:[%s513 + $0x78] sm:$0xf]
  %v1004 = vld [vmem:[%s513 + $0x80] sm:$0xf]
  %v1005 = vld [vmem:[%s513 + $0x88] sm:$0xf]
  %v1006 = vld [vmem:[%s513 + $0x4] sm:$0x1]
  %v1007 = vld [vmem:[%s513 + $0xc] sm:$0x1]
  %v1008 = vld [vmem:[%s513 + $0x14] sm:$0x1]
  %v1009 = vld [vmem:[%s513 + $0x1c] sm:$0x1]
  %v1010 = vld [vmem:[%s513 + $0x24] sm:$0x1]
  %v1011 = vld [vmem:[%s513 + $0x2c] sm:$0x1]
  %v1012 = vld [vmem:[%s513 + $0x34] sm:$0x1]
  %v1013 = vld [vmem:[%s513 + $0x3c] sm:$0x1]
  %v1014 = vld [vmem:[%s513 + $0x54] sm:$0x1]
  %v1015 = vld [vmem:[%s513 + $0x5c] sm:$0x1]
  %v1016 = vld [vmem:[%s513 + $0x64] sm:$0x1]
  %v1017 = vld [vmem:[%s513 + $0x6c] sm:$0x1]
  %v1018 = vld [vmem:[%s513 + $0x74] sm:$0x1]
  %v1019 = vld [vmem:[%s513 + $0x7c] sm:$0x1]
  %v1020 = vld [vmem:[%s513 + $0x84] sm:$0x1]
  %v1021 = vld [vmem:[%s513 + $0x8c] sm:$0x1]
  %v1023 = vshrl.u32 %v990, 16
  %v1025 = vrot.slane %v1023, 4
  %v1026 = vshll.u32 %v990, 16
  %v1028 = vrot.slane %v1026, 5
  %v1029 = vor.u32 %v1025, %v1028
  %v1030 = vrot.slane %v1029, 4
  %v1032 = vshll.u32 %v1006, 16
  %v1034 = vrot.slane %v1032, 5
  %v1035 = vsel %vm650, %v1030, %v1034
  %v1037 = vshrl.u32 %v991, 16
  %v1039 = vrot.slane %v1037, 4
  %v1040 = vshll.u32 %v991, 16
  %v1042 = vrot.slane %v1040, 5
  %v1043 = vor.u32 %v1039, %v1042
  %v1044 = vrot.slane %v1043, 4
  %v1046 = vshll.u32 %v1007, 16
  %v1048 = vrot.slane %v1046, 5
  %v1049 = vsel %vm650, %v1044, %v1048
  %v1051 = vshrl.u32 %v992, 16
  %v1053 = vrot.slane %v1051, 4
  %v1054 = vshll.u32 %v992, 16
  %v1056 = vrot.slane %v1054, 5
  %v1057 = vor.u32 %v1053, %v1056
  %v1058 = vrot.slane %v1057, 4
  %v1060 = vshll.u32 %v1008, 16
  %v1062 = vrot.slane %v1060, 5
  %v1063 = vsel %vm650, %v1058, %v1062
  %v1065 = vshrl.u32 %v993, 16
  %v1067 = vrot.slane %v1065, 4
  %v1068 = vshll.u32 %v993, 16
  %v1070 = vrot.slane %v1068, 5
  %v1071 = vor.u32 %v1067, %v1070
  %v1072 = vrot.slane %v1071, 4
  %v1074 = vshll.u32 %v1009, 16
  %v1076 = vrot.slane %v1074, 5
  %v1077 = vsel %vm650, %v1072, %v1076
  %v1079 = vshrl.u32 %v994, 16
  %v1081 = vrot.slane %v1079, 4
  %v1082 = vshll.u32 %v994, 16
  %v1084 = vrot.slane %v1082, 5
  %v1085 = vor.u32 %v1081, %v1084
  %v1086 = vrot.slane %v1085, 4
  %v1088 = vshll.u32 %v1010, 16
  %v1090 = vrot.slane %v1088, 5
  %v1091 = vsel %vm650, %v1086, %v1090
  %v1093 = vshrl.u32 %v995, 16
  %v1095 = vrot.slane %v1093, 4
  %v1096 = vshll.u32 %v995, 16
  %v1098 = vrot.slane %v1096, 5
  %v1099 = vor.u32 %v1095, %v1098
  %v1100 = vrot.slane %v1099, 4
  %v1102 = vshll.u32 %v1011, 16
  %v1104 = vrot.slane %v1102, 5
  %v1105 = vsel %vm650, %v1100, %v1104
  %v1107 = vshrl.u32 %v996, 16
  %v1109 = vrot.slane %v1107, 4
  %v1110 = vshll.u32 %v996, 16
  %v1112 = vrot.slane %v1110, 5
  %v1113 = vor.u32 %v1109, %v1112
  %v1114 = vrot.slane %v1113, 4
  %v1116 = vshll.u32 %v1012, 16
  %v1118 = vrot.slane %v1116, 5
  %v1119 = vsel %vm650, %v1114, %v1118
  %v1121 = vshrl.u32 %v997, 16
  %v1123 = vrot.slane %v1121, 4
  %v1124 = vshll.u32 %v997, 16
  %v1126 = vrot.slane %v1124, 5
  %v1127 = vor.u32 %v1123, %v1126
  %v1128 = vrot.slane %v1127, 4
  %v1130 = vshll.u32 %v1013, 16
  %v1132 = vrot.slane %v1130, 5
  %v1133 = vsel %vm650, %v1128, %v1132
  %v1135 = vshrl.u32 %v998, 16
  %v1137 = vrot.slane %v1135, 4
  %v1138 = vshll.u32 %v998, 16
  %v1140 = vrot.slane %v1138, 5
  %v1141 = vor.u32 %v1137, %v1140
  %v1142 = vrot.slane %v1141, 4
  %v1144 = vshll.u32 %v1014, 16
  %v1146 = vrot.slane %v1144, 5
  %v1147 = vsel %vm650, %v1142, %v1146
  %v1149 = vshrl.u32 %v999, 16
  %v1151 = vrot.slane %v1149, 4
  %v1152 = vshll.u32 %v999, 16
  %v1154 = vrot.slane %v1152, 5
  %v1155 = vor.u32 %v1151, %v1154
  %v1156 = vrot.slane %v1155, 4
  %v1158 = vshll.u32 %v1015, 16
  %v1160 = vrot.slane %v1158, 5
  %v1161 = vsel %vm650, %v1156, %v1160
  %v1163 = vshrl.u32 %v1000, 16
  %v1165 = vrot.slane %v1163, 4
  %v1166 = vshll.u32 %v1000, 16
  %v1168 = vrot.slane %v1166, 5
  %v1169 = vor.u32 %v1165, %v1168
  %v1170 = vrot.slane %v1169, 4
  %v1172 = vshll.u32 %v1016, 16
  %v1174 = vrot.slane %v1172, 5
  %v1175 = vsel %vm650, %v1170, %v1174
  %v1177 = vshrl.u32 %v1001, 16
  %v1179 = vrot.slane %v1177, 4
  %v1180 = vshll.u32 %v1001, 16
  %v1182 = vrot.slane %v1180, 5
  %v1183 = vor.u32 %v1179, %v1182
  %v1184 = vrot.slane %v1183, 4
  %v1186 = vshll.u32 %v1017, 16
  %v1188 = vrot.slane %v1186, 5
  %v1189 = vsel %vm650, %v1184, %v1188
  %v1191 = vshrl.u32 %v1002, 16
  %v1193 = vrot.slane %v1191, 4
  %v1194 = vshll.u32 %v1002, 16
  %v1196 = vrot.slane %v1194, 5
  %v1197 = vor.u32 %v1193, %v1196
  %v1198 = vrot.slane %v1197, 4
  %v1200 = vshll.u32 %v1018, 16
  %v1202 = vrot.slane %v1200, 5
  %v1203 = vsel %vm650, %v1198, %v1202
  %v1205 = vshrl.u32 %v1003, 16
  %v1207 = vrot.slane %v1205, 4
  %v1208 = vshll.u32 %v1003, 16
  %v1210 = vrot.slane %v1208, 5
  %v1211 = vor.u32 %v1207, %v1210
  %v1212 = vrot.slane %v1211, 4
  %v1214 = vshll.u32 %v1019, 16
  %v1216 = vrot.slane %v1214, 5
  %v1217 = vsel %vm650, %v1212, %v1216
  %v1219 = vshrl.u32 %v1004, 16
  %v1221 = vrot.slane %v1219, 4
  %v1222 = vshll.u32 %v1004, 16
  %v1224 = vrot.slane %v1222, 5
  %v1225 = vor.u32 %v1221, %v1224
  %v1226 = vrot.slane %v1225, 4
  %v1228 = vshll.u32 %v1020, 16
  %v1230 = vrot.slane %v1228, 5
  %v1231 = vsel %vm650, %v1226, %v1230
  %v1233 = vshrl.u32 %v1005, 16
  %v1235 = vrot.slane %v1233, 4
  %v1236 = vshll.u32 %v1005, 16
  %v1238 = vrot.slane %v1236, 5
  %v1239 = vor.u32 %v1235, %v1238
  %v1240 = vrot.slane %v1239, 4
  %v1242 = vshll.u32 %v1021, 16
  %v1244 = vrot.slane %v1242, 5
  %v1245 = vsel %vm650, %v1240, %v1244
  %v1246 = vld [vmem:[%s513] sm:$0xe]
  %v1247 = vld [vmem:[%s513 + $0x8] sm:$0xe]
  %v1248 = vld [vmem:[%s513 + $0x10] sm:$0xe]
  %v1249 = vld [vmem:[%s513 + $0x18] sm:$0xe]
  %v1250 = vld [vmem:[%s513 + $0x20] sm:$0xe]
  %v1251 = vld [vmem:[%s513 + $0x28] sm:$0xe]
  %v1252 = vld [vmem:[%s513 + $0x30] sm:$0xe]
  %v1253 = vld [vmem:[%s513 + $0x38] sm:$0xe]
  %v1254 = vld [vmem:[%s513 + $0x50] sm:$0xe]
  %v1255 = vld [vmem:[%s513 + $0x58] sm:$0xe]
  %v1256 = vld [vmem:[%s513 + $0x60] sm:$0xe]
  %v1257 = vld [vmem:[%s513 + $0x68] sm:$0xe]
  %v1258 = vld [vmem:[%s513 + $0x70] sm:$0xe]
  %v1259 = vld [vmem:[%s513 + $0x78] sm:$0xe]
  %v1260 = vld [vmem:[%s513 + $0x80] sm:$0xe]
  %v1261 = vld [vmem:[%s513 + $0x88] sm:$0xe]
  %v1294 = vrot.slane %v1246, 5
  %v1295 = vrot.slane %v1294, 4
  %v1296 = vrot.slane %v1006, 5
  %v1297 = vsel %vm925, %v1295, %v1296
  %v1298 = vrot.slane %v1247, 5
  %v1299 = vrot.slane %v1298, 4
  %v1300 = vrot.slane %v1007, 5
  %v1301 = vsel %vm925, %v1299, %v1300
  %v1302 = vrot.slane %v1248, 5
  %v1303 = vrot.slane %v1302, 4
  %v1304 = vrot.slane %v1008, 5
  %v1305 = vsel %vm925, %v1303, %v1304
  %v1306 = vrot.slane %v1249, 5
  %v1307 = vrot.slane %v1306, 4
  %v1308 = vrot.slane %v1009, 5
  %v1309 = vsel %vm925, %v1307, %v1308
  %v1310 = vrot.slane %v1250, 5
  %v1311 = vrot.slane %v1310, 4
  %v1312 = vrot.slane %v1010, 5
  %v1313 = vsel %vm925, %v1311, %v1312
  %v1314 = vrot.slane %v1251, 5
  %v1315 = vrot.slane %v1314, 4
  %v1316 = vrot.slane %v1011, 5
  %v1317 = vsel %vm925, %v1315, %v1316
  %v1318 = vrot.slane %v1252, 5
  %v1319 = vrot.slane %v1318, 4
  %v1320 = vrot.slane %v1012, 5
  %v1321 = vsel %vm925, %v1319, %v1320
  %v1322 = vrot.slane %v1253, 5
  %v1323 = vrot.slane %v1322, 4
  %v1324 = vrot.slane %v1013, 5
  %v1325 = vsel %vm925, %v1323, %v1324
  %v1326 = vrot.slane %v1254, 5
  %v1327 = vrot.slane %v1326, 4
  %v1328 = vrot.slane %v1014, 5
  %v1329 = vsel %vm925, %v1327, %v1328
  %v1330 = vrot.slane %v1255, 5
  %v1331 = vrot.slane %v1330, 4
  %v1332 = vrot.slane %v1015, 5
  %v1333 = vsel %vm925, %v1331, %v1332
  %v1334 = vrot.slane %v1256, 5
  %v1335 = vrot.slane %v1334, 4
  %v1336 = vrot.slane %v1016, 5
  %v1337 = vsel %vm925, %v1335, %v1336
  %v1338 = vrot.slane %v1257, 5
  %v1339 = vrot.slane %v1338, 4
  %v1340 = vrot.slane %v1017, 5
  %v1341 = vsel %vm925, %v1339, %v1340
  %v1342 = vrot.slane %v1258, 5
  %v1343 = vrot.slane %v1342, 4
  %v1344 = vrot.slane %v1018, 5
  %v1345 = vsel %vm925, %v1343, %v1344
  %v1346 = vrot.slane %v1259, 5
  %v1347 = vrot.slane %v1346, 4
  %v1348 = vrot.slane %v1019, 5
  %v1349 = vsel %vm925, %v1347, %v1348
  %v1350 = vrot.slane %v1260, 5
  %v1351 = vrot.slane %v1350, 4
  %v1352 = vrot.slane %v1020, 5
  %v1353 = vsel %vm925, %v1351, %v1352
  %v1354 = vrot.slane %v1261, 5
  %v1355 = vrot.slane %v1354, 4
  %v1356 = vrot.slane %v1021, 5
  %v1357 = vsel %vm925, %v1355, %v1356
  %s1358 = scalar_lea.vmem [#allocation2], 16
  %v1359 = vld [vmem:[%s1358] sm:$0xf]
  %v1360 = vld [vmem:[%s1358 + $0x8] sm:$0xf]
  %v1361 = vld [vmem:[%s1358 + $0x10] sm:$0xf]
  %v1362 = vld [vmem:[%s1358 + $0x18] sm:$0xf]
  %v1363 = vld [vmem:[%s1358 + $0x20] sm:$0xf]
  %v1364 = vld [vmem:[%s1358 + $0x28] sm:$0xf]
  %v1365 = vld [vmem:[%s1358 + $0x30] sm:$0xf]
  %v1366 = vld [vmem:[%s1358 + $0x38] sm:$0xf]
  %v1367 = vld [vmem:[%s1358 + $0x50] sm:$0xf]
  %v1368 = vld [vmem:[%s1358 + $0x58] sm:$0xf]
  %v1369 = vld [vmem:[%s1358 + $0x60] sm:$0xf]
  %v1370 = vld [vmem:[%s1358 + $0x68] sm:$0xf]
  %v1371 = vld [vmem:[%s1358 + $0x70] sm:$0xf]
  %v1372 = vld [vmem:[%s1358 + $0x78] sm:$0xf]
  %v1373 = vld [vmem:[%s1358 + $0x80] sm:$0xf]
  %v1374 = vld [vmem:[%s1358 + $0x88] sm:$0xf]
  %v1375 = vld [vmem:[%s1358 + $0x4] sm:$0x1]
  %v1376 = vld [vmem:[%s1358 + $0xc] sm:$0x1]
  %v1377 = vld [vmem:[%s1358 + $0x14] sm:$0x1]
  %v1378 = vld [vmem:[%s1358 + $0x1c] sm:$0x1]
  %v1379 = vld [vmem:[%s1358 + $0x24] sm:$0x1]
  %v1380 = vld [vmem:[%s1358 + $0x2c] sm:$0x1]
  %v1381 = vld [vmem:[%s1358 + $0x34] sm:$0x1]
  %v1382 = vld [vmem:[%s1358 + $0x3c] sm:$0x1]
  %v1383 = vld [vmem:[%s1358 + $0x54] sm:$0x1]
  %v1384 = vld [vmem:[%s1358 + $0x5c] sm:$0x1]
  %v1385 = vld [vmem:[%s1358 + $0x64] sm:$0x1]
  %v1386 = vld [vmem:[%s1358 + $0x6c] sm:$0x1]
  %v1387 = vld [vmem:[%s1358 + $0x74] sm:$0x1]
  %v1388 = vld [vmem:[%s1358 + $0x7c] sm:$0x1]
  %v1389 = vld [vmem:[%s1358 + $0x84] sm:$0x1]
  %v1390 = vld [vmem:[%s1358 + $0x8c] sm:$0x1]
  %v1392 = vshrl.u32 %v1359, 16
  %v1394 = vrot.slane %v1392, 4
  %v1395 = vshll.u32 %v1359, 16
  %v1397 = vrot.slane %v1395, 5
  %v1398 = vor.u32 %v1394, %v1397
  %v1399 = vrot.slane %v1398, 4
  %v1401 = vshll.u32 %v1375, 16
  %v1403 = vrot.slane %v1401, 5
  %v1404 = vsel %vm650, %v1399, %v1403
  %v1406 = vshrl.u32 %v1360, 16
  %v1408 = vrot.slane %v1406, 4
  %v1409 = vshll.u32 %v1360, 16
  %v1411 = vrot.slane %v1409, 5
  %v1412 = vor.u32 %v1408, %v1411
  %v1413 = vrot.slane %v1412, 4
  %v1415 = vshll.u32 %v1376, 16
  %v1417 = vrot.slane %v1415, 5
  %v1418 = vsel %vm650, %v1413, %v1417
  %v1420 = vshrl.u32 %v1361, 16
  %v1422 = vrot.slane %v1420, 4
  %v1423 = vshll.u32 %v1361, 16
  %v1425 = vrot.slane %v1423, 5
  %v1426 = vor.u32 %v1422, %v1425
  %v1427 = vrot.slane %v1426, 4
  %v1429 = vshll.u32 %v1377, 16
  %v1431 = vrot.slane %v1429, 5
  %v1432 = vsel %vm650, %v1427, %v1431
  %v1434 = vshrl.u32 %v1362, 16
  %v1436 = vrot.slane %v1434, 4
  %v1437 = vshll.u32 %v1362, 16
  %v1439 = vrot.slane %v1437, 5
  %v1440 = vor.u32 %v1436, %v1439
  %v1441 = vrot.slane %v1440, 4
  %v1443 = vshll.u32 %v1378, 16
  %v1445 = vrot.slane %v1443, 5
  %v1446 = vsel %vm650, %v1441, %v1445
  %v1448 = vshrl.u32 %v1363, 16
  %v1450 = vrot.slane %v1448, 4
  %v1451 = vshll.u32 %v1363, 16
  %v1453 = vrot.slane %v1451, 5
  %v1454 = vor.u32 %v1450, %v1453
  %v1455 = vrot.slane %v1454, 4
  %v1457 = vshll.u32 %v1379, 16
  %v1459 = vrot.slane %v1457, 5
  %v1460 = vsel %vm650, %v1455, %v1459
  %v1462 = vshrl.u32 %v1364, 16
  %v1464 = vrot.slane %v1462, 4
  %v1465 = vshll.u32 %v1364, 16
  %v1467 = vrot.slane %v1465, 5
  %v1468 = vor.u32 %v1464, %v1467
  %v1469 = vrot.slane %v1468, 4
  %v1471 = vshll.u32 %v1380, 16
  %v1473 = vrot.slane %v1471, 5
  %v1474 = vsel %vm650, %v1469, %v1473
  %v1476 = vshrl.u32 %v1365, 16
  %v1478 = vrot.slane %v1476, 4
  %v1479 = vshll.u32 %v1365, 16
  %v1481 = vrot.slane %v1479, 5
  %v1482 = vor.u32 %v1478, %v1481
  %v1483 = vrot.slane %v1482, 4
  %v1485 = vshll.u32 %v1381, 16
  %v1487 = vrot.slane %v1485, 5
  %v1488 = vsel %vm650, %v1483, %v1487
  %v1490 = vshrl.u32 %v1366, 16
  %v1492 = vrot.slane %v1490, 4
  %v1493 = vshll.u32 %v1366, 16
  %v1495 = vrot.slane %v1493, 5
  %v1496 = vor.u32 %v1492, %v1495
  %v1497 = vrot.slane %v1496, 4
  %v1499 = vshll.u32 %v1382, 16
  %v1501 = vrot.slane %v1499, 5
  %v1502 = vsel %vm650, %v1497, %v1501
  %v1504 = vshrl.u32 %v1367, 16
  %v1506 = vrot.slane %v1504, 4
  %v1507 = vshll.u32 %v1367, 16
  %v1509 = vrot.slane %v1507, 5
  %v1510 = vor.u32 %v1506, %v1509
  %v1511 = vrot.slane %v1510, 4
  %v1513 = vshll.u32 %v1383, 16
  %v1515 = vrot.slane %v1513, 5
  %v1516 = vsel %vm650, %v1511, %v1515
  %v1518 = vshrl.u32 %v1368, 16
  %v1520 = vrot.slane %v1518, 4
  %v1521 = vshll.u32 %v1368, 16
  %v1523 = vrot.slane %v1521, 5
  %v1524 = vor.u32 %v1520, %v1523
  %v1525 = vrot.slane %v1524, 4
  %v1527 = vshll.u32 %v1384, 16
  %v1529 = vrot.slane %v1527, 5
  %v1530 = vsel %vm650, %v1525, %v1529
  %v1532 = vshrl.u32 %v1369, 16
  %v1534 = vrot.slane %v1532, 4
  %v1535 = vshll.u32 %v1369, 16
  %v1537 = vrot.slane %v1535, 5
  %v1538 = vor.u32 %v1534, %v1537
  %v1539 = vrot.slane %v1538, 4
  %v1541 = vshll.u32 %v1385, 16
  %v1543 = vrot.slane %v1541, 5
  %v1544 = vsel %vm650, %v1539, %v1543
  %v1546 = vshrl.u32 %v1370, 16
  %v1548 = vrot.slane %v1546, 4
  %v1549 = vshll.u32 %v1370, 16
  %v1551 = vrot.slane %v1549, 5
  %v1552 = vor.u32 %v1548, %v1551
  %v1553 = vrot.slane %v1552, 4
  %v1555 = vshll.u32 %v1386, 16
  %v1557 = vrot.slane %v1555, 5
  %v1558 = vsel %vm650, %v1553, %v1557
  %v1560 = vshrl.u32 %v1371, 16
  %v1562 = vrot.slane %v1560, 4
  %v1563 = vshll.u32 %v1371, 16
  %v1565 = vrot.slane %v1563, 5
  %v1566 = vor.u32 %v1562, %v1565
  %v1567 = vrot.slane %v1566, 4
  %v1569 = vshll.u32 %v1387, 16
  %v1571 = vrot.slane %v1569, 5
  %v1572 = vsel %vm650, %v1567, %v1571
  %v1574 = vshrl.u32 %v1372, 16
  %v1576 = vrot.slane %v1574, 4
  %v1577 = vshll.u32 %v1372, 16
  %v1579 = vrot.slane %v1577, 5
  %v1580 = vor.u32 %v1576, %v1579
  %v1581 = vrot.slane %v1580, 4
  %v1583 = vshll.u32 %v1388, 16
  %v1585 = vrot.slane %v1583, 5
  %v1586 = vsel %vm650, %v1581, %v1585
  %v1588 = vshrl.u32 %v1373, 16
  %v1590 = vrot.slane %v1588, 4
  %v1591 = vshll.u32 %v1373, 16
  %v1593 = vrot.slane %v1591, 5
  %v1594 = vor.u32 %v1590, %v1593
  %v1595 = vrot.slane %v1594, 4
  %v1597 = vshll.u32 %v1389, 16
  %v1599 = vrot.slane %v1597, 5
  %v1600 = vsel %vm650, %v1595, %v1599
  %v1602 = vshrl.u32 %v1374, 16
  %v1604 = vrot.slane %v1602, 4
  %v1605 = vshll.u32 %v1374, 16
  %v1607 = vrot.slane %v1605, 5
  %v1608 = vor.u32 %v1604, %v1607
  %v1609 = vrot.slane %v1608, 4
  %v1611 = vshll.u32 %v1390, 16
  %v1613 = vrot.slane %v1611, 5
  %v1614 = vsel %vm650, %v1609, %v1613
  %v1615 = vld [vmem:[%s1358] sm:$0xe]
  %v1616 = vld [vmem:[%s1358 + $0x8] sm:$0xe]
  %v1617 = vld [vmem:[%s1358 + $0x10] sm:$0xe]
  %v1618 = vld [vmem:[%s1358 + $0x18] sm:$0xe]
  %v1619 = vld [vmem:[%s1358 + $0x20] sm:$0xe]
  %v1620 = vld [vmem:[%s1358 + $0x28] sm:$0xe]
  %v1621 = vld [vmem:[%s1358 + $0x30] sm:$0xe]
  %v1622 = vld [vmem:[%s1358 + $0x38] sm:$0xe]
  %v1623 = vld [vmem:[%s1358 + $0x50] sm:$0xe]
  %v1624 = vld [vmem:[%s1358 + $0x58] sm:$0xe]
  %v1625 = vld [vmem:[%s1358 + $0x60] sm:$0xe]
  %v1626 = vld [vmem:[%s1358 + $0x68] sm:$0xe]
  %v1627 = vld [vmem:[%s1358 + $0x70] sm:$0xe]
  %v1628 = vld [vmem:[%s1358 + $0x78] sm:$0xe]
  %v1629 = vld [vmem:[%s1358 + $0x80] sm:$0xe]
  %v1630 = vld [vmem:[%s1358 + $0x88] sm:$0xe]
  %v1663 = vrot.slane %v1615, 5
  %v1664 = vrot.slane %v1663, 4
  %v1665 = vrot.slane %v1375, 5
  %v1666 = vsel %vm925, %v1664, %v1665
  %v1667 = vrot.slane %v1616, 5
  %v1668 = vrot.slane %v1667, 4
  %v1669 = vrot.slane %v1376, 5
  %v1670 = vsel %vm925, %v1668, %v1669
  %v1671 = vrot.slane %v1617, 5
  %v1672 = vrot.slane %v1671, 4
  %v1673 = vrot.slane %v1377, 5
  %v1674 = vsel %vm925, %v1672, %v1673
  %v1675 = vrot.slane %v1618, 5
  %v1676 = vrot.slane %v1675, 4
  %v1677 = vrot.slane %v1378, 5
  %v1678 = vsel %vm925, %v1676, %v1677
  %v1679 = vrot.slane %v1619, 5
  %v1680 = vrot.slane %v1679, 4
  %v1681 = vrot.slane %v1379, 5
  %v1682 = vsel %vm925, %v1680, %v1681
  %v1683 = vrot.slane %v1620, 5
  %v1684 = vrot.slane %v1683, 4
  %v1685 = vrot.slane %v1380, 5
  %v1686 = vsel %vm925, %v1684, %v1685
  %v1687 = vrot.slane %v1621, 5
  %v1688 = vrot.slane %v1687, 4
  %v1689 = vrot.slane %v1381, 5
  %v1690 = vsel %vm925, %v1688, %v1689
  %v1691 = vrot.slane %v1622, 5
  %v1692 = vrot.slane %v1691, 4
  %v1693 = vrot.slane %v1382, 5
  %v1694 = vsel %vm925, %v1692, %v1693
  %v1695 = vrot.slane %v1623, 5
  %v1696 = vrot.slane %v1695, 4
  %v1697 = vrot.slane %v1383, 5
  %v1698 = vsel %vm925, %v1696, %v1697
  %v1699 = vrot.slane %v1624, 5
  %v1700 = vrot.slane %v1699, 4
  %v1701 = vrot.slane %v1384, 5
  %v1702 = vsel %vm925, %v1700, %v1701
  %v1703 = vrot.slane %v1625, 5
  %v1704 = vrot.slane %v1703, 4
  %v1705 = vrot.slane %v1385, 5
  %v1706 = vsel %vm925, %v1704, %v1705
  %v1707 = vrot.slane %v1626, 5
  %v1708 = vrot.slane %v1707, 4
  %v1709 = vrot.slane %v1386, 5
  %v1710 = vsel %vm925, %v1708, %v1709
  %v1711 = vrot.slane %v1627, 5
  %v1712 = vrot.slane %v1711, 4
  %v1713 = vrot.slane %v1387, 5
  %v1714 = vsel %vm925, %v1712, %v1713
  %v1715 = vrot.slane %v1628, 5
  %v1716 = vrot.slane %v1715, 4
  %v1717 = vrot.slane %v1388, 5
  %v1718 = vsel %vm925, %v1716, %v1717
  %v1719 = vrot.slane %v1629, 5
  %v1720 = vrot.slane %v1719, 4
  %v1721 = vrot.slane %v1389, 5
  %v1722 = vsel %vm925, %v1720, %v1721
  %v1723 = vrot.slane %v1630, 5
  %v1724 = vrot.slane %v1723, 4
  %v1725 = vrot.slane %v1390, 5
  %v1726 = vsel %vm925, %v1724, %v1725
  %v1743 = vunpack.c.l.b16 %v616
  %v1744 = vunpack.c.l.b16 %v617
  %v1745 = vunpack.c.l.b16 %v618
  %v1746 = vunpack.c.l.b16 %v619
  %v1747 = vunpack.c.l.b16 %v620
  %v1748 = vunpack.c.l.b16 %v621
  %v1749 = vunpack.c.l.b16 %v622
  %v1750 = vunpack.c.l.b16 %v623
  %v1751 = vunpack.c.l.b16 %v624
  %v1752 = vunpack.c.l.b16 %v625
  %v1753 = vunpack.c.l.b16 %v626
  %v1754 = vunpack.c.l.b16 %v627
  %v1755 = vunpack.c.l.b16 %v628
  %v1756 = vunpack.c.l.b16 %v629
  %v1757 = vunpack.c.l.b16 %v630
  %v1758 = vunpack.c.l.b16 %v631
  %v1759 = vpack.c.b16 %v1744, %v1743
  %v1760 = vpack.c.b16 %v1746, %v1745
  %v1761 = vpack.c.b16 %v1748, %v1747
  %v1762 = vpack.c.b16 %v1750, %v1749
  %v1763 = vpack.c.b16 %v1752, %v1751
  %v1764 = vpack.c.b16 %v1754, %v1753
  %v1765 = vpack.c.b16 %v1756, %v1755
  %v1766 = vpack.c.b16 %v1758, %v1757
  %v1767 = vunpack.c.l.b16 %v664
  %v1768 = vunpack.c.l.b16 %v678
  %v1769 = vunpack.c.l.b16 %v692
  %v1770 = vunpack.c.l.b16 %v706
  %v1771 = vunpack.c.l.b16 %v720
  %v1772 = vunpack.c.l.b16 %v734
  %v1773 = vunpack.c.l.b16 %v748
  %v1774 = vunpack.c.l.b16 %v762
  %v1775 = vunpack.c.l.b16 %v776
  %v1776 = vunpack.c.l.b16 %v790
  %v1777 = vunpack.c.l.b16 %v804
  %v1778 = vunpack.c.l.b16 %v818
  %v1779 = vunpack.c.l.b16 %v832
  %v1780 = vunpack.c.l.b16 %v846
  %v1781 = vunpack.c.l.b16 %v860
  %v1782 = vunpack.c.l.b16 %v874
  %v1783 = vpack.c.b16 %v1768, %v1767
  %v1784 = vpack.c.b16 %v1770, %v1769
  %v1785 = vpack.c.b16 %v1772, %v1771
  %v1786 = vpack.c.b16 %v1774, %v1773
  %v1787 = vpack.c.b16 %v1776, %v1775
  %v1788 = vpack.c.b16 %v1778, %v1777
  %v1789 = vpack.c.b16 %v1780, %v1779
  %v1790 = vpack.c.b16 %v1782, %v1781
  %1791 = vrot.lane.b32.xlu0 %v1783, 16
  %v1792 = vpop.permute.xlu0 %1791
  %1793 = vrot.lane.b32.xlu0 %v1784, 16
  %v1794 = vpop.permute.xlu0 %1793
  %1795 = vrot.lane.b32.xlu0 %v1785, 16
  %v1796 = vpop.permute.xlu0 %1795
  %1797 = vrot.lane.b32.xlu0 %v1786, 16
  %v1798 = vpop.permute.xlu0 %1797
  %1799 = vrot.lane.b32.xlu0 %v1787, 16
  %v1800 = vpop.permute.xlu0 %1799
  %1801 = vrot.lane.b32.xlu0 %v1788, 16
  %v1802 = vpop.permute.xlu0 %1801
  %1803 = vrot.lane.b32.xlu0 %v1789, 16
  %v1804 = vpop.permute.xlu0 %1803
  %1805 = vrot.lane.b32.xlu0 %v1790, 16
  %v1806 = vpop.permute.xlu0 %1805
  %v1807 = vunpack.c.l.b16 %v929
  %v1808 = vunpack.c.l.b16 %v933
  %v1809 = vunpack.c.l.b16 %v937
  %v1810 = vunpack.c.l.b16 %v941
  %v1811 = vunpack.c.l.b16 %v945
  %v1812 = vunpack.c.l.b16 %v949
  %v1813 = vunpack.c.l.b16 %v953
  %v1814 = vunpack.c.l.b16 %v957
  %v1815 = vunpack.c.l.b16 %v961
  %v1816 = vunpack.c.l.b16 %v965
  %v1817 = vunpack.c.l.b16 %v969
  %v1818 = vunpack.c.l.b16 %v973
  %v1819 = vunpack.c.l.b16 %v977
  %v1820 = vunpack.c.l.b16 %v981
  %v1821 = vunpack.c.l.b16 %v985
  %v1822 = vunpack.c.l.b16 %v989
  %v1823 = vpack.c.b16 %v1808, %v1807
  %v1824 = vpack.c.b16 %v1810, %v1809
  %v1825 = vpack.c.b16 %v1812, %v1811
  %v1826 = vpack.c.b16 %v1814, %v1813
  %v1827 = vpack.c.b16 %v1816, %v1815
  %v1828 = vpack.c.b16 %v1818, %v1817
  %v1829 = vpack.c.b16 %v1820, %v1819
  %v1830 = vpack.c.b16 %v1822, %v1821
  %1831 = vrot.lane.b32.xlu0 %v1823, 32
  %v1832 = vpop.permute.xlu0 %1831
  %1833 = vrot.lane.b32.xlu0 %v1824, 32
  %v1834 = vpop.permute.xlu0 %1833
  %1835 = vrot.lane.b32.xlu0 %v1825, 32
  %v1836 = vpop.permute.xlu0 %1835
  %1837 = vrot.lane.b32.xlu0 %v1826, 32
  %v1838 = vpop.permute.xlu0 %1837
  %1839 = vrot.lane.b32.xlu0 %v1827, 32
  %v1840 = vpop.permute.xlu0 %1839
  %1841 = vrot.lane.b32.xlu0 %v1828, 32
  %v1842 = vpop.permute.xlu0 %1841
  %1843 = vrot.lane.b32.xlu0 %v1829, 32
  %v1844 = vpop.permute.xlu0 %1843
  %1845 = vrot.lane.b32.xlu0 %v1830, 32
  %v1846 = vpop.permute.xlu0 %1845
  %v1863 = vunpack.c.l.b16 %v990
  %v1864 = vunpack.c.l.b16 %v991
  %v1865 = vunpack.c.l.b16 %v992
  %v1866 = vunpack.c.l.b16 %v993
  %v1867 = vunpack.c.l.b16 %v994
  %v1868 = vunpack.c.l.b16 %v995
  %v1869 = vunpack.c.l.b16 %v996
  %v1870 = vunpack.c.l.b16 %v997
  %v1871 = vunpack.c.l.b16 %v998
  %v1872 = vunpack.c.l.b16 %v999
  %v1873 = vunpack.c.l.b16 %v1000
  %v1874 = vunpack.c.l.b16 %v1001
  %v1875 = vunpack.c.l.b16 %v1002
  %v1876 = vunpack.c.l.b16 %v1003
  %v1877 = vunpack.c.l.b16 %v1004
  %v1878 = vunpack.c.l.b16 %v1005
  %v1879 = vpack.c.b16 %v1864, %v1863
  %v1880 = vpack.c.b16 %v1866, %v1865
  %v1881 = vpack.c.b16 %v1868, %v1867
  %v1882 = vpack.c.b16 %v1870, %v1869
  %v1883 = vpack.c.b16 %v1872, %v1871
  %v1884 = vpack.c.b16 %v1874, %v1873
  %v1885 = vpack.c.b16 %v1876, %v1875
  %v1886 = vpack.c.b16 %v1878, %v1877
  %1887 = vrot.lane.b32.xlu0 %v1879, 48
  %v1888 = vpop.permute.xlu0 %1887
  %1889 = vrot.lane.b32.xlu0 %v1880, 48
  %v1890 = vpop.permute.xlu0 %1889
  %1891 = vrot.lane.b32.xlu0 %v1881, 48
  %v1892 = vpop.permute.xlu0 %1891
  %1893 = vrot.lane.b32.xlu0 %v1882, 48
  %v1894 = vpop.permute.xlu0 %1893
  %1895 = vrot.lane.b32.xlu0 %v1883, 48
  %v1896 = vpop.permute.xlu0 %1895
  %1897 = vrot.lane.b32.xlu0 %v1884, 48
  %v1898 = vpop.permute.xlu0 %1897
  %1899 = vrot.lane.b32.xlu0 %v1885, 48
  %v1900 = vpop.permute.xlu0 %1899
  %1901 = vrot.lane.b32.xlu0 %v1886, 48
  %v1902 = vpop.permute.xlu0 %1901
  %v1903 = vunpack.c.l.b16 %v1035
  %v1904 = vunpack.c.l.b16 %v1049
  %v1905 = vunpack.c.l.b16 %v1063
  %v1906 = vunpack.c.l.b16 %v1077
  %v1907 = vunpack.c.l.b16 %v1091
  %v1908 = vunpack.c.l.b16 %v1105
  %v1909 = vunpack.c.l.b16 %v1119
  %v1910 = vunpack.c.l.b16 %v1133
  %v1911 = vunpack.c.l.b16 %v1147
  %v1912 = vunpack.c.l.b16 %v1161
  %v1913 = vunpack.c.l.b16 %v1175
  %v1914 = vunpack.c.l.b16 %v1189
  %v1915 = vunpack.c.l.b16 %v1203
  %v1916 = vunpack.c.l.b16 %v1217
  %v1917 = vunpack.c.l.b16 %v1231
  %v1918 = vunpack.c.l.b16 %v1245
  %v1919 = vpack.c.b16 %v1904, %v1903
  %v1920 = vpack.c.b16 %v1906, %v1905
  %v1921 = vpack.c.b16 %v1908, %v1907
  %v1922 = vpack.c.b16 %v1910, %v1909
  %v1923 = vpack.c.b16 %v1912, %v1911
  %v1924 = vpack.c.b16 %v1914, %v1913
  %v1925 = vpack.c.b16 %v1916, %v1915
  %v1926 = vpack.c.b16 %v1918, %v1917
  %1927 = vrot.lane.b32.xlu0 %v1919, 64
  %v1928 = vpop.permute.xlu0 %1927
  %1929 = vrot.lane.b32.xlu0 %v1920, 64
  %v1930 = vpop.permute.xlu0 %1929
  %1931 = vrot.lane.b32.xlu0 %v1921, 64
  %v1932 = vpop.permute.xlu0 %1931
  %1933 = vrot.lane.b32.xlu0 %v1922, 64
  %v1934 = vpop.permute.xlu0 %1933
  %1935 = vrot.lane.b32.xlu0 %v1923, 64
  %v1936 = vpop.permute.xlu0 %1935
  %1937 = vrot.lane.b32.xlu0 %v1924, 64
  %v1938 = vpop.permute.xlu0 %1937
  %1939 = vrot.lane.b32.xlu0 %v1925, 64
  %v1940 = vpop.permute.xlu0 %1939
  %1941 = vrot.lane.b32.xlu0 %v1926, 64
  %v1942 = vpop.permute.xlu0 %1941
  %v1943 = vunpack.c.l.b16 %v1297
  %v1944 = vunpack.c.l.b16 %v1301
  %v1945 = vunpack.c.l.b16 %v1305
  %v1946 = vunpack.c.l.b16 %v1309
  %v1947 = vunpack.c.l.b16 %v1313
  %v1948 = vunpack.c.l.b16 %v1317
  %v1949 = vunpack.c.l.b16 %v1321
  %v1950 = vunpack.c.l.b16 %v1325
  %v1951 = vunpack.c.l.b16 %v1329
  %v1952 = vunpack.c.l.b16 %v1333
  %v1953 = vunpack.c.l.b16 %v1337
  %v1954 = vunpack.c.l.b16 %v1341
  %v1955 = vunpack.c.l.b16 %v1345
  %v1956 = vunpack.c.l.b16 %v1349
  %v1957 = vunpack.c.l.b16 %v1353
  %v1958 = vunpack.c.l.b16 %v1357
  %v1959 = vpack.c.b16 %v1944, %v1943
  %v1960 = vpack.c.b16 %v1946, %v1945
  %v1961 = vpack.c.b16 %v1948, %v1947
  %v1962 = vpack.c.b16 %v1950, %v1949
  %v1963 = vpack.c.b16 %v1952, %v1951
  %v1964 = vpack.c.b16 %v1954, %v1953
  %v1965 = vpack.c.b16 %v1956, %v1955
  %v1966 = vpack.c.b16 %v1958, %v1957
  %1967 = vrot.lane.b32.xlu0 %v1959, 80
  %v1968 = vpop.permute.xlu0 %1967
  %1969 = vrot.lane.b32.xlu0 %v1960, 80
  %v1970 = vpop.permute.xlu0 %1969
  %1971 = vrot.lane.b32.xlu0 %v1961, 80
  %v1972 = vpop.permute.xlu0 %1971
  %1973 = vrot.lane.b32.xlu0 %v1962, 80
  %v1974 = vpop.permute.xlu0 %1973
  %1975 = vrot.lane.b32.xlu0 %v1963, 80
  %v1976 = vpop.permute.xlu0 %1975
  %1977 = vrot.lane.b32.xlu0 %v1964, 80
  %v1978 = vpop.permute.xlu0 %1977
  %1979 = vrot.lane.b32.xlu0 %v1965, 80
  %v1980 = vpop.permute.xlu0 %1979
  %1981 = vrot.lane.b32.xlu0 %v1966, 80
  %v1982 = vpop.permute.xlu0 %1981
  %v1999 = vunpack.c.l.b16 %v1359
  %v2000 = vunpack.c.l.b16 %v1360
  %v2001 = vunpack.c.l.b16 %v1361
  %v2002 = vunpack.c.l.b16 %v1362
  %v2003 = vunpack.c.l.b16 %v1363
  %v2004 = vunpack.c.l.b16 %v1364
  %v2005 = vunpack.c.l.b16 %v1365
  %v2006 = vunpack.c.l.b16 %v1366
  %v2007 = vunpack.c.l.b16 %v1367
  %v2008 = vunpack.c.l.b16 %v1368
  %v2009 = vunpack.c.l.b16 %v1369
  %v2010 = vunpack.c.l.b16 %v1370
  %v2011 = vunpack.c.l.b16 %v1371
  %v2012 = vunpack.c.l.b16 %v1372
  %v2013 = vunpack.c.l.b16 %v1373
  %v2014 = vunpack.c.l.b16 %v1374
  %v2015 = vpack.c.b16 %v2000, %v1999
  %v2016 = vpack.c.b16 %v2002, %v2001
  %v2017 = vpack.c.b16 %v2004, %v2003
  %v2018 = vpack.c.b16 %v2006, %v2005
  %v2019 = vpack.c.b16 %v2008, %v2007
  %v2020 = vpack.c.b16 %v2010, %v2009
  %v2021 = vpack.c.b16 %v2012, %v2011
  %v2022 = vpack.c.b16 %v2014, %v2013
  %2023 = vrot.lane.b32.xlu0 %v2015, 96
  %v2024 = vpop.permute.xlu0 %2023
  %2025 = vrot.lane.b32.xlu0 %v2016, 96
  %v2026 = vpop.permute.xlu0 %2025
  %2027 = vrot.lane.b32.xlu0 %v2017, 96
  %v2028 = vpop.permute.xlu0 %2027
  %2029 = vrot.lane.b32.xlu0 %v2018, 96
  %v2030 = vpop.permute.xlu0 %2029
  %2031 = vrot.lane.b32.xlu0 %v2019, 96
  %v2032 = vpop.permute.xlu0 %2031
  %2033 = vrot.lane.b32.xlu0 %v2020, 96
  %v2034 = vpop.permute.xlu0 %2033
  %2035 = vrot.lane.b32.xlu0 %v2021, 96
  %v2036 = vpop.permute.xlu0 %2035
  %2037 = vrot.lane.b32.xlu0 %v2022, 96
  %v2038 = vpop.permute.xlu0 %2037
  %v2039 = vunpack.c.l.b16 %v1404
  %v2040 = vunpack.c.l.b16 %v1418
  %v2041 = vunpack.c.l.b16 %v1432
  %v2042 = vunpack.c.l.b16 %v1446
  %v2043 = vunpack.c.l.b16 %v1460
  %v2044 = vunpack.c.l.b16 %v1474
  %v2045 = vunpack.c.l.b16 %v1488
  %v2046 = vunpack.c.l.b16 %v1502
  %v2047 = vunpack.c.l.b16 %v1516
  %v2048 = vunpack.c.l.b16 %v1530
  %v2049 = vunpack.c.l.b16 %v1544
  %v2050 = vunpack.c.l.b16 %v1558
  %v2051 = vunpack.c.l.b16 %v1572
  %v2052 = vunpack.c.l.b16 %v1586
  %v2053 = vunpack.c.l.b16 %v1600
  %v2054 = vunpack.c.l.b16 %v1614
  %v2055 = vpack.c.b16 %v2040, %v2039
  %v2056 = vpack.c.b16 %v2042, %v2041
  %v2057 = vpack.c.b16 %v2044, %v2043
  %v2058 = vpack.c.b16 %v2046, %v2045
  %v2059 = vpack.c.b16 %v2048, %v2047
  %v2060 = vpack.c.b16 %v2050, %v2049
  %v2061 = vpack.c.b16 %v2052, %v2051
  %v2062 = vpack.c.b16 %v2054, %v2053
  %2063 = vrot.lane.b32.xlu0 %v2055, 112
  %v2064 = vpop.permute.xlu0 %2063
  %2065 = vrot.lane.b32.xlu0 %v2056, 112
  %v2066 = vpop.permute.xlu0 %2065
  %2067 = vrot.lane.b32.xlu0 %v2057, 112
  %v2068 = vpop.permute.xlu0 %2067
  %2069 = vrot.lane.b32.xlu0 %v2058, 112
  %v2070 = vpop.permute.xlu0 %2069
  %2071 = vrot.lane.b32.xlu0 %v2059, 112
  %v2072 = vpop.permute.xlu0 %2071
  %2073 = vrot.lane.b32.xlu0 %v2060, 112
  %v2074 = vpop.permute.xlu0 %2073
  %2075 = vrot.lane.b32.xlu0 %v2061, 112
  %v2076 = vpop.permute.xlu0 %2075
  %2077 = vrot.lane.b32.xlu0 %v2062, 112
  %v2078 = vpop.permute.xlu0 %2077
  %v2079 = vunpack.c.l.b16 %v1666
  %v2080 = vunpack.c.l.b16 %v1670
  %v2081 = vunpack.c.l.b16 %v1674
  %v2082 = vunpack.c.l.b16 %v1678
  %v2083 = vunpack.c.l.b16 %v1682
  %v2084 = vunpack.c.l.b16 %v1686
  %v2085 = vunpack.c.l.b16 %v1690
  %v2086 = vunpack.c.l.b16 %v1694
  %v2087 = vunpack.c.l.b16 %v1698
  %v2088 = vunpack.c.l.b16 %v1702
  %v2089 = vunpack.c.l.b16 %v1706
  %v2090 = vunpack.c.l.b16 %v1710
  %v2091 = vunpack.c.l.b16 %v1714
  %v2092 = vunpack.c.l.b16 %v1718
  %v2093 = vunpack.c.l.b16 %v1722
  %v2094 = vunpack.c.l.b16 %v1726
  %v2095 = vpack.c.b16 %v2080, %v2079
  %v2096 = vpack.c.b16 %v2082, %v2081
  %v2097 = vpack.c.b16 %v2084, %v2083
  %v2098 = vpack.c.b16 %v2086, %v2085
  %v2099 = vpack.c.b16 %v2088, %v2087
  %v2100 = vpack.c.b16 %v2090, %v2089
  %v2101 = vpack.c.b16 %v2092, %v2091
  %v2102 = vpack.c.b16 %v2094, %v2093
  %vm2103 = vcmask 130048
  %v2106 = vsel %vm2103, %v1759, %v1792
  %v2109 = vsel %vm2103, %v1760, %v1794
  %v2112 = vsel %vm2103, %v1761, %v1796
  %v2115 = vsel %vm2103, %v1762, %v1798
  %v2118 = vsel %vm2103, %v1763, %v1800
  %v2121 = vsel %vm2103, %v1764, %v1802
  %v2124 = vsel %vm2103, %v1765, %v1804
  %v2127 = vsel %vm2103, %v1766, %v1806
  %v2129 = vsel %vm151, %v2106, %v1832
  %v2131 = vsel %vm151, %v2109, %v1834
  %v2133 = vsel %vm151, %v2112, %v1836
  %v2135 = vsel %vm151, %v2115, %v1838
  %v2137 = vsel %vm151, %v2118, %v1840
  %v2139 = vsel %vm151, %v2121, %v1842
  %v2141 = vsel %vm151, %v2124, %v1844
  %v2143 = vsel %vm151, %v2127, %v1846
  %vm2144 = vcmask 392192
  %v2146 = vsel %vm2144, %v2129, %v1888
  %v2148 = vsel %vm2144, %v2131, %v1890
  %v2150 = vsel %vm2144, %v2133, %v1892
  %v2152 = vsel %vm2144, %v2135, %v1894
  %v2154 = vsel %vm2144, %v2137, %v1896
  %v2156 = vsel %vm2144, %v2139, %v1898
  %v2158 = vsel %vm2144, %v2141, %v1900
  %v2160 = vsel %vm2144, %v2143, %v1902
  %vm2161 = vcmask 523264
  %v2163 = vsel %vm2161, %v2146, %v1928
  %v2165 = vsel %vm2161, %v2148, %v1930
  %v2167 = vsel %vm2161, %v2150, %v1932
  %v2169 = vsel %vm2161, %v2152, %v1934
  %v2171 = vsel %vm2161, %v2154, %v1936
  %v2173 = vsel %vm2161, %v2156, %v1938
  %v2175 = vsel %vm2161, %v2158, %v1940
  %v2177 = vsel %vm2161, %v2160, %v1942
  %vm2178 = vcmask 654336
  %v2180 = vsel %vm2178, %v2163, %v1968
  %v2182 = vsel %vm2178, %v2165, %v1970
  %v2184 = vsel %vm2178, %v2167, %v1972
  %v2186 = vsel %vm2178, %v2169, %v1974
  %v2188 = vsel %vm2178, %v2171, %v1976
  %v2190 = vsel %vm2178, %v2173, %v1978
  %v2192 = vsel %vm2178, %v2175, %v1980
  %v2194 = vsel %vm2178, %v2177, %v1982
  %vm2195 = vcmask 785408
  %v2197 = vsel %vm2195, %v2180, %v2024
  %v2199 = vsel %vm2195, %v2182, %v2026
  %v2201 = vsel %vm2195, %v2184, %v2028
  %v2203 = vsel %vm2195, %v2186, %v2030
  %v2205 = vsel %vm2195, %v2188, %v2032
  %v2207 = vsel %vm2195, %v2190, %v2034
  %v2209 = vsel %vm2195, %v2192, %v2036
  %v2211 = vsel %vm2195, %v2194, %v2038
  %vm2212 = vcmask 916480
  %v2214 = vsel %vm2212, %v2197, %v2064
  %v2217 = vsel %vm2212, %v2199, %v2066
  %v2220 = vsel %vm2212, %v2201, %v2068
  %v2223 = vsel %vm2212, %v2203, %v2070
  %v2226 = vsel %vm2212, %v2205, %v2072
  %v2229 = vsel %vm2212, %v2207, %v2074
  %v2232 = vsel %vm2212, %v2209, %v2076
  %v2235 = vsel %vm2212, %v2211, %v2078
  %v2237 = vld [vmem:[%s3] sm:$0xf]
  %v2238 = vld [vmem:[%s3 + $0x4] sm:$0xf]
  %v2239 = vld [vmem:[%s3 + $0x8] sm:$0xf]
  %v2240 = vld [vmem:[%s3 + $0xc] sm:$0xf]
  %v2241 = vld [vmem:[%s3 + $0x10] sm:$0xf]
  %v2242 = vld [vmem:[%s3 + $0x14] sm:$0xf]
  %v2243 = vld [vmem:[%s3 + $0x18] sm:$0xf]
  %v2244 = vld [vmem:[%s3 + $0x1c] sm:$0xf]
  %v2245 = vld [vmem:[%s3 + $0x20] sm:$0xf]
  %v2246 = vld [vmem:[%s3 + $0x24] sm:$0xf]
  %v2247 = vld [vmem:[%s3 + $0x28] sm:$0xf]
  %v2248 = vld [vmem:[%s3 + $0x2c] sm:$0xf]
  %v2249 = vld [vmem:[%s3 + $0x30] sm:$0xf]
  %v2250 = vld [vmem:[%s3 + $0x34] sm:$0xf]
  %v2251 = vld [vmem:[%s3 + $0x38] sm:$0xf]
  %v2252 = vld [vmem:[%s3 + $0x3c] sm:$0xf]
  %v2253 = vld [vmem:[%s3 + $0x40] sm:$0xf]
  %v2254 = vld [vmem:[%s3 + $0x44] sm:$0xf]
  %v2255 = vld [vmem:[%s4] sm:$0x1]
  %v2257 = vlaneseq
  %v2258 = vshrl.u32 %v2257, 7
  %v2259 = vsub.s32 0, %v2258
  %v2260 = vrot.slane %v2255, %v2259
  %v2280 = vunpack.c.l.b16 %v2237
  %v2281 = vunpack.c.l.b16 %v2238
  %v2282 = vunpack.c.l.b16 %v2239
  %v2283 = vunpack.c.l.b16 %v2240
  %v2284 = vunpack.c.l.b16 %v2241
  %v2285 = vunpack.c.l.b16 %v2242
  %v2286 = vunpack.c.l.b16 %v2243
  %v2287 = vunpack.c.l.b16 %v2244
  %v2288 = vunpack.c.l.b16 %v2245
  %v2289 = vunpack.c.l.b16 %v2246
  %v2290 = vunpack.c.l.b16 %v2247
  %v2291 = vunpack.c.l.b16 %v2248
  %v2292 = vunpack.c.l.b16 %v2249
  %v2293 = vunpack.c.l.b16 %v2250
  %v2294 = vunpack.c.l.b16 %v2251
  %v2295 = vunpack.c.l.b16 %v2252
  %v2296 = vunpack.c.l.b16 %v2253
  %v2297 = vunpack.c.l.b16 %v2254
  %v2298 = vpack.c.b16 %v2281, %v2280
  %v2299 = vpack.c.b16 %v2283, %v2282
  %v2300 = vpack.c.b16 %v2285, %v2284
  %v2301 = vpack.c.b16 %v2287, %v2286
  %v2302 = vpack.c.b16 %v2289, %v2288
  %v2303 = vpack.c.b16 %v2291, %v2290
  %v2304 = vpack.c.b16 %v2293, %v2292
  %v2305 = vpack.c.b16 %v2295, %v2294
  %v2306 = vpack.c.b16 %v2297, %v2296
  %v2317 = vsel %vm2103, %v2095, 0
  %v2320 = vsel %vm2103, %v2096, 0
  %v2323 = vsel %vm2103, %v2097, 0
  %v2326 = vsel %vm2103, %v2098, 0
  %v2329 = vsel %vm2103, %v2099, 0
  %v2332 = vsel %vm2103, %v2100, 0
  %v2335 = vsel %vm2103, %v2101, 0
  %v2338 = vsel %vm2103, %v2102, 0
  %2340 = vmatprep.subr.bf16.mxu0 0
  %2341 = vmatpush1.bf16.msra.mxu0 %v2298
  %2342 = vmatprep.subr.bf16.mxu0 0
  %2343 = vmatpush1.bf16.msra.mxu0 %v2299
  %2344 = vmatprep.subr.bf16.mxu0 0
  %2345 = vmatpush1.bf16.msra.mxu0 %v2300
  %2346 = vmatprep.subr.bf16.mxu0 0
  %2347 = vmatpush1.bf16.msra.mxu0 %v2301
  %2348 = vmatprep.subr.bf16.mxu0 0
  %2349 = vmatpush1.bf16.msra.mxu0 %v2302
  %2350 = vmatprep.subr.bf16.mxu0 0
  %2351 = vmatpush1.bf16.msra.mxu0 %v2303
  %2352 = vmatprep.subr.bf16.mxu0 0
  %2353 = vmatpush1.bf16.msra.mxu0 %v2304
  %2354 = vmatprep.subr.bf16.mxu0 0
  %2355 = vmatpush1.bf16.msra.mxu0 %v2305
  %2356 = vmatprep.subr.bf16.mxu0 0
  %2357 = vmatpush1.bf16.msra.mxu0 %v2306
  %2358 = vmatprep.subr.bf16.mxu0 0
  %2359 = vmatpush1.bf16.msra.mxu0 0
  %2360 = vmatprep.subr.bf16.mxu0 0
  %2361 = vmatpush1.bf16.msra.mxu0 0
  %2362 = vmatprep.subr.bf16.mxu0 0
  %2363 = vmatpush1.bf16.msra.mxu0 0
  %2364 = vmatprep.subr.bf16.mxu0 0
  %2365 = vmatpush1.bf16.msra.mxu0 0
  %2366 = vmatprep.subr.bf16.mxu0 0
  %2367 = vmatpush1.bf16.msra.mxu0 0
  %2368 = vmatprep.subr.bf16.mxu0 0
  %2369 = vmatpush1.bf16.msra.mxu0 0
  %2370 = vmatprep.subr.bf16.mxu0 0
  %2371 = vmatpush1.bf16.msra.mxu0 0
  %2372 = vmatprep.mubr.bf16.mxu0 %v2317
  %2373 = vmatmul.mubr.bf16.gmra.mrb[0].mxu0 %v2214
  %v2374 = vpop.f32.mrb[0].mxu0
  %v2375 = vadd.f32 %v2260, %v2374
  %v2376 = vpop.f32.mrb[0].mxu0
  %v2377 = vpop.f32.mrb[0].mxu0
  %v2378 = vadd.f32 %v2260, %v2377
  %v2379 = vpop.f32.mrb[0].mxu0
  %2380 = vmatprep.mubr.bf16.mxu0 %v2320
  %2381 = vmatmul.mubr.bf16.gmra.mrb[0].mxu0 %v2217
  %v2382 = vpop.f32.mrb[0].mxu0
  %v2383 = vadd.f32 %v2260, %v2382
  %v2384 = vpop.f32.mrb[0].mxu0
  %v2385 = vpop.f32.mrb[0].mxu0
  %v2386 = vadd.f32 %v2260, %v2385
  %v2387 = vpop.f32.mrb[0].mxu0
  %2388 = vmatprep.mubr.bf16.mxu0 %v2323
  %2389 = vmatmul.mubr.bf16.gmra.mrb[0].mxu0 %v2220
  %v2390 = vpop.f32.mrb[0].mxu0
  %v2391 = vadd.f32 %v2260, %v2390
  %v2392 = vpop.f32.mrb[0].mxu0
  %v2393 = vpop.f32.mrb[0].mxu0
  %v2394 = vadd.f32 %v2260, %v2393
  %v2395 = vpop.f32.mrb[0].mxu0
  %2396 = vmatprep.mubr.bf16.mxu0 %v2326
  %2397 = vmatmul.mubr.bf16.gmra.mrb[0].mxu0 %v2223
  %v2398 = vpop.f32.mrb[0].mxu0
  %v2399 = vadd.f32 %v2260, %v2398
  %v2400 = vpop.f32.mrb[0].mxu0
  %v2401 = vpop.f32.mrb[0].mxu0
  %v2402 = vadd.f32 %v2260, %v2401
  %v2403 = vpop.f32.mrb[0].mxu0
  %2404 = vmatprep.mubr.bf16.mxu0 %v2329
  %2405 = vmatmul.mubr.bf16.gmra.mrb[0].mxu0 %v2226
  %v2406 = vpop.f32.mrb[0].mxu0
  %v2407 = vadd.f32 %v2260, %v2406
  %v2408 = vpop.f32.mrb[0].mxu0
  %v2409 = vpop.f32.mrb[0].mxu0
  %v2410 = vadd.f32 %v2260, %v2409
  %v2411 = vpop.f32.mrb[0].mxu0
  %2412 = vmatprep.mubr.bf16.mxu0 %v2332
  %2413 = vmatmul.mubr.bf16.gmra.mrb[0].mxu0 %v2229
  %v2414 = vpop.f32.mrb[0].mxu0
  %v2415 = vadd.f32 %v2260, %v2414
  %v2416 = vpop.f32.mrb[0].mxu0
  %v2417 = vpop.f32.mrb[0].mxu0
  %v2418 = vadd.f32 %v2260, %v2417
  %v2419 = vpop.f32.mrb[0].mxu0
  %2420 = vmatprep.mubr.bf16.mxu0 %v2335
  %2421 = vmatmul.mubr.bf16.gmra.mrb[0].mxu0 %v2232
  %v2422 = vpop.f32.mrb[0].mxu0
  %v2423 = vadd.f32 %v2260, %v2422
  %v2424 = vpop.f32.mrb[0].mxu0
  %v2425 = vpop.f32.mrb[0].mxu0
  %v2426 = vadd.f32 %v2260, %v2425
  %v2427 = vpop.f32.mrb[0].mxu0
  %2428 = vmatprep.mubr.bf16.mxu0 %v2338
  %2429 = vmatmul.mubr.bf16.gmra.mrb[0].mxu0 %v2235
  %v2430 = vpop.f32.mrb[0].mxu0
  %v2431 = vadd.f32 %v2260, %v2430
  %v2432 = vpop.f32.mrb[0].mxu0
  %v2433 = vpop.f32.mrb[0].mxu0
  %v2434 = vadd.f32 %v2260, %v2433
  %v2435 = vpop.f32.mrb[0].mxu0
  %2436 = vdwg.mxu0
  %v2437 = vmax.f32 %v2375, 0.0
  %v2438 = vmax.f32 %v2378, 0.0
  %v2439 = vmax.f32 %v2383, 0.0
  %v2440 = vmax.f32 %v2386, 0.0
  %v2441 = vmax.f32 %v2391, 0.0
  %v2442 = vmax.f32 %v2394, 0.0
  %v2443 = vmax.f32 %v2399, 0.0
  %v2444 = vmax.f32 %v2402, 0.0
  %v2445 = vmax.f32 %v2407, 0.0
  %v2446 = vmax.f32 %v2410, 0.0
  %v2447 = vmax.f32 %v2415, 0.0
  %v2448 = vmax.f32 %v2418, 0.0
  %v2449 = vmax.f32 %v2423, 0.0
  %v2450 = vmax.f32 %v2426, 0.0
  %v2451 = vmax.f32 %v2431, 0.0
  %v2452 = vmax.f32 %v2434, 0.0
  %v2453 = vpack.c.bf16 %v2438, %v2437
  %v2454 = vpack.c.bf16 %v2440, %v2439
  %v2455 = vpack.c.bf16 %v2442, %v2441
  %v2456 = vpack.c.bf16 %v2444, %v2443
  %v2457 = vpack.c.bf16 %v2446, %v2445
  %v2458 = vpack.c.bf16 %v2448, %v2447
  %v2459 = vpack.c.bf16 %v2450, %v2449
  %v2460 = vpack.c.bf16 %v2452, %v2451
  %v2461 = vld [vmem:[%s5] sm:$0xf]
  %v2462 = vld [vmem:[%s5 + $0x4] sm:$0xf]
  %v2463 = vld [vmem:[%s7] sm:$0xf]
  %v2464 = vld [vmem:[%s7 + $0x4] sm:$0xf]
  %v2465 = vld [vmem:[%s7 + $0x8] sm:$0xf]
  %v2466 = vld [vmem:[%s7 + $0xc] sm:$0xf]
  %v2471 = vunpack.c.l.b16 %v2463
  %v2472 = vunpack.c.l.b16 %v2464
  %v2473 = vunpack.c.l.b16 %v2465
  %v2474 = vunpack.c.l.b16 %v2466
  %v2475 = vpack.c.b16 %v2472, %v2471
  %v2476 = vpack.c.b16 %v2474, %v2473
  %2479 = vmatprep.subr.bf16.mxu0 0
  %2480 = vmatpush1.bf16.msra.mxu0 %v2475
  %2481 = vmatprep.subr.bf16.mxu0 0
  %2482 = vmatpush1.bf16.msra.mxu0 %v2476
  %2483 = vmatprep.subr.bf16.mxu0 0
  %2484 = vmatpush1.bf16.msra.mxu0 0
  %2485 = vmatprep.subr.bf16.mxu0 0
  %2486 = vmatpush1.bf16.msra.mxu0 0
  %2487 = vmatprep.subr.bf16.mxu0 0
  %2488 = vmatpush1.bf16.msra.mxu0 0
  %2489 = vmatprep.subr.bf16.mxu0 0
  %2490 = vmatpush1.bf16.msra.mxu0 0
  %2491 = vmatprep.subr.bf16.mxu0 0
  %2492 = vmatpush1.bf16.msra.mxu0 0
  %2493 = vmatprep.subr.bf16.mxu0 0
  %2494 = vmatpush1.bf16.msra.mxu0 0
  %2495 = vmatprep.subr.bf16.mxu0 0
  %2496 = vmatpush1.bf16.msra.mxu0 0
  %2497 = vmatprep.subr.bf16.mxu0 0
  %2498 = vmatpush1.bf16.msra.mxu0 0
  %2499 = vmatprep.subr.bf16.mxu0 0
  %2500 = vmatpush1.bf16.msra.mxu0 0
  %2501 = vmatprep.subr.bf16.mxu0 0
  %2502 = vmatpush1.bf16.msra.mxu0 0
  %2503 = vmatprep.subr.bf16.mxu0 0
  %2504 = vmatpush1.bf16.msra.mxu0 0
  %2505 = vmatprep.subr.bf16.mxu0 0
  %2506 = vmatpush1.bf16.msra.mxu0 0
  %2507 = vmatprep.subr.bf16.mxu0 0
  %2508 = vmatpush1.bf16.msra.mxu0 0
  %2509 = vmatprep.subr.bf16.mxu0 0
  %2510 = vmatpush1.bf16.msra.mxu0 0
  %2511 = vmatprep.mubr.bf16.mxu0 0
  %2512 = vmatmul.mubr.bf16.gmra.mrb[0].mxu0 %v153
  %v2513 = vpop.f32.mrb[0].mxu0
  %v2514 = vadd.f32 0.0, %v2513
  %v2515 = vpop.f32.mrb[0].mxu0
  %v2516 = vpop.f32.mrb[0].mxu0
  %v2517 = vadd.f32 0.0, %v2516
  %v2518 = vpop.f32.mrb[0].mxu0
  %2519 = vmatprep.mubr.bf16.mxu0 0
  %2520 = vmatmul.mubr.bf16.gmra.mrb[0].mxu0 %v156
  %v2521 = vpop.f32.mrb[0].mxu0
  %v2522 = vadd.f32 0.0, %v2521
  %v2523 = vpop.f32.mrb[0].mxu0
  %v2524 = vpop.f32.mrb[0].mxu0
  %v2525 = vadd.f32 0.0, %v2524
  %v2526 = vpop.f32.mrb[0].mxu0
  %2527 = vmatprep.mubr.bf16.mxu0 0
  %2528 = vmatmul.mubr.bf16.gmra.mrb[0].mxu0 %v159
  %v2529 = vpop.f32.mrb[0].mxu0
  %v2530 = vadd.f32 0.0, %v2529
  %v2531 = vpop.f32.mrb[0].mxu0
  %v2532 = vpop.f32.mrb[0].mxu0
  %v2533 = vadd.f32 0.0, %v2532
  %v2534 = vpop.f32.mrb[0].mxu0
  %2535 = vmatprep.mubr.bf16.mxu0 0
  %2536 = vmatmul.mubr.bf16.gmra.mrb[0].mxu0 %v162
  %v2537 = vpop.f32.mrb[0].mxu0
  %v2538 = vadd.f32 0.0, %v2537
  %v2539 = vpop.f32.mrb[0].mxu0
  %v2540 = vpop.f32.mrb[0].mxu0
  %v2541 = vadd.f32 0.0, %v2540
  %v2542 = vpop.f32.mrb[0].mxu0
  %2543 = vmatprep.mubr.bf16.mxu0 0
  %2544 = vmatmul.mubr.bf16.gmra.mrb[0].mxu0 %v165
  %v2545 = vpop.f32.mrb[0].mxu0
  %v2546 = vadd.f32 0.0, %v2545
  %v2547 = vpop.f32.mrb[0].mxu0
  %v2548 = vpop.f32.mrb[0].mxu0
  %v2549 = vadd.f32 0.0, %v2548
  %v2550 = vpop.f32.mrb[0].mxu0
  %2551 = vmatprep.mubr.bf16.mxu0 0
  %2552 = vmatmul.mubr.bf16.gmra.mrb[0].mxu0 %v168
  %v2553 = vpop.f32.mrb[0].mxu0
  %v2554 = vadd.f32 0.0, %v2553
  %v2555 = vpop.f32.mrb[0].mxu0
  %v2556 = vpop.f32.mrb[0].mxu0
  %v2557 = vadd.f32 0.0, %v2556
  %v2558 = vpop.f32.mrb[0].mxu0
  %2559 = vmatprep.mubr.bf16.mxu0 0
  %2560 = vmatmul.mubr.bf16.gmra.mrb[0].mxu0 %v171
  %v2561 = vpop.f32.mrb[0].mxu0
  %v2562 = vadd.f32 0.0, %v2561
  %v2563 = vpop.f32.mrb[0].mxu0
  %v2564 = vpop.f32.mrb[0].mxu0
  %v2565 = vadd.f32 0.0, %v2564
  %v2566 = vpop.f32.mrb[0].mxu0
  %2567 = vmatprep.mubr.bf16.mxu0 0
  %2568 = vmatmul.mubr.bf16.gmra.mrb[0].mxu0 %v174
  %v2569 = vpop.f32.mrb[0].mxu0
  %v2570 = vadd.f32 0.0, %v2569
  %v2571 = vpop.f32.mrb[0].mxu0
  %v2572 = vpop.f32.mrb[0].mxu0
  %v2573 = vadd.f32 0.0, %v2572
  %v2574 = vpop.f32.mrb[0].mxu0
  %2575 = vdwg.mxu0
  %v2578 = vunpack.c.l.b16 %v2461
  %v2579 = vunpack.c.l.b16 %v2462
  %v2580 = vpack.c.b16 %v2579, %v2578
  %v2583 = vsel %vm2103, %v2453, 0
  %v2586 = vsel %vm2103, %v2454, 0
  %v2589 = vsel %vm2103, %v2455, 0
  %v2592 = vsel %vm2103, %v2456, 0
  %v2595 = vsel %vm2103, %v2457, 0
  %v2598 = vsel %vm2103, %v2458, 0
  %v2601 = vsel %vm2103, %v2459, 0
  %v2604 = vsel %vm2103, %v2460, 0
  %2606 = vmatprep.subr.bf16.mxu0 0
  %2607 = vmatpush1.bf16.msra.mxu0 %v2580
  %2608 = vmatprep.subr.bf16.mxu0 0
  %2609 = vmatpush1.bf16.msra.mxu0 0
  %2610 = vmatprep.subr.bf16.mxu0 0
  %2611 = vmatpush1.bf16.msra.mxu0 0
  %2612 = vmatprep.subr.bf16.mxu0 0
  %2613 = vmatpush1.bf16.msra.mxu0 0
  %2614 = vmatprep.subr.bf16.mxu0 0
  %2615 = vmatpush1.bf16.msra.mxu0 0
  %2616 = vmatprep.subr.bf16.mxu0 0
  %2617 = vmatpush1.bf16.msra.mxu0 0
  %2618 = vmatprep.subr.bf16.mxu0 0
  %2619 = vmatpush1.bf16.msra.mxu0 0
  %2620 = vmatprep.subr.bf16.mxu0 0
  %2621 = vmatpush1.bf16.msra.mxu0 0
  %2622 = vmatprep.subr.bf16.mxu0 0
  %2623 = vmatpush1.bf16.msra.mxu0 0
  %2624 = vmatprep.subr.bf16.mxu0 0
  %2625 = vmatpush1.bf16.msra.mxu0 0
  %2626 = vmatprep.subr.bf16.mxu0 0
  %2627 = vmatpush1.bf16.msra.mxu0 0
  %2628 = vmatprep.subr.bf16.mxu0 0
  %2629 = vmatpush1.bf16.msra.mxu0 0
  %2630 = vmatprep.subr.bf16.mxu0 0
  %2631 = vmatpush1.bf16.msra.mxu0 0
  %2632 = vmatprep.subr.bf16.mxu0 0
  %2633 = vmatpush1.bf16.msra.mxu0 0
  %2634 = vmatprep.subr.bf16.mxu0 0
  %2635 = vmatpush1.bf16.msra.mxu0 0
  %2636 = vmatprep.subr.bf16.mxu0 0
  %2637 = vmatpush1.bf16.msra.mxu0 0
  %2638 = vmatprep.mubr.bf16.mxu0 0
  %2639 = vmatmul.mubr.bf16.gmra.mrb[0].mxu0 %v2583
  %v2640 = vpop.f32.mrb[0].mxu0
  %v2641 = vadd.f32 %v2514, %v2640
  %v2642 = vpop.f32.mrb[0].mxu0
  %v2643 = vpop.f32.mrb[0].mxu0
  %v2644 = vadd.f32 %v2517, %v2643
  %v2645 = vpop.f32.mrb[0].mxu0
  %2646 = vmatprep.mubr.bf16.mxu0 0
  %2647 = vmatmul.mubr.bf16.gmra.mrb[0].mxu0 %v2586
  %v2648 = vpop.f32.mrb[0].mxu0
  %v2649 = vadd.f32 %v2522, %v2648
  %v2650 = vpop.f32.mrb[0].mxu0
  %v2651 = vpop.f32.mrb[0].mxu0
  %v2652 = vadd.f32 %v2525, %v2651
  %v2653 = vpop.f32.mrb[0].mxu0
  %2654 = vmatprep.mubr.bf16.mxu0 0
  %2655 = vmatmul.mubr.bf16.gmra.mrb[0].mxu0 %v2589
  %v2656 = vpop.f32.mrb[0].mxu0
  %v2657 = vadd.f32 %v2530, %v2656
  %v2658 = vpop.f32.mrb[0].mxu0
  %v2659 = vpop.f32.mrb[0].mxu0
  %v2660 = vadd.f32 %v2533, %v2659
  %v2661 = vpop.f32.mrb[0].mxu0
  %2662 = vmatprep.mubr.bf16.mxu0 0
  %2663 = vmatmul.mubr.bf16.gmra.mrb[0].mxu0 %v2592
  %v2664 = vpop.f32.mrb[0].mxu0
  %v2665 = vadd.f32 %v2538, %v2664
  %v2666 = vpop.f32.mrb[0].mxu0
  %v2667 = vpop.f32.mrb[0].mxu0
  %v2668 = vadd.f32 %v2541, %v2667
  %v2669 = vpop.f32.mrb[0].mxu0
  %2670 = vmatprep.mubr.bf16.mxu0 0
  %2671 = vmatmul.mubr.bf16.gmra.mrb[0].mxu0 %v2595
  %v2672 = vpop.f32.mrb[0].mxu0
  %v2673 = vadd.f32 %v2546, %v2672
  %v2674 = vpop.f32.mrb[0].mxu0
  %v2675 = vpop.f32.mrb[0].mxu0
  %v2676 = vadd.f32 %v2549, %v2675
  %v2677 = vpop.f32.mrb[0].mxu0
  %2678 = vmatprep.mubr.bf16.mxu0 0
  %2679 = vmatmul.mubr.bf16.gmra.mrb[0].mxu0 %v2598
  %v2680 = vpop.f32.mrb[0].mxu0
  %v2681 = vadd.f32 %v2554, %v2680
  %v2682 = vpop.f32.mrb[0].mxu0
  %v2683 = vpop.f32.mrb[0].mxu0
  %v2684 = vadd.f32 %v2557, %v2683
  %v2685 = vpop.f32.mrb[0].mxu0
  %2686 = vmatprep.mubr.bf16.mxu0 0
  %2687 = vmatmul.mubr.bf16.gmra.mrb[0].mxu0 %v2601
  %v2688 = vpop.f32.mrb[0].mxu0
  %v2689 = vadd.f32 %v2562, %v2688
  %v2690 = vpop.f32.mrb[0].mxu0
  %v2691 = vpop.f32.mrb[0].mxu0
  %v2692 = vadd.f32 %v2565, %v2691
  %v2693 = vpop.f32.mrb[0].mxu0
  %2694 = vmatprep.mubr.bf16.mxu0 0
  %2695 = vmatmul.mubr.bf16.gmra.mrb[0].mxu0 %v2604
  %v2696 = vpop.f32.mrb[0].mxu0
  %v2697 = vadd.f32 %v2570, %v2696
  %v2698 = vpop.f32.mrb[0].mxu0
  %v2699 = vpop.f32.mrb[0].mxu0
  %v2700 = vadd.f32 %v2573, %v2699
  %v2701 = vpop.f32.mrb[0].mxu0
  %2702 = vdwg.mxu0
  %v2703 = vld [vmem:[%s6] sm:$0x1]
  %v2705 = vlaneseq
  %v2706 = vshrl.u32 %v2705, 7
  %v2707 = vsub.s32 0, %v2706
  %v2708 = vrot.slane %v2703, %v2707
  %v2710 = vadd.f32 %v2641, %v2708
  %v2711 = vadd.f32 %v2644, %v2708
  %v2712 = vadd.f32 %v2649, %v2708
  %v2713 = vadd.f32 %v2652, %v2708
  %v2714 = vadd.f32 %v2657, %v2708
  %v2715 = vadd.f32 %v2660, %v2708
  %v2716 = vadd.f32 %v2665, %v2708
  %v2717 = vadd.f32 %v2668, %v2708
  %v2718 = vadd.f32 %v2673, %v2708
  %v2719 = vadd.f32 %v2676, %v2708
  %v2720 = vadd.f32 %v2681, %v2708
  %v2721 = vadd.f32 %v2684, %v2708
  %v2722 = vadd.f32 %v2689, %v2708
  %v2723 = vadd.f32 %v2692, %v2708
  %v2724 = vadd.f32 %v2697, %v2708
  %v2725 = vadd.f32 %v2700, %v2708
  %v2726 = vmax.f32 %v2710, 0.0
  %v2727 = vmax.f32 %v2711, 0.0
  %v2728 = vmax.f32 %v2712, 0.0
  %v2729 = vmax.f32 %v2713, 0.0
  %v2730 = vmax.f32 %v2714, 0.0
  %v2731 = vmax.f32 %v2715, 0.0
  %v2732 = vmax.f32 %v2716, 0.0
  %v2733 = vmax.f32 %v2717, 0.0
  %v2734 = vmax.f32 %v2718, 0.0
  %v2735 = vmax.f32 %v2719, 0.0
  %v2736 = vmax.f32 %v2720, 0.0
  %v2737 = vmax.f32 %v2721, 0.0
  %v2738 = vmax.f32 %v2722, 0.0
  %v2739 = vmax.f32 %v2723, 0.0
  %v2740 = vmax.f32 %v2724, 0.0
  %v2741 = vmax.f32 %v2725, 0.0
  %v2742 = vpack.c.bf16 %v2726, %v2726
  %v2743 = vpack.c.bf16 %v2727, %v2727
  %v2744 = vpack.c.bf16 %v2728, %v2728
  %v2745 = vpack.c.bf16 %v2729, %v2729
  %v2746 = vpack.c.bf16 %v2730, %v2730
  %v2747 = vpack.c.bf16 %v2731, %v2731
  %v2748 = vpack.c.bf16 %v2732, %v2732
  %v2749 = vpack.c.bf16 %v2733, %v2733
  %v2750 = vpack.c.bf16 %v2734, %v2734
  %v2751 = vpack.c.bf16 %v2735, %v2735
  %v2752 = vpack.c.bf16 %v2736, %v2736
  %v2753 = vpack.c.bf16 %v2737, %v2737
  %v2754 = vpack.c.bf16 %v2738, %v2738
  %v2755 = vpack.c.bf16 %v2739, %v2739
  %v2756 = vpack.c.bf16 %v2740, %v2740
  %v2757 = vpack.c.bf16 %v2741, %v2741
  %vm2758 = vcmask 519168
  %2759 = vst.msk [vmem:[%s8] sm:$0xf] %vm2758, %v2742
  %2760 = vst.msk [vmem:[%s8 + $0x4] sm:$0xf] %vm2758, %v2743
  %2761 = vst.msk [vmem:[%s8 + $0x8] sm:$0xf] %vm2758, %v2744
  %2762 = vst.msk [vmem:[%s8 + $0xc] sm:$0xf] %vm2758, %v2745
  %2763 = vst.msk [vmem:[%s8 + $0x10] sm:$0xf] %vm2758, %v2746
  %2764 = vst.msk [vmem:[%s8 + $0x14] sm:$0xf] %vm2758, %v2747
  %2765 = vst.msk [vmem:[%s8 + $0x18] sm:$0xf] %vm2758, %v2748
  %2766 = vst.msk [vmem:[%s8 + $0x1c] sm:$0xf] %vm2758, %v2749
  %2767 = vst.msk [vmem:[%s8 + $0x20] sm:$0xf] %vm2758, %v2750
  %2768 = vst.msk [vmem:[%s8 + $0x24] sm:$0xf] %vm2758, %v2751
  %2769 = vst.msk [vmem:[%s8 + $0x28] sm:$0xf] %vm2758, %v2752
  %2770 = vst.msk [vmem:[%s8 + $0x2c] sm:$0xf] %vm2758, %v2753
  %2771 = vst.msk [vmem:[%s8 + $0x30] sm:$0xf] %vm2758, %v2754
  %2772 = vst.msk [vmem:[%s8 + $0x34] sm:$0xf] %vm2758, %v2755
  %2773 = vst.msk [vmem:[%s8 + $0x38] sm:$0xf] %vm2758, %v2756
  %2774 = vst.msk [vmem:[%s8 + $0x3c] sm:$0xf] %vm2758, %v2757
  // Predicated region
  $region34: #{_lambda_.2} parent=0 // pred_check
    _
  $region35: #{_lambda_.2} parent=0 // pred_check_branch
    %2776 = sbr.rel (0) target = $region37
  $region36: #{_lambda_.2} parent=0 // pred_region
    _
  $region37: #{_lambda_.2} parent=0 // pred_fallthru
    _
  // Predicated region
  $region38: #{_lambda_.2} parent=0 // pred_check
    _
  $region39: #{_lambda_.2} parent=0 // pred_check_branch
    %2778 = sbr.rel (0) target = $region41
  $region40: #{_lambda_.2} parent=0 // pred_region
    _
  $region41: #{_lambda_.2} parent=0 // pred_fallthru
    _

// kernel: _lambda_.3
$region0: #{_lambda_.3}
  #allocation0 [shape = 'u32[]', space=smem, size = 0x4, offset = 0x4, fixed_abs, tag = 'smem constant byte address 0x4 - core index']
  #allocation1 [shape = 'u32[144,128]{1,0:T(1,128)}', space=vmem, size = 0x12000, scoped, tag = 'internal scratch']
  #allocation2 [shape = 'bf16[2,10,10,16]{3,2,1,0:T(8,128)(2,1)}', space=vmem, size = 0x14000, scoped, tag = 'scratch operand']
  %s0 = inlined_call_operand.vmem [shape: bf16[2,8,8,64], index: 0, kind: input, shape index: {}]
  %s1 = inlined_call_operand.vmem [shape: bf16[64,16], index: 1, kind: input, shape index: {}]
  %s2 = inlined_call_operand.vmem [shape: f32[1,16], index: 2, kind: input, shape index: {}]
  %s3 = inlined_call_operand.vmem [shape: bf16[144,16], index: 3, kind: input, shape index: {}]
  %s4 = inlined_call_operand.vmem [shape: f32[1,16], index: 4, kind: input, shape index: {}]
  %s5 = inlined_call_operand.vmem [shape: bf16[16,64], index: 5, kind: input, shape index: {}]
  %s6 = inlined_call_operand.vmem [shape: f32[1,64], index: 6, kind: input, shape index: {}]
  %s7 = inlined_call_operand.vmem [shape: bf16[2,8,8,64], index: 7, kind: output, shape index: {}]
  %s8 = sld [smem:[#allocation0]]
  $region38: #{_lambda_.3} parent=0
    _
  %s10 = ssub.s32 1, %s8
  %s11 = scalar_select 0, %s10, %s8
  // Predicated region
  $region2: #{_lambda_.3} parent=0 // pred_check
    _
  $region3: #{_lambda_.3} parent=0 // pred_check_branch
    %13 = sbr.rel (0) target = $region5
  $region4: #{_lambda_.3} parent=0 // pred_region
    _
  $region5: #{_lambda_.3} parent=0 // pred_fallthru
    _
  // Predicated region
  $region6: #{_lambda_.3} parent=0 // pred_check
    _
  $region7: #{_lambda_.3} parent=0 // pred_check_branch
    %15 = sbr.rel (0) target = $region9
  $region8: #{_lambda_.3} parent=0 // pred_region
    _
  $region9: #{_lambda_.3} parent=0 // pred_fallthru
    _
  // Predicated region
  $region10: #{_lambda_.3} parent=0 // pred_check
    _
  $region11: #{_lambda_.3} parent=0 // pred_check_branch
    %17 = sbr.rel (0) target = $region13
  $region12: #{_lambda_.3} parent=0 // pred_region
    _
  $region13: #{_lambda_.3} parent=0 // pred_fallthru
    _
  // Predicated region
  $region14: #{_lambda_.3} parent=0 // pred_check
    _
  $region15: #{_lambda_.3} parent=0 // pred_check_branch
    %19 = sbr.rel (0) target = $region17
  $region16: #{_lambda_.3} parent=0 // pred_region
    _
  $region17: #{_lambda_.3} parent=0 // pred_fallthru
    _
  // Predicated region
  $region18: #{_lambda_.3} parent=0 // pred_check
    _
  $region19: #{_lambda_.3} parent=0 // pred_check_branch
    %21 = sbr.rel (0) target = $region21
  $region20: #{_lambda_.3} parent=0 // pred_region
    _
  $region21: #{_lambda_.3} parent=0 // pred_fallthru
    _
  // Predicated region
  $region22: #{_lambda_.3} parent=0 // pred_check
    _
  $region23: #{_lambda_.3} parent=0 // pred_check_branch
    %23 = sbr.rel (0) target = $region25
  $region24: #{_lambda_.3} parent=0 // pred_region
    _
  $region25: #{_lambda_.3} parent=0 // pred_fallthru
    _
  // Predicated region
  $region26: #{_lambda_.3} parent=0 // pred_check
    _
  $region27: #{_lambda_.3} parent=0 // pred_check_branch
    %25 = sbr.rel (0) target = $region29
  $region28: #{_lambda_.3} parent=0 // pred_region
    _
  $region29: #{_lambda_.3} parent=0 // pred_fallthru
    _
  %vm27 = vcmask 125952
  %28 = vst.msk [vmem:[#allocation2] sm:$0xf] %vm27, 0
  %vm29 = vcmask 122880
  %30 = vst.msk [vmem:[#allocation2 + $0x4] sm:$0x1] %vm29, 0
  %31 = vst.msk [vmem:[#allocation2 + $0x8] sm:$0xf] %vm27, 0
  %32 = vst.msk [vmem:[#allocation2 + $0xc] sm:$0x1] %vm29, 0
  %33 = vst.msk [vmem:[#allocation2 + $0x10] sm:$0xf] %vm27, 0
  %34 = vst.msk [vmem:[#allocation2 + $0x14] sm:$0x1] %vm29, 0
  %35 = vst.msk [vmem:[#allocation2 + $0x18] sm:$0xf] %vm27, 0
  %36 = vst.msk [vmem:[#allocation2 + $0x1c] sm:$0x1] %vm29, 0
  %37 = vst.msk [vmem:[#allocation2 + $0x20] sm:$0xf] %vm27, 0
  %38 = vst.msk [vmem:[#allocation2 + $0x24] sm:$0x1] %vm29, 0
  %39 = vst.msk [vmem:[#allocation2 + $0x28] sm:$0xf] %vm27, 0
  %40 = vst.msk [vmem:[#allocation2 + $0x2c] sm:$0x1] %vm29, 0
  %41 = vst.msk [vmem:[#allocation2 + $0x30] sm:$0xf] %vm27, 0
  %42 = vst.msk [vmem:[#allocation2 + $0x34] sm:$0x1] %vm29, 0
  %43 = vst.msk [vmem:[#allocation2 + $0x38] sm:$0xf] %vm27, 0
  %44 = vst.msk [vmem:[#allocation2 + $0x3c] sm:$0x1] %vm29, 0
  %45 = vst.msk [vmem:[#allocation2 + $0x40] sm:$0xf] %vm27, 0
  %46 = vst.msk [vmem:[#allocation2 + $0x44] sm:$0x1] %vm29, 0
  %47 = vst.msk [vmem:[#allocation2 + $0x48] sm:$0xf] %vm27, 0
  %48 = vst.msk [vmem:[#allocation2 + $0x4c] sm:$0x1] %vm29, 0
  %49 = vst.msk [vmem:[#allocation2 + $0x50] sm:$0xf] %vm27, 0
  %50 = vst.msk [vmem:[#allocation2 + $0x54] sm:$0x1] %vm29, 0
  %51 = vst.msk [vmem:[#allocation2 + $0x58] sm:$0xf] %vm27, 0
  %52 = vst.msk [vmem:[#allocation2 + $0x5c] sm:$0x1] %vm29, 0
  %53 = vst.msk [vmem:[#allocation2 + $0x60] sm:$0xf] %vm27, 0
  %54 = vst.msk [vmem:[#allocation2 + $0x64] sm:$0x1] %vm29, 0
  %55 = vst.msk [vmem:[#allocation2 + $0x68] sm:$0xf] %vm27, 0
  %56 = vst.msk [vmem:[#allocation2 + $0x6c] sm:$0x1] %vm29, 0
  %57 = vst.msk [vmem:[#allocation2 + $0x70] sm:$0xf] %vm27, 0
  %58 = vst.msk [vmem:[#allocation2 + $0x74] sm:$0x1] %vm29, 0
  %59 = vst.msk [vmem:[#allocation2 + $0x78] sm:$0xf] %vm27, 0
  %60 = vst.msk [vmem:[#allocation2 + $0x7c] sm:$0x1] %vm29, 0
  %61 = vst.msk [vmem:[#allocation2 + $0x80] sm:$0xf] %vm27, 0
  %62 = vst.msk [vmem:[#allocation2 + $0x84] sm:$0x1] %vm29, 0
  %63 = vst.msk [vmem:[#allocation2 + $0x88] sm:$0xf] %vm27, 0
  %64 = vst.msk [vmem:[#allocation2 + $0x8c] sm:$0x1] %vm29, 0
  %65 = vst.msk [vmem:[#allocation2 + $0x90] sm:$0xf] %vm27, 0
  %66 = vst.msk [vmem:[#allocation2 + $0x94] sm:$0x1] %vm29, 0
  %67 = vst.msk [vmem:[#allocation2 + $0x98] sm:$0xf] %vm27, 0
  %68 = vst.msk [vmem:[#allocation2 + $0x9c] sm:$0x1] %vm29, 0
  %v69 = vld [vmem:[%s0] sm:$0xf]
  %v70 = vld [vmem:[%s0 + $0x4] sm:$0xf]
  %v71 = vld [vmem:[%s0 + $0x8] sm:$0xf]
  %v72 = vld [vmem:[%s0 + $0xc] sm:$0xf]
  %v73 = vld [vmem:[%s0 + $0x10] sm:$0xf]
  %v74 = vld [vmem:[%s0 + $0x14] sm:$0xf]
  %v75 = vld [vmem:[%s0 + $0x18] sm:$0xf]
  %v76 = vld [vmem:[%s0 + $0x1c] sm:$0xf]
  %v77 = vld [vmem:[%s0 + $0x20] sm:$0xf]
  %v78 = vld [vmem:[%s0 + $0x24] sm:$0xf]
  %v79 = vld [vmem:[%s0 + $0x28] sm:$0xf]
  %v80 = vld [vmem:[%s0 + $0x2c] sm:$0xf]
  %v81 = vld [vmem:[%s0 + $0x30] sm:$0xf]
  %v82 = vld [vmem:[%s0 + $0x34] sm:$0xf]
  %v83 = vld [vmem:[%s0 + $0x38] sm:$0xf]
  %v84 = vld [vmem:[%s0 + $0x3c] sm:$0xf]
  %v85 = vld [vmem:[%s1] sm:$0xf]
  %v86 = vld [vmem:[%s1 + $0x4] sm:$0xf]
  %v87 = vld [vmem:[%s1 + $0x8] sm:$0xf]
  %v88 = vld [vmem:[%s1 + $0xc] sm:$0xf]
  %v89 = vld [vmem:[%s1 + $0x10] sm:$0xf]
  %v90 = vld [vmem:[%s1 + $0x14] sm:$0xf]
  %v91 = vld [vmem:[%s1 + $0x18] sm:$0xf]
  %v92 = vld [vmem:[%s1 + $0x1c] sm:$0xf]
  %v93 = vld [vmem:[%s2] sm:$0x1]
  %v95 = vlaneseq
  %v96 = vshrl.u32 %v95, 7
  %v97 = vsub.s32 0, %v96
  %v98 = vrot.slane %v93, %v97
  %v116 = vunpack.c.l.b16 %v69
  %v117 = vunpack.c.l.b16 %v70
  %v118 = vunpack.c.l.b16 %v71
  %v119 = vunpack.c.l.b16 %v72
  %v120 = vunpack.c.l.b16 %v73
  %v121 = vunpack.c.l.b16 %v74
  %v122 = vunpack.c.l.b16 %v75
  %v123 = vunpack.c.l.b16 %v76
  %v124 = vunpack.c.l.b16 %v77
  %v125 = vunpack.c.l.b16 %v78
  %v126 = vunpack.c.l.b16 %v79
  %v127 = vunpack.c.l.b16 %v80
  %v128 = vunpack.c.l.b16 %v81
  %v129 = vunpack.c.l.b16 %v82
  %v130 = vunpack.c.l.b16 %v83
  %v131 = vunpack.c.l.b16 %v84
  %v132 = vpack.c.b16 %v117, %v116
  %v133 = vpack.c.b16 %v119, %v118
  %v134 = vpack.c.b16 %v121, %v120
  %v135 = vpack.c.b16 %v123, %v122
  %v136 = vpack.c.b16 %v125, %v124
  %v137 = vpack.c.b16 %v127, %v126
  %v138 = vpack.c.b16 %v129, %v128
  %v139 = vpack.c.b16 %v131, %v130
  %v148 = vunpack.c.l.b16 %v85
  %v149 = vunpack.c.l.b16 %v86
  %v150 = vunpack.c.l.b16 %v87
  %v151 = vunpack.c.l.b16 %v88
  %v152 = vunpack.c.l.b16 %v89
  %v153 = vunpack.c.l.b16 %v90
  %v154 = vunpack.c.l.b16 %v91
  %v155 = vunpack.c.l.b16 %v92
  %v156 = vpack.c.b16 %v149, %v148
  %v157 = vpack.c.b16 %v151, %v150
  %v158 = vpack.c.b16 %v153, %v152
  %v159 = vpack.c.b16 %v155, %v154
  %vm164 = vcmask 523264
  %v166 = vsel %vm164, %v132, 0
  %v169 = vsel %vm164, %v133, 0
  %v172 = vsel %vm164, %v134, 0
  %v175 = vsel %vm164, %v135, 0
  %v178 = vsel %vm164, %v136, 0
  %v181 = vsel %vm164, %v137, 0
  %v184 = vsel %vm164, %v138, 0
  %v187 = vsel %vm164, %v139, 0
  %189 = vmatprep.subr.bf16.mxu0 0
  %190 = vmatpush1.bf16.msra.mxu0 %v156
  %191 = vmatprep.subr.bf16.mxu0 0
  %192 = vmatpush1.bf16.msra.mxu0 %v157
  %193 = vmatprep.subr.bf16.mxu0 0
  %194 = vmatpush1.bf16.msra.mxu0 %v158
  %195 = vmatprep.subr.bf16.mxu0 0
  %196 = vmatpush1.bf16.msra.mxu0 %v159
  %197 = vmatprep.subr.bf16.mxu0 0
  %198 = vmatpush1.bf16.msra.mxu0 0
  %199 = vmatprep.subr.bf16.mxu0 0
  %200 = vmatpush1.bf16.msra.mxu0 0
  %201 = vmatprep.subr.bf16.mxu0 0
  %202 = vmatpush1.bf16.msra.mxu0 0
  %203 = vmatprep.subr.bf16.mxu0 0
  %204 = vmatpush1.bf16.msra.mxu0 0
  %205 = vmatprep.subr.bf16.mxu0 0
  %206 = vmatpush1.bf16.msra.mxu0 0
  %207 = vmatprep.subr.bf16.mxu0 0
  %208 = vmatpush1.bf16.msra.mxu0 0
  %209 = vmatprep.subr.bf16.mxu0 0
  %210 = vmatpush1.bf16.msra.mxu0 0
  %211 = vmatprep.subr.bf16.mxu0 0
  %212 = vmatpush1.bf16.msra.mxu0 0
  %213 = vmatprep.subr.bf16.mxu0 0
  %214 = vmatpush1.bf16.msra.mxu0 0
  %215 = vmatprep.subr.bf16.mxu0 0
  %216 = vmatpush1.bf16.msra.mxu0 0
  %217 = vmatprep.subr.bf16.mxu0 0
  %218 = vmatpush1.bf16.msra.mxu0 0
  %219 = vmatprep.subr.bf16.mxu0 0
  %220 = vmatpush1.bf16.msra.mxu0 0
  %221 = vmatprep.mubr.bf16.mxu0 0
  %222 = vmatmul.mubr.bf16.gmra.mrb[0].mxu0 %v166
  %v223 = vpop.f32.mrb[0].mxu0
  %v224 = vadd.f32 %v98, %v223
  %v225 = vpop.f32.mrb[0].mxu0
  %v226 = vpop.f32.mrb[0].mxu0
  %v227 = vadd.f32 %v98, %v226
  %v228 = vpop.f32.mrb[0].mxu0
  %229 = vmatprep.mubr.bf16.mxu0 0
  %230 = vmatmul.mubr.bf16.gmra.mrb[0].mxu0 %v169
  %v231 = vpop.f32.mrb[0].mxu0
  %v232 = vadd.f32 %v98, %v231
  %v233 = vpop.f32.mrb[0].mxu0
  %v234 = vpop.f32.mrb[0].mxu0
  %v235 = vadd.f32 %v98, %v234
  %v236 = vpop.f32.mrb[0].mxu0
  %237 = vmatprep.mubr.bf16.mxu0 0
  %238 = vmatmul.mubr.bf16.gmra.mrb[0].mxu0 %v172
  %v239 = vpop.f32.mrb[0].mxu0
  %v240 = vadd.f32 %v98, %v239
  %v241 = vpop.f32.mrb[0].mxu0
  %v242 = vpop.f32.mrb[0].mxu0
  %v243 = vadd.f32 %v98, %v242
  %v244 = vpop.f32.mrb[0].mxu0
  %245 = vmatprep.mubr.bf16.mxu0 0
  %246 = vmatmul.mubr.bf16.gmra.mrb[0].mxu0 %v175
  %v247 = vpop.f32.mrb[0].mxu0
  %v248 = vadd.f32 %v98, %v247
  %v249 = vpop.f32.mrb[0].mxu0
  %v250 = vpop.f32.mrb[0].mxu0
  %v251 = vadd.f32 %v98, %v250
  %v252 = vpop.f32.mrb[0].mxu0
  %253 = vmatprep.mubr.bf16.mxu0 0
  %254 = vmatmul.mubr.bf16.gmra.mrb[0].mxu0 %v178
  %v255 = vpop.f32.mrb[0].mxu0
  %v256 = vadd.f32 %v98, %v255
  %v257 = vpop.f32.mrb[0].mxu0
  %v258 = vpop.f32.mrb[0].mxu0
  %v259 = vadd.f32 %v98, %v258
  %v260 = vpop.f32.mrb[0].mxu0
  %261 = vmatprep.mubr.bf16.mxu0 0
  %262 = vmatmul.mubr.bf16.gmra.mrb[0].mxu0 %v181
  %v263 = vpop.f32.mrb[0].mxu0
  %v264 = vadd.f32 %v98, %v263
  %v265 = vpop.f32.mrb[0].mxu0
  %v266 = vpop.f32.mrb[0].mxu0
  %v267 = vadd.f32 %v98, %v266
  %v268 = vpop.f32.mrb[0].mxu0
  %269 = vmatprep.mubr.bf16.mxu0 0
  %270 = vmatmul.mubr.bf16.gmra.mrb[0].mxu0 %v184
  %v271 = vpop.f32.mrb[0].mxu0
  %v272 = vadd.f32 %v98, %v271
  %v273 = vpop.f32.mrb[0].mxu0
  %v274 = vpop.f32.mrb[0].mxu0
  %v275 = vadd.f32 %v98, %v274
  %v276 = vpop.f32.mrb[0].mxu0
  %277 = vmatprep.mubr.bf16.mxu0 0
  %278 = vmatmul.mubr.bf16.gmra.mrb[0].mxu0 %v187
  %v279 = vpop.f32.mrb[0].mxu0
  %v280 = vadd.f32 %v98, %v279
  %v281 = vpop.f32.mrb[0].mxu0
  %v282 = vpop.f32.mrb[0].mxu0
  %v283 = vadd.f32 %v98, %v282
  %v284 = vpop.f32.mrb[0].mxu0
  %285 = vdwg.mxu0
  %v286 = vmax.f32 %v224, 0.0
  %v287 = vmax.f32 %v227, 0.0
  %v288 = vmax.f32 %v232, 0.0
  %v289 = vmax.f32 %v235, 0.0
  %v290 = vmax.f32 %v240, 0.0
  %v291 = vmax.f32 %v243, 0.0
  %v292 = vmax.f32 %v248, 0.0
  %v293 = vmax.f32 %v251, 0.0
  %v294 = vmax.f32 %v256, 0.0
  %v295 = vmax.f32 %v259, 0.0
  %v296 = vmax.f32 %v264, 0.0
  %v297 = vmax.f32 %v267, 0.0
  %v298 = vmax.f32 %v272, 0.0
  %v299 = vmax.f32 %v275, 0.0
  %v300 = vmax.f32 %v280, 0.0
  %v301 = vmax.f32 %v283, 0.0
  %v302 = vpack.c.bf16 %v286, %v286
  %v303 = vpack.c.bf16 %v287, %v287
  %v304 = vpack.c.bf16 %v288, %v288
  %v305 = vpack.c.bf16 %v289, %v289
  %v306 = vpack.c.bf16 %v290, %v290
  %v307 = vpack.c.bf16 %v291, %v291
  %v308 = vpack.c.bf16 %v292, %v292
  %v309 = vpack.c.bf16 %v293, %v293
  %v310 = vpack.c.bf16 %v294, %v294
  %v311 = vpack.c.bf16 %v295, %v295
  %v312 = vpack.c.bf16 %v296, %v296
  %v313 = vpack.c.bf16 %v297, %v297
  %v314 = vpack.c.bf16 %v298, %v298
  %v315 = vpack.c.bf16 %v299, %v299
  %v316 = vpack.c.bf16 %v300, %v300
  %v317 = vpack.c.bf16 %v301, %v301
  %v334 = vunpack.c.l.b16 %v302
  %v335 = vunpack.c.l.b16 %v303
  %v336 = vunpack.c.l.b16 %v304
  %v337 = vunpack.c.l.b16 %v305
  %v338 = vunpack.c.l.b16 %v306
  %v339 = vunpack.c.l.b16 %v307
  %v340 = vunpack.c.l.b16 %v308
  %v341 = vunpack.c.l.b16 %v309
  %v342 = vunpack.c.l.b16 %v310
  %v343 = vunpack.c.l.b16 %v311
  %v344 = vunpack.c.l.b16 %v312
  %v345 = vunpack.c.l.b16 %v313
  %v346 = vunpack.c.l.b16 %v314
  %v347 = vunpack.c.l.b16 %v315
  %v348 = vunpack.c.l.b16 %v316
  %v349 = vunpack.c.l.b16 %v317
  %v350 = vpack.c.b16 %v334, %v334
  %v351 = vpack.c.b16 %v335, %v335
  %v352 = vpack.c.b16 %v336, %v336
  %v353 = vpack.c.b16 %v337, %v337
  %v354 = vpack.c.b16 %v338, %v338
  %v355 = vpack.c.b16 %v339, %v339
  %v356 = vpack.c.b16 %v340, %v340
  %v357 = vpack.c.b16 %v341, %v341
  %v358 = vpack.c.b16 %v342, %v342
  %v359 = vpack.c.b16 %v343, %v343
  %v360 = vpack.c.b16 %v344, %v344
  %v361 = vpack.c.b16 %v345, %v345
  %v362 = vpack.c.b16 %v346, %v346
  %v363 = vpack.c.b16 %v347, %v347
  %v364 = vpack.c.b16 %v348, %v348
  %v365 = vpack.c.b16 %v349, %v349
  %v367 = vshrl.u32 %v350, 16
  %v369 = vrot.slane %v367, 7
  %v370 = vshll.u32 %v350, 16
  %v372 = vor.u32 %v369, %v370
  %v373 = vrot.slane %v369, 4
  %v375 = vshrl.u32 %v351, 16
  %v377 = vrot.slane %v375, 7
  %v378 = vshll.u32 %v351, 16
  %v380 = vor.u32 %v377, %v378
  %v381 = vrot.slane %v377, 4
  %v383 = vshrl.u32 %v352, 16
  %v385 = vrot.slane %v383, 7
  %v386 = vshll.u32 %v352, 16
  %v388 = vor.u32 %v385, %v386
  %v389 = vrot.slane %v385, 4
  %v391 = vshrl.u32 %v353, 16
  %v393 = vrot.slane %v391, 7
  %v394 = vshll.u32 %v353, 16
  %v396 = vor.u32 %v393, %v394
  %v397 = vrot.slane %v393, 4
  %v399 = vshrl.u32 %v354, 16
  %v401 = vrot.slane %v399, 7
  %v402 = vshll.u32 %v354, 16
  %v404 = vor.u32 %v401, %v402
  %v405 = vrot.slane %v401, 4
  %v407 = vshrl.u32 %v355, 16
  %v409 = vrot.slane %v407, 7
  %v410 = vshll.u32 %v355, 16
  %v412 = vor.u32 %v409, %v410
  %v413 = vrot.slane %v409, 4
  %v415 = vshrl.u32 %v356, 16
  %v417 = vrot.slane %v415, 7
  %v418 = vshll.u32 %v356, 16
  %v420 = vor.u32 %v417, %v418
  %v421 = vrot.slane %v417, 4
  %v423 = vshrl.u32 %v357, 16
  %v425 = vrot.slane %v423, 7
  %v426 = vshll.u32 %v357, 16
  %v428 = vor.u32 %v425, %v426
  %v429 = vrot.slane %v425, 4
  %v431 = vshrl.u32 %v358, 16
  %v433 = vrot.slane %v431, 7
  %v434 = vshll.u32 %v358, 16
  %v436 = vor.u32 %v433, %v434
  %v437 = vrot.slane %v433, 4
  %v439 = vshrl.u32 %v359, 16
  %v441 = vrot.slane %v439, 7
  %v442 = vshll.u32 %v359, 16
  %v444 = vor.u32 %v441, %v442
  %v445 = vrot.slane %v441, 4
  %v447 = vshrl.u32 %v360, 16
  %v449 = vrot.slane %v447, 7
  %v450 = vshll.u32 %v360, 16
  %v452 = vor.u32 %v449, %v450
  %v453 = vrot.slane %v449, 4
  %v455 = vshrl.u32 %v361, 16
  %v457 = vrot.slane %v455, 7
  %v458 = vshll.u32 %v361, 16
  %v460 = vor.u32 %v457, %v458
  %v461 = vrot.slane %v457, 4
  %v463 = vshrl.u32 %v362, 16
  %v465 = vrot.slane %v463, 7
  %v466 = vshll.u32 %v362, 16
  %v468 = vor.u32 %v465, %v466
  %v469 = vrot.slane %v465, 4
  %v471 = vshrl.u32 %v363, 16
  %v473 = vrot.slane %v471, 7
  %v474 = vshll.u32 %v363, 16
  %v476 = vor.u32 %v473, %v474
  %v477 = vrot.slane %v473, 4
  %v479 = vshrl.u32 %v364, 16
  %v481 = vrot.slane %v479, 7
  %v482 = vshll.u32 %v364, 16
  %v484 = vor.u32 %v481, %v482
  %v485 = vrot.slane %v481, 4
  %v487 = vshrl.u32 %v365, 16
  %v489 = vrot.slane %v487, 7
  %v490 = vshll.u32 %v365, 16
  %v492 = vor.u32 %v489, %v490
  %v493 = vrot.slane %v489, 4
  %s526 = scalar_lea.vmem [#allocation2], 8
  %vm527 = vcmask 125952
  %vm528 = vsmask.f32 7938
  %vm529 = vmand %vm527, %vm528
  %v530 = vld [vmem:[%s526] sm:$0xf]
  %v531 = vsel %vm529, %v372, %v530
  %532 = vst [vmem:[%s526] sm:$0xf] %v531
  %vm533 = vcmask 122880
  %vm534 = vsmask.f32 256
  %vm535 = vmand %vm533, %vm534
  %v536 = vld [vmem:[%s526 + $0x4] sm:$0x1]
  %v537 = vsel %vm535, %v373, %v536
  %538 = vst [vmem:[%s526 + $0x4] sm:$0x1] %v537
  %v539 = vld [vmem:[%s526 + $0x8] sm:$0xf]
  %v540 = vsel %vm529, %v380, %v539
  %541 = vst [vmem:[%s526 + $0x8] sm:$0xf] %v540
  %v542 = vld [vmem:[%s526 + $0xc] sm:$0x1]
  %v543 = vsel %vm535, %v381, %v542
  %544 = vst [vmem:[%s526 + $0xc] sm:$0x1] %v543
  %v545 = vld [vmem:[%s526 + $0x10] sm:$0xf]
  %v546 = vsel %vm529, %v388, %v545
  %547 = vst [vmem:[%s526 + $0x10] sm:$0xf] %v546
  %v548 = vld [vmem:[%s526 + $0x14] sm:$0x1]
  %v549 = vsel %vm535, %v389, %v548
  %550 = vst [vmem:[%s526 + $0x14] sm:$0x1] %v549
  %v551 = vld [vmem:[%s526 + $0x18] sm:$0xf]
  %v552 = vsel %vm529, %v396, %v551
  %553 = vst [vmem:[%s526 + $0x18] sm:$0xf] %v552
  %v554 = vld [vmem:[%s526 + $0x1c] sm:$0x1]
  %v555 = vsel %vm535, %v397, %v554
  %556 = vst [vmem:[%s526 + $0x1c] sm:$0x1] %v555
  %v557 = vld [vmem:[%s526 + $0x20] sm:$0xf]
  %v558 = vsel %vm529, %v404, %v557
  %559 = vst [vmem:[%s526 + $0x20] sm:$0xf] %v558
  %v560 = vld [vmem:[%s526 + $0x24] sm:$0x1]
  %v561 = vsel %vm535, %v405, %v560
  %562 = vst [vmem:[%s526 + $0x24] sm:$0x1] %v561
  %v563 = vld [vmem:[%s526 + $0x28] sm:$0xf]
  %v564 = vsel %vm529, %v412, %v563
  %565 = vst [vmem:[%s526 + $0x28] sm:$0xf] %v564
  %v566 = vld [vmem:[%s526 + $0x2c] sm:$0x1]
  %v567 = vsel %vm535, %v413, %v566
  %568 = vst [vmem:[%s526 + $0x2c] sm:$0x1] %v567
  %v569 = vld [vmem:[%s526 + $0x30] sm:$0xf]
  %v570 = vsel %vm529, %v420, %v569
  %571 = vst [vmem:[%s526 + $0x30] sm:$0xf] %v570
  %v572 = vld [vmem:[%s526 + $0x34] sm:$0x1]
  %v573 = vsel %vm535, %v421, %v572
  %574 = vst [vmem:[%s526 + $0x34] sm:$0x1] %v573
  %v575 = vld [vmem:[%s526 + $0x38] sm:$0xf]
  %v576 = vsel %vm529, %v428, %v575
  %577 = vst [vmem:[%s526 + $0x38] sm:$0xf] %v576
  %v578 = vld [vmem:[%s526 + $0x3c] sm:$0x1]
  %v579 = vsel %vm535, %v429, %v578
  %580 = vst [vmem:[%s526 + $0x3c] sm:$0x1] %v579
  %v581 = vld [vmem:[%s526 + $0x50] sm:$0xf]
  %v582 = vsel %vm529, %v436, %v581
  %583 = vst [vmem:[%s526 + $0x50] sm:$0xf] %v582
  %v584 = vld [vmem:[%s526 + $0x54] sm:$0x1]
  %v585 = vsel %vm535, %v437, %v584
  %586 = vst [vmem:[%s526 + $0x54] sm:$0x1] %v585
  %v587 = vld [vmem:[%s526 + $0x58] sm:$0xf]
  %v588 = vsel %vm529, %v444, %v587
  %589 = vst [vmem:[%s526 + $0x58] sm:$0xf] %v588
  %v590 = vld [vmem:[%s526 + $0x5c] sm:$0x1]
  %v591 = vsel %vm535, %v445, %v590
  %592 = vst [vmem:[%s526 + $0x5c] sm:$0x1] %v591
  %v593 = vld [vmem:[%s526 + $0x60] sm:$0xf]
  %v594 = vsel %vm529, %v452, %v593
  %595 = vst [vmem:[%s526 + $0x60] sm:$0xf] %v594
  %v596 = vld [vmem:[%s526 + $0x64] sm:$0x1]
  %v597 = vsel %vm535, %v453, %v596
  %598 = vst [vmem:[%s526 + $0x64] sm:$0x1] %v597
  %v599 = vld [vmem:[%s526 + $0x68] sm:$0xf]
  %v600 = vsel %vm529, %v460, %v599
  %601 = vst [vmem:[%s526 + $0x68] sm:$0xf] %v600
  %v602 = vld [vmem:[%s526 + $0x6c] sm:$0x1]
  %v603 = vsel %vm535, %v461, %v602
  %604 = vst [vmem:[%s526 + $0x6c] sm:$0x1] %v603
  %v605 = vld [vmem:[%s526 + $0x70] sm:$0xf]
  %v606 = vsel %vm529, %v468, %v605
  %607 = vst [vmem:[%s526 + $0x70] sm:$0xf] %v606
  %v608 = vld [vmem:[%s526 + $0x74] sm:$0x1]
  %v609 = vsel %vm535, %v469, %v608
  %610 = vst [vmem:[%s526 + $0x74] sm:$0x1] %v609
  %v611 = vld [vmem:[%s526 + $0x78] sm:$0xf]
  %v612 = vsel %vm529, %v476, %v611
  %613 = vst [vmem:[%s526 + $0x78] sm:$0xf] %v612
  %v614 = vld [vmem:[%s526 + $0x7c] sm:$0x1]
  %v615 = vsel %vm535, %v477, %v614
  %616 = vst [vmem:[%s526 + $0x7c] sm:$0x1] %v615
  %v617 = vld [vmem:[%s526 + $0x80] sm:$0xf]
  %v618 = vsel %vm529, %v484, %v617
  %619 = vst [vmem:[%s526 + $0x80] sm:$0xf] %v618
  %v620 = vld [vmem:[%s526 + $0x84] sm:$0x1]
  %v621 = vsel %vm535, %v485, %v620
  %622 = vst [vmem:[%s526 + $0x84] sm:$0x1] %v621
  %v623 = vld [vmem:[%s526 + $0x88] sm:$0xf]
  %v624 = vsel %vm529, %v492, %v623
  %625 = vst [vmem:[%s526 + $0x88] sm:$0xf] %v624
  %v626 = vld [vmem:[%s526 + $0x8c] sm:$0x1]
  %v627 = vsel %vm535, %v493, %v626
  %628 = vst [vmem:[%s526 + $0x8c] sm:$0x1] %v627
  %v629 = vld [vmem:[#allocation2] sm:$0xf]
  %v630 = vld [vmem:[#allocation2 + $0x8] sm:$0xf]
  %v631 = vld [vmem:[#allocation2 + $0x10] sm:$0xf]
  %v632 = vld [vmem:[#allocation2 + $0x18] sm:$0xf]
  %v633 = vld [vmem:[#allocation2 + $0x20] sm:$0xf]
  %v634 = vld [vmem:[#allocation2 + $0x28] sm:$0xf]
  %v635 = vld [vmem:[#allocation2 + $0x30] sm:$0xf]
  %v636 = vld [vmem:[#allocation2 + $0x38] sm:$0xf]
  %v637 = vld [vmem:[#allocation2 + $0x50] sm:$0xf]
  %v638 = vld [vmem:[#allocation2 + $0x58] sm:$0xf]
  %v639 = vld [vmem:[#allocation2 + $0x60] sm:$0xf]
  %v640 = vld [vmem:[#allocation2 + $0x68] sm:$0xf]
  %v641 = vld [vmem:[#allocation2 + $0x70] sm:$0xf]
  %v642 = vld [vmem:[#allocation2 + $0x78] sm:$0xf]
  %v643 = vld [vmem:[#allocation2 + $0x80] sm:$0xf]
  %v644 = vld [vmem:[#allocation2 + $0x88] sm:$0xf]
  %v645 = vld [vmem:[#allocation2 + $0x4] sm:$0x1]
  %v646 = vld [vmem:[#allocation2 + $0xc] sm:$0x1]
  %v647 = vld [vmem:[#allocation2 + $0x14] sm:$0x1]
  %v648 = vld [vmem:[#allocation2 + $0x1c] sm:$0x1]
  %v649 = vld [vmem:[#allocation2 + $0x24] sm:$0x1]
  %v650 = vld [vmem:[#allocation2 + $0x2c] sm:$0x1]
  %v651 = vld [vmem:[#allocation2 + $0x34] sm:$0x1]
  %v652 = vld [vmem:[#allocation2 + $0x3c] sm:$0x1]
  %v653 = vld [vmem:[#allocation2 + $0x54] sm:$0x1]
  %v654 = vld [vmem:[#allocation2 + $0x5c] sm:$0x1]
  %v655 = vld [vmem:[#allocation2 + $0x64] sm:$0x1]
  %v656 = vld [vmem:[#allocation2 + $0x6c] sm:$0x1]
  %v657 = vld [vmem:[#allocation2 + $0x74] sm:$0x1]
  %v658 = vld [vmem:[#allocation2 + $0x7c] sm:$0x1]
  %v659 = vld [vmem:[#allocation2 + $0x84] sm:$0x1]
  %v660 = vld [vmem:[#allocation2 + $0x8c] sm:$0x1]
  %vm661 = vsmask.f32 3328
  %vm662 = vsmask.f32 7440
  %vm663 = vmor %vm661, %vm662
  %v665 = vshrl.u32 %v629, 16
  %v667 = vrot.slane %v665, 4
  %v668 = vshll.u32 %v629, 16
  %v670 = vrot.slane %v668, 5
  %v671 = vor.u32 %v667, %v670
  %v672 = vrot.slane %v671, 4
  %v674 = vshll.u32 %v645, 16
  %v676 = vrot.slane %v674, 5
  %v677 = vsel %vm663, %v672, %v676
  %v679 = vshrl.u32 %v630, 16
  %v681 = vrot.slane %v679, 4
  %v682 = vshll.u32 %v630, 16
  %v684 = vrot.slane %v682, 5
  %v685 = vor.u32 %v681, %v684
  %v686 = vrot.slane %v685, 4
  %v688 = vshll.u32 %v646, 16
  %v690 = vrot.slane %v688, 5
  %v691 = vsel %vm663, %v686, %v690
  %v693 = vshrl.u32 %v631, 16
  %v695 = vrot.slane %v693, 4
  %v696 = vshll.u32 %v631, 16
  %v698 = vrot.slane %v696, 5
  %v699 = vor.u32 %v695, %v698
  %v700 = vrot.slane %v699, 4
  %v702 = vshll.u32 %v647, 16
  %v704 = vrot.slane %v702, 5
  %v705 = vsel %vm663, %v700, %v704
  %v707 = vshrl.u32 %v632, 16
  %v709 = vrot.slane %v707, 4
  %v710 = vshll.u32 %v632, 16
  %v712 = vrot.slane %v710, 5
  %v713 = vor.u32 %v709, %v712
  %v714 = vrot.slane %v713, 4
  %v716 = vshll.u32 %v648, 16
  %v718 = vrot.slane %v716, 5
  %v719 = vsel %vm663, %v714, %v718
  %v721 = vshrl.u32 %v633, 16
  %v723 = vrot.slane %v721, 4
  %v724 = vshll.u32 %v633, 16
  %v726 = vrot.slane %v724, 5
  %v727 = vor.u32 %v723, %v726
  %v728 = vrot.slane %v727, 4
  %v730 = vshll.u32 %v649, 16
  %v732 = vrot.slane %v730, 5
  %v733 = vsel %vm663, %v728, %v732
  %v735 = vshrl.u32 %v634, 16
  %v737 = vrot.slane %v735, 4
  %v738 = vshll.u32 %v634, 16
  %v740 = vrot.slane %v738, 5
  %v741 = vor.u32 %v737, %v740
  %v742 = vrot.slane %v741, 4
  %v744 = vshll.u32 %v650, 16
  %v746 = vrot.slane %v744, 5
  %v747 = vsel %vm663, %v742, %v746
  %v749 = vshrl.u32 %v635, 16
  %v751 = vrot.slane %v749, 4
  %v752 = vshll.u32 %v635, 16
  %v754 = vrot.slane %v752, 5
  %v755 = vor.u32 %v751, %v754
  %v756 = vrot.slane %v755, 4
  %v758 = vshll.u32 %v651, 16
  %v760 = vrot.slane %v758, 5
  %v761 = vsel %vm663, %v756, %v760
  %v763 = vshrl.u32 %v636, 16
  %v765 = vrot.slane %v763, 4
  %v766 = vshll.u32 %v636, 16
  %v768 = vrot.slane %v766, 5
  %v769 = vor.u32 %v765, %v768
  %v770 = vrot.slane %v769, 4
  %v772 = vshll.u32 %v652, 16
  %v774 = vrot.slane %v772, 5
  %v775 = vsel %vm663, %v770, %v774
  %v777 = vshrl.u32 %v637, 16
  %v779 = vrot.slane %v777, 4
  %v780 = vshll.u32 %v637, 16
  %v782 = vrot.slane %v780, 5
  %v783 = vor.u32 %v779, %v782
  %v784 = vrot.slane %v783, 4
  %v786 = vshll.u32 %v653, 16
  %v788 = vrot.slane %v786, 5
  %v789 = vsel %vm663, %v784, %v788
  %v791 = vshrl.u32 %v638, 16
  %v793 = vrot.slane %v791, 4
  %v794 = vshll.u32 %v638, 16
  %v796 = vrot.slane %v794, 5
  %v797 = vor.u32 %v793, %v796
  %v798 = vrot.slane %v797, 4
  %v800 = vshll.u32 %v654, 16
  %v802 = vrot.slane %v800, 5
  %v803 = vsel %vm663, %v798, %v802
  %v805 = vshrl.u32 %v639, 16
  %v807 = vrot.slane %v805, 4
  %v808 = vshll.u32 %v639, 16
  %v810 = vrot.slane %v808, 5
  %v811 = vor.u32 %v807, %v810
  %v812 = vrot.slane %v811, 4
  %v814 = vshll.u32 %v655, 16
  %v816 = vrot.slane %v814, 5
  %v817 = vsel %vm663, %v812, %v816
  %v819 = vshrl.u32 %v640, 16
  %v821 = vrot.slane %v819, 4
  %v822 = vshll.u32 %v640, 16
  %v824 = vrot.slane %v822, 5
  %v825 = vor.u32 %v821, %v824
  %v826 = vrot.slane %v825, 4
  %v828 = vshll.u32 %v656, 16
  %v830 = vrot.slane %v828, 5
  %v831 = vsel %vm663, %v826, %v830
  %v833 = vshrl.u32 %v641, 16
  %v835 = vrot.slane %v833, 4
  %v836 = vshll.u32 %v641, 16
  %v838 = vrot.slane %v836, 5
  %v839 = vor.u32 %v835, %v838
  %v840 = vrot.slane %v839, 4
  %v842 = vshll.u32 %v657, 16
  %v844 = vrot.slane %v842, 5
  %v845 = vsel %vm663, %v840, %v844
  %v847 = vshrl.u32 %v642, 16
  %v849 = vrot.slane %v847, 4
  %v850 = vshll.u32 %v642, 16
  %v852 = vrot.slane %v850, 5
  %v853 = vor.u32 %v849, %v852
  %v854 = vrot.slane %v853, 4
  %v856 = vshll.u32 %v658, 16
  %v858 = vrot.slane %v856, 5
  %v859 = vsel %vm663, %v854, %v858
  %v861 = vshrl.u32 %v643, 16
  %v863 = vrot.slane %v861, 4
  %v864 = vshll.u32 %v643, 16
  %v866 = vrot.slane %v864, 5
  %v867 = vor.u32 %v863, %v866
  %v868 = vrot.slane %v867, 4
  %v870 = vshll.u32 %v659, 16
  %v872 = vrot.slane %v870, 5
  %v873 = vsel %vm663, %v868, %v872
  %v875 = vshrl.u32 %v644, 16
  %v877 = vrot.slane %v875, 4
  %v878 = vshll.u32 %v644, 16
  %v880 = vrot.slane %v878, 5
  %v881 = vor.u32 %v877, %v880
  %v882 = vrot.slane %v881, 4
  %v884 = vshll.u32 %v660, 16
  %v886 = vrot.slane %v884, 5
  %v887 = vsel %vm663, %v882, %v886
  %v888 = vld [vmem:[#allocation2] sm:$0xe]
  %v889 = vld [vmem:[#allocation2 + $0x8] sm:$0xe]
  %v890 = vld [vmem:[#allocation2 + $0x10] sm:$0xe]
  %v891 = vld [vmem:[#allocation2 + $0x18] sm:$0xe]
  %v892 = vld [vmem:[#allocation2 + $0x20] sm:$0xe]
  %v893 = vld [vmem:[#allocation2 + $0x28] sm:$0xe]
  %v894 = vld [vmem:[#allocation2 + $0x30] sm:$0xe]
  %v895 = vld [vmem:[#allocation2 + $0x38] sm:$0xe]
  %v896 = vld [vmem:[#allocation2 + $0x50] sm:$0xe]
  %v897 = vld [vmem:[#allocation2 + $0x58] sm:$0xe]
  %v898 = vld [vmem:[#allocation2 + $0x60] sm:$0xe]
  %v899 = vld [vmem:[#allocation2 + $0x68] sm:$0xe]
  %v900 = vld [vmem:[#allocation2 + $0x70] sm:$0xe]
  %v901 = vld [vmem:[#allocation2 + $0x78] sm:$0xe]
  %v902 = vld [vmem:[#allocation2 + $0x80] sm:$0xe]
  %v903 = vld [vmem:[#allocation2 + $0x88] sm:$0xe]
  %vm936 = vcmask 1042432
  %vm937 = vcmask 1046532
  %vm938 = vmor %vm936, %vm937
  %v939 = vrot.slane %v888, 5
  %v940 = vrot.slane %v939, 4
  %v941 = vrot.slane %v645, 5
  %v942 = vsel %vm938, %v940, %v941
  %v943 = vrot.slane %v889, 5
  %v944 = vrot.slane %v943, 4
  %v945 = vrot.slane %v646, 5
  %v946 = vsel %vm938, %v944, %v945
  %v947 = vrot.slane %v890, 5
  %v948 = vrot.slane %v947, 4
  %v949 = vrot.slane %v647, 5
  %v950 = vsel %vm938, %v948, %v949
  %v951 = vrot.slane %v891, 5
  %v952 = vrot.slane %v951, 4
  %v953 = vrot.slane %v648, 5
  %v954 = vsel %vm938, %v952, %v953
  %v955 = vrot.slane %v892, 5
  %v956 = vrot.slane %v955, 4
  %v957 = vrot.slane %v649, 5
  %v958 = vsel %vm938, %v956, %v957
  %v959 = vrot.slane %v893, 5
  %v960 = vrot.slane %v959, 4
  %v961 = vrot.slane %v650, 5
  %v962 = vsel %vm938, %v960, %v961
  %v963 = vrot.slane %v894, 5
  %v964 = vrot.slane %v963, 4
  %v965 = vrot.slane %v651, 5
  %v966 = vsel %vm938, %v964, %v965
  %v967 = vrot.slane %v895, 5
  %v968 = vrot.slane %v967, 4
  %v969 = vrot.slane %v652, 5
  %v970 = vsel %vm938, %v968, %v969
  %v971 = vrot.slane %v896, 5
  %v972 = vrot.slane %v971, 4
  %v973 = vrot.slane %v653, 5
  %v974 = vsel %vm938, %v972, %v973
  %v975 = vrot.slane %v897, 5
  %v976 = vrot.slane %v975, 4
  %v977 = vrot.slane %v654, 5
  %v978 = vsel %vm938, %v976, %v977
  %v979 = vrot.slane %v898, 5
  %v980 = vrot.slane %v979, 4
  %v981 = vrot.slane %v655, 5
  %v982 = vsel %vm938, %v980, %v981
  %v983 = vrot.slane %v899, 5
  %v984 = vrot.slane %v983, 4
  %v985 = vrot.slane %v656, 5
  %v986 = vsel %vm938, %v984, %v985
  %v987 = vrot.slane %v900, 5
  %v988 = vrot.slane %v987, 4
  %v989 = vrot.slane %v657, 5
  %v990 = vsel %vm938, %v988, %v989
  %v991 = vrot.slane %v901, 5
  %v992 = vrot.slane %v991, 4
  %v993 = vrot.slane %v658, 5
  %v994 = vsel %vm938, %v992, %v993
  %v995 = vrot.slane %v902, 5
  %v996 = vrot.slane %v995, 4
  %v997 = vrot.slane %v659, 5
  %v998 = vsel %vm938, %v996, %v997
  %v999 = vrot.slane %v903, 5
  %v1000 = vrot.slane %v999, 4
  %v1001 = vrot.slane %v660, 5
  %v1002 = vsel %vm938, %v1000, %v1001
  %v1003 = vld [vmem:[%s526] sm:$0xf]
  %v1004 = vld [vmem:[%s526 + $0x8] sm:$0xf]
  %v1005 = vld [vmem:[%s526 + $0x10] sm:$0xf]
  %v1006 = vld [vmem:[%s526 + $0x18] sm:$0xf]
  %v1007 = vld [vmem:[%s526 + $0x20] sm:$0xf]
  %v1008 = vld [vmem:[%s526 + $0x28] sm:$0xf]
  %v1009 = vld [vmem:[%s526 + $0x30] sm:$0xf]
  %v1010 = vld [vmem:[%s526 + $0x38] sm:$0xf]
  %v1011 = vld [vmem:[%s526 + $0x50] sm:$0xf]
  %v1012 = vld [vmem:[%s526 + $0x58] sm:$0xf]
  %v1013 = vld [vmem:[%s526 + $0x60] sm:$0xf]
  %v1014 = vld [vmem:[%s526 + $0x68] sm:$0xf]
  %v1015 = vld [vmem:[%s526 + $0x70] sm:$0xf]
  %v1016 = vld [vmem:[%s526 + $0x78] sm:$0xf]
  %v1017 = vld [vmem:[%s526 + $0x80] sm:$0xf]
  %v1018 = vld [vmem:[%s526 + $0x88] sm:$0xf]
  %v1019 = vld [vmem:[%s526 + $0x4] sm:$0x1]
  %v1020 = vld [vmem:[%s526 + $0xc] sm:$0x1]
  %v1021 = vld [vmem:[%s526 + $0x14] sm:$0x1]
  %v1022 = vld [vmem:[%s526 + $0x1c] sm:$0x1]
  %v1023 = vld [vmem:[%s526 + $0x24] sm:$0x1]
  %v1024 = vld [vmem:[%s526 + $0x2c] sm:$0x1]
  %v1025 = vld [vmem:[%s526 + $0x34] sm:$0x1]
  %v1026 = vld [vmem:[%s526 + $0x3c] sm:$0x1]
  %v1027 = vld [vmem:[%s526 + $0x54] sm:$0x1]
  %v1028 = vld [vmem:[%s526 + $0x5c] sm:$0x1]
  %v1029 = vld [vmem:[%s526 + $0x64] sm:$0x1]
  %v1030 = vld [vmem:[%s526 + $0x6c] sm:$0x1]
  %v1031 = vld [vmem:[%s526 + $0x74] sm:$0x1]
  %v1032 = vld [vmem:[%s526 + $0x7c] sm:$0x1]
  %v1033 = vld [vmem:[%s526 + $0x84] sm:$0x1]
  %v1034 = vld [vmem:[%s526 + $0x8c] sm:$0x1]
  %v1036 = vshrl.u32 %v1003, 16
  %v1038 = vrot.slane %v1036, 4
  %v1039 = vshll.u32 %v1003, 16
  %v1041 = vrot.slane %v1039, 5
  %v1042 = vor.u32 %v1038, %v1041
  %v1043 = vrot.slane %v1042, 4
  %v1045 = vshll.u32 %v1019, 16
  %v1047 = vrot.slane %v1045, 5
  %v1048 = vsel %vm663, %v1043, %v1047
  %v1050 = vshrl.u32 %v1004, 16
  %v1052 = vrot.slane %v1050, 4
  %v1053 = vshll.u32 %v1004, 16
  %v1055 = vrot.slane %v1053, 5
  %v1056 = vor.u32 %v1052, %v1055
  %v1057 = vrot.slane %v1056, 4
  %v1059 = vshll.u32 %v1020, 16
  %v1061 = vrot.slane %v1059, 5
  %v1062 = vsel %vm663, %v1057, %v1061
  %v1064 = vshrl.u32 %v1005, 16
  %v1066 = vrot.slane %v1064, 4
  %v1067 = vshll.u32 %v1005, 16
  %v1069 = vrot.slane %v1067, 5
  %v1070 = vor.u32 %v1066, %v1069
  %v1071 = vrot.slane %v1070, 4
  %v1073 = vshll.u32 %v1021, 16
  %v1075 = vrot.slane %v1073, 5
  %v1076 = vsel %vm663, %v1071, %v1075
  %v1078 = vshrl.u32 %v1006, 16
  %v1080 = vrot.slane %v1078, 4
  %v1081 = vshll.u32 %v1006, 16
  %v1083 = vrot.slane %v1081, 5
  %v1084 = vor.u32 %v1080, %v1083
  %v1085 = vrot.slane %v1084, 4
  %v1087 = vshll.u32 %v1022, 16
  %v1089 = vrot.slane %v1087, 5
  %v1090 = vsel %vm663, %v1085, %v1089
  %v1092 = vshrl.u32 %v1007, 16
  %v1094 = vrot.slane %v1092, 4
  %v1095 = vshll.u32 %v1007, 16
  %v1097 = vrot.slane %v1095, 5
  %v1098 = vor.u32 %v1094, %v1097
  %v1099 = vrot.slane %v1098, 4
  %v1101 = vshll.u32 %v1023, 16
  %v1103 = vrot.slane %v1101, 5
  %v1104 = vsel %vm663, %v1099, %v1103
  %v1106 = vshrl.u32 %v1008, 16
  %v1108 = vrot.slane %v1106, 4
  %v1109 = vshll.u32 %v1008, 16
  %v1111 = vrot.slane %v1109, 5
  %v1112 = vor.u32 %v1108, %v1111
  %v1113 = vrot.slane %v1112, 4
  %v1115 = vshll.u32 %v1024, 16
  %v1117 = vrot.slane %v1115, 5
  %v1118 = vsel %vm663, %v1113, %v1117
  %v1120 = vshrl.u32 %v1009, 16
  %v1122 = vrot.slane %v1120, 4
  %v1123 = vshll.u32 %v1009, 16
  %v1125 = vrot.slane %v1123, 5
  %v1126 = vor.u32 %v1122, %v1125
  %v1127 = vrot.slane %v1126, 4
  %v1129 = vshll.u32 %v1025, 16
  %v1131 = vrot.slane %v1129, 5
  %v1132 = vsel %vm663, %v1127, %v1131
  %v1134 = vshrl.u32 %v1010, 16
  %v1136 = vrot.slane %v1134, 4
  %v1137 = vshll.u32 %v1010, 16
  %v1139 = vrot.slane %v1137, 5
  %v1140 = vor.u32 %v1136, %v1139
  %v1141 = vrot.slane %v1140, 4
  %v1143 = vshll.u32 %v1026, 16
  %v1145 = vrot.slane %v1143, 5
  %v1146 = vsel %vm663, %v1141, %v1145
  %v1148 = vshrl.u32 %v1011, 16
  %v1150 = vrot.slane %v1148, 4
  %v1151 = vshll.u32 %v1011, 16
  %v1153 = vrot.slane %v1151, 5
  %v1154 = vor.u32 %v1150, %v1153
  %v1155 = vrot.slane %v1154, 4
  %v1157 = vshll.u32 %v1027, 16
  %v1159 = vrot.slane %v1157, 5
  %v1160 = vsel %vm663, %v1155, %v1159
  %v1162 = vshrl.u32 %v1012, 16
  %v1164 = vrot.slane %v1162, 4
  %v1165 = vshll.u32 %v1012, 16
  %v1167 = vrot.slane %v1165, 5
  %v1168 = vor.u32 %v1164, %v1167
  %v1169 = vrot.slane %v1168, 4
  %v1171 = vshll.u32 %v1028, 16
  %v1173 = vrot.slane %v1171, 5
  %v1174 = vsel %vm663, %v1169, %v1173
  %v1176 = vshrl.u32 %v1013, 16
  %v1178 = vrot.slane %v1176, 4
  %v1179 = vshll.u32 %v1013, 16
  %v1181 = vrot.slane %v1179, 5
  %v1182 = vor.u32 %v1178, %v1181
  %v1183 = vrot.slane %v1182, 4
  %v1185 = vshll.u32 %v1029, 16
  %v1187 = vrot.slane %v1185, 5
  %v1188 = vsel %vm663, %v1183, %v1187
  %v1190 = vshrl.u32 %v1014, 16
  %v1192 = vrot.slane %v1190, 4
  %v1193 = vshll.u32 %v1014, 16
  %v1195 = vrot.slane %v1193, 5
  %v1196 = vor.u32 %v1192, %v1195
  %v1197 = vrot.slane %v1196, 4
  %v1199 = vshll.u32 %v1030, 16
  %v1201 = vrot.slane %v1199, 5
  %v1202 = vsel %vm663, %v1197, %v1201
  %v1204 = vshrl.u32 %v1015, 16
  %v1206 = vrot.slane %v1204, 4
  %v1207 = vshll.u32 %v1015, 16
  %v1209 = vrot.slane %v1207, 5
  %v1210 = vor.u32 %v1206, %v1209
  %v1211 = vrot.slane %v1210, 4
  %v1213 = vshll.u32 %v1031, 16
  %v1215 = vrot.slane %v1213, 5
  %v1216 = vsel %vm663, %v1211, %v1215
  %v1218 = vshrl.u32 %v1016, 16
  %v1220 = vrot.slane %v1218, 4
  %v1221 = vshll.u32 %v1016, 16
  %v1223 = vrot.slane %v1221, 5
  %v1224 = vor.u32 %v1220, %v1223
  %v1225 = vrot.slane %v1224, 4
  %v1227 = vshll.u32 %v1032, 16
  %v1229 = vrot.slane %v1227, 5
  %v1230 = vsel %vm663, %v1225, %v1229
  %v1232 = vshrl.u32 %v1017, 16
  %v1234 = vrot.slane %v1232, 4
  %v1235 = vshll.u32 %v1017, 16
  %v1237 = vrot.slane %v1235, 5
  %v1238 = vor.u32 %v1234, %v1237
  %v1239 = vrot.slane %v1238, 4
  %v1241 = vshll.u32 %v1033, 16
  %v1243 = vrot.slane %v1241, 5
  %v1244 = vsel %vm663, %v1239, %v1243
  %v1246 = vshrl.u32 %v1018, 16
  %v1248 = vrot.slane %v1246, 4
  %v1249 = vshll.u32 %v1018, 16
  %v1251 = vrot.slane %v1249, 5
  %v1252 = vor.u32 %v1248, %v1251
  %v1253 = vrot.slane %v1252, 4
  %v1255 = vshll.u32 %v1034, 16
  %v1257 = vrot.slane %v1255, 5
  %v1258 = vsel %vm663, %v1253, %v1257
  %v1259 = vld [vmem:[%s526] sm:$0xe]
  %v1260 = vld [vmem:[%s526 + $0x8] sm:$0xe]
  %v1261 = vld [vmem:[%s526 + $0x10] sm:$0xe]
  %v1262 = vld [vmem:[%s526 + $0x18] sm:$0xe]
  %v1263 = vld [vmem:[%s526 + $0x20] sm:$0xe]
  %v1264 = vld [vmem:[%s526 + $0x28] sm:$0xe]
  %v1265 = vld [vmem:[%s526 + $0x30] sm:$0xe]
  %v1266 = vld [vmem:[%s526 + $0x38] sm:$0xe]
  %v1267 = vld [vmem:[%s526 + $0x50] sm:$0xe]
  %v1268 = vld [vmem:[%s526 + $0x58] sm:$0xe]
  %v1269 = vld [vmem:[%s526 + $0x60] sm:$0xe]
  %v1270 = vld [vmem:[%s526 + $0x68] sm:$0xe]
  %v1271 = vld [vmem:[%s526 + $0x70] sm:$0xe]
  %v1272 = vld [vmem:[%s526 + $0x78] sm:$0xe]
  %v1273 = vld [vmem:[%s526 + $0x80] sm:$0xe]
  %v1274 = vld [vmem:[%s526 + $0x88] sm:$0xe]
  %v1307 = vrot.slane %v1259, 5
  %v1308 = vrot.slane %v1307, 4
  %v1309 = vrot.slane %v1019, 5
  %v1310 = vsel %vm938, %v1308, %v1309
  %v1311 = vrot.slane %v1260, 5
  %v1312 = vrot.slane %v1311, 4
  %v1313 = vrot.slane %v1020, 5
  %v1314 = vsel %vm938, %v1312, %v1313
  %v1315 = vrot.slane %v1261, 5
  %v1316 = vrot.slane %v1315, 4
  %v1317 = vrot.slane %v1021, 5
  %v1318 = vsel %vm938, %v1316, %v1317
  %v1319 = vrot.slane %v1262, 5
  %v1320 = vrot.slane %v1319, 4
  %v1321 = vrot.slane %v1022, 5
  %v1322 = vsel %vm938, %v1320, %v1321
  %v1323 = vrot.slane %v1263, 5
  %v1324 = vrot.slane %v1323, 4
  %v1325 = vrot.slane %v1023, 5
  %v1326 = vsel %vm938, %v1324, %v1325
  %v1327 = vrot.slane %v1264, 5
  %v1328 = vrot.slane %v1327, 4
  %v1329 = vrot.slane %v1024, 5
  %v1330 = vsel %vm938, %v1328, %v1329
  %v1331 = vrot.slane %v1265, 5
  %v1332 = vrot.slane %v1331, 4
  %v1333 = vrot.slane %v1025, 5
  %v1334 = vsel %vm938, %v1332, %v1333
  %v1335 = vrot.slane %v1266, 5
  %v1336 = vrot.slane %v1335, 4
  %v1337 = vrot.slane %v1026, 5
  %v1338 = vsel %vm938, %v1336, %v1337
  %v1339 = vrot.slane %v1267, 5
  %v1340 = vrot.slane %v1339, 4
  %v1341 = vrot.slane %v1027, 5
  %v1342 = vsel %vm938, %v1340, %v1341
  %v1343 = vrot.slane %v1268, 5
  %v1344 = vrot.slane %v1343, 4
  %v1345 = vrot.slane %v1028, 5
  %v1346 = vsel %vm938, %v1344, %v1345
  %v1347 = vrot.slane %v1269, 5
  %v1348 = vrot.slane %v1347, 4
  %v1349 = vrot.slane %v1029, 5
  %v1350 = vsel %vm938, %v1348, %v1349
  %v1351 = vrot.slane %v1270, 5
  %v1352 = vrot.slane %v1351, 4
  %v1353 = vrot.slane %v1030, 5
  %v1354 = vsel %vm938, %v1352, %v1353
  %v1355 = vrot.slane %v1271, 5
  %v1356 = vrot.slane %v1355, 4
  %v1357 = vrot.slane %v1031, 5
  %v1358 = vsel %vm938, %v1356, %v1357
  %v1359 = vrot.slane %v1272, 5
  %v1360 = vrot.slane %v1359, 4
  %v1361 = vrot.slane %v1032, 5
  %v1362 = vsel %vm938, %v1360, %v1361
  %v1363 = vrot.slane %v1273, 5
  %v1364 = vrot.slane %v1363, 4
  %v1365 = vrot.slane %v1033, 5
  %v1366 = vsel %vm938, %v1364, %v1365
  %v1367 = vrot.slane %v1274, 5
  %v1368 = vrot.slane %v1367, 4
  %v1369 = vrot.slane %v1034, 5
  %v1370 = vsel %vm938, %v1368, %v1369
  %s1371 = scalar_lea.vmem [#allocation2], 16
  %v1372 = vld [vmem:[%s1371] sm:$0xf]
  %v1373 = vld [vmem:[%s1371 + $0x8] sm:$0xf]
  %v1374 = vld [vmem:[%s1371 + $0x10] sm:$0xf]
  %v1375 = vld [vmem:[%s1371 + $0x18] sm:$0xf]
  %v1376 = vld [vmem:[%s1371 + $0x20] sm:$0xf]
  %v1377 = vld [vmem:[%s1371 + $0x28] sm:$0xf]
  %v1378 = vld [vmem:[%s1371 + $0x30] sm:$0xf]
  %v1379 = vld [vmem:[%s1371 + $0x38] sm:$0xf]
  %v1380 = vld [vmem:[%s1371 + $0x50] sm:$0xf]
  %v1381 = vld [vmem:[%s1371 + $0x58] sm:$0xf]
  %v1382 = vld [vmem:[%s1371 + $0x60] sm:$0xf]
  %v1383 = vld [vmem:[%s1371 + $0x68] sm:$0xf]
  %v1384 = vld [vmem:[%s1371 + $0x70] sm:$0xf]
  %v1385 = vld [vmem:[%s1371 + $0x78] sm:$0xf]
  %v1386 = vld [vmem:[%s1371 + $0x80] sm:$0xf]
  %v1387 = vld [vmem:[%s1371 + $0x88] sm:$0xf]
  %v1388 = vld [vmem:[%s1371 + $0x4] sm:$0x1]
  %v1389 = vld [vmem:[%s1371 + $0xc] sm:$0x1]
  %v1390 = vld [vmem:[%s1371 + $0x14] sm:$0x1]
  %v1391 = vld [vmem:[%s1371 + $0x1c] sm:$0x1]
  %v1392 = vld [vmem:[%s1371 + $0x24] sm:$0x1]
  %v1393 = vld [vmem:[%s1371 + $0x2c] sm:$0x1]
  %v1394 = vld [vmem:[%s1371 + $0x34] sm:$0x1]
  %v1395 = vld [vmem:[%s1371 + $0x3c] sm:$0x1]
  %v1396 = vld [vmem:[%s1371 + $0x54] sm:$0x1]
  %v1397 = vld [vmem:[%s1371 + $0x5c] sm:$0x1]
  %v1398 = vld [vmem:[%s1371 + $0x64] sm:$0x1]
  %v1399 = vld [vmem:[%s1371 + $0x6c] sm:$0x1]
  %v1400 = vld [vmem:[%s1371 + $0x74] sm:$0x1]
  %v1401 = vld [vmem:[%s1371 + $0x7c] sm:$0x1]
  %v1402 = vld [vmem:[%s1371 + $0x84] sm:$0x1]
  %v1403 = vld [vmem:[%s1371 + $0x8c] sm:$0x1]
  %v1405 = vshrl.u32 %v1372, 16
  %v1407 = vrot.slane %v1405, 4
  %v1408 = vshll.u32 %v1372, 16
  %v1410 = vrot.slane %v1408, 5
  %v1411 = vor.u32 %v1407, %v1410
  %v1412 = vrot.slane %v1411, 4
  %v1414 = vshll.u32 %v1388, 16
  %v1416 = vrot.slane %v1414, 5
  %v1417 = vsel %vm663, %v1412, %v1416
  %v1419 = vshrl.u32 %v1373, 16
  %v1421 = vrot.slane %v1419, 4
  %v1422 = vshll.u32 %v1373, 16
  %v1424 = vrot.slane %v1422, 5
  %v1425 = vor.u32 %v1421, %v1424
  %v1426 = vrot.slane %v1425, 4
  %v1428 = vshll.u32 %v1389, 16
  %v1430 = vrot.slane %v1428, 5
  %v1431 = vsel %vm663, %v1426, %v1430
  %v1433 = vshrl.u32 %v1374, 16
  %v1435 = vrot.slane %v1433, 4
  %v1436 = vshll.u32 %v1374, 16
  %v1438 = vrot.slane %v1436, 5
  %v1439 = vor.u32 %v1435, %v1438
  %v1440 = vrot.slane %v1439, 4
  %v1442 = vshll.u32 %v1390, 16
  %v1444 = vrot.slane %v1442, 5
  %v1445 = vsel %vm663, %v1440, %v1444
  %v1447 = vshrl.u32 %v1375, 16
  %v1449 = vrot.slane %v1447, 4
  %v1450 = vshll.u32 %v1375, 16
  %v1452 = vrot.slane %v1450, 5
  %v1453 = vor.u32 %v1449, %v1452
  %v1454 = vrot.slane %v1453, 4
  %v1456 = vshll.u32 %v1391, 16
  %v1458 = vrot.slane %v1456, 5
  %v1459 = vsel %vm663, %v1454, %v1458
  %v1461 = vshrl.u32 %v1376, 16
  %v1463 = vrot.slane %v1461, 4
  %v1464 = vshll.u32 %v1376, 16
  %v1466 = vrot.slane %v1464, 5
  %v1467 = vor.u32 %v1463, %v1466
  %v1468 = vrot.slane %v1467, 4
  %v1470 = vshll.u32 %v1392, 16
  %v1472 = vrot.slane %v1470, 5
  %v1473 = vsel %vm663, %v1468, %v1472
  %v1475 = vshrl.u32 %v1377, 16
  %v1477 = vrot.slane %v1475, 4
  %v1478 = vshll.u32 %v1377, 16
  %v1480 = vrot.slane %v1478, 5
  %v1481 = vor.u32 %v1477, %v1480
  %v1482 = vrot.slane %v1481, 4
  %v1484 = vshll.u32 %v1393, 16
  %v1486 = vrot.slane %v1484, 5
  %v1487 = vsel %vm663, %v1482, %v1486
  %v1489 = vshrl.u32 %v1378, 16
  %v1491 = vrot.slane %v1489, 4
  %v1492 = vshll.u32 %v1378, 16
  %v1494 = vrot.slane %v1492, 5
  %v1495 = vor.u32 %v1491, %v1494
  %v1496 = vrot.slane %v1495, 4
  %v1498 = vshll.u32 %v1394, 16
  %v1500 = vrot.slane %v1498, 5
  %v1501 = vsel %vm663, %v1496, %v1500
  %v1503 = vshrl.u32 %v1379, 16
  %v1505 = vrot.slane %v1503, 4
  %v1506 = vshll.u32 %v1379, 16
  %v1508 = vrot.slane %v1506, 5
  %v1509 = vor.u32 %v1505, %v1508
  %v1510 = vrot.slane %v1509, 4
  %v1512 = vshll.u32 %v1395, 16
  %v1514 = vrot.slane %v1512, 5
  %v1515 = vsel %vm663, %v1510, %v1514
  %v1517 = vshrl.u32 %v1380, 16
  %v1519 = vrot.slane %v1517, 4
  %v1520 = vshll.u32 %v1380, 16
  %v1522 = vrot.slane %v1520, 5
  %v1523 = vor.u32 %v1519, %v1522
  %v1524 = vrot.slane %v1523, 4
  %v1526 = vshll.u32 %v1396, 16
  %v1528 = vrot.slane %v1526, 5
  %v1529 = vsel %vm663, %v1524, %v1528
  %v1531 = vshrl.u32 %v1381, 16
  %v1533 = vrot.slane %v1531, 4
  %v1534 = vshll.u32 %v1381, 16
  %v1536 = vrot.slane %v1534, 5
  %v1537 = vor.u32 %v1533, %v1536
  %v1538 = vrot.slane %v1537, 4
  %v1540 = vshll.u32 %v1397, 16
  %v1542 = vrot.slane %v1540, 5
  %v1543 = vsel %vm663, %v1538, %v1542
  %v1545 = vshrl.u32 %v1382, 16
  %v1547 = vrot.slane %v1545, 4
  %v1548 = vshll.u32 %v1382, 16
  %v1550 = vrot.slane %v1548, 5
  %v1551 = vor.u32 %v1547, %v1550
  %v1552 = vrot.slane %v1551, 4
  %v1554 = vshll.u32 %v1398, 16
  %v1556 = vrot.slane %v1554, 5
  %v1557 = vsel %vm663, %v1552, %v1556
  %v1559 = vshrl.u32 %v1383, 16
  %v1561 = vrot.slane %v1559, 4
  %v1562 = vshll.u32 %v1383, 16
  %v1564 = vrot.slane %v1562, 5
  %v1565 = vor.u32 %v1561, %v1564
  %v1566 = vrot.slane %v1565, 4
  %v1568 = vshll.u32 %v1399, 16
  %v1570 = vrot.slane %v1568, 5
  %v1571 = vsel %vm663, %v1566, %v1570
  %v1573 = vshrl.u32 %v1384, 16
  %v1575 = vrot.slane %v1573, 4
  %v1576 = vshll.u32 %v1384, 16
  %v1578 = vrot.slane %v1576, 5
  %v1579 = vor.u32 %v1575, %v1578
  %v1580 = vrot.slane %v1579, 4
  %v1582 = vshll.u32 %v1400, 16
  %v1584 = vrot.slane %v1582, 5
  %v1585 = vsel %vm663, %v1580, %v1584
  %v1587 = vshrl.u32 %v1385, 16
  %v1589 = vrot.slane %v1587, 4
  %v1590 = vshll.u32 %v1385, 16
  %v1592 = vrot.slane %v1590, 5
  %v1593 = vor.u32 %v1589, %v1592
  %v1594 = vrot.slane %v1593, 4
  %v1596 = vshll.u32 %v1401, 16
  %v1598 = vrot.slane %v1596, 5
  %v1599 = vsel %vm663, %v1594, %v1598
  %v1601 = vshrl.u32 %v1386, 16
  %v1603 = vrot.slane %v1601, 4
  %v1604 = vshll.u32 %v1386, 16
  %v1606 = vrot.slane %v1604, 5
  %v1607 = vor.u32 %v1603, %v1606
  %v1608 = vrot.slane %v1607, 4
  %v1610 = vshll.u32 %v1402, 16
  %v1612 = vrot.slane %v1610, 5
  %v1613 = vsel %vm663, %v1608, %v1612
  %v1615 = vshrl.u32 %v1387, 16
  %v1617 = vrot.slane %v1615, 4
  %v1618 = vshll.u32 %v1387, 16
  %v1620 = vrot.slane %v1618, 5
  %v1621 = vor.u32 %v1617, %v1620
  %v1622 = vrot.slane %v1621, 4
  %v1624 = vshll.u32 %v1403, 16
  %v1626 = vrot.slane %v1624, 5
  %v1627 = vsel %vm663, %v1622, %v1626
  %v1628 = vld [vmem:[%s1371] sm:$0xe]
  %v1629 = vld [vmem:[%s1371 + $0x8] sm:$0xe]
  %v1630 = vld [vmem:[%s1371 + $0x10] sm:$0xe]
  %v1631 = vld [vmem:[%s1371 + $0x18] sm:$0xe]
  %v1632 = vld [vmem:[%s1371 + $0x20] sm:$0xe]
  %v1633 = vld [vmem:[%s1371 + $0x28] sm:$0xe]
  %v1634 = vld [vmem:[%s1371 + $0x30] sm:$0xe]
  %v1635 = vld [vmem:[%s1371 + $0x38] sm:$0xe]
  %v1636 = vld [vmem:[%s1371 + $0x50] sm:$0xe]
  %v1637 = vld [vmem:[%s1371 + $0x58] sm:$0xe]
  %v1638 = vld [vmem:[%s1371 + $0x60] sm:$0xe]
  %v1639 = vld [vmem:[%s1371 + $0x68] sm:$0xe]
  %v1640 = vld [vmem:[%s1371 + $0x70] sm:$0xe]
  %v1641 = vld [vmem:[%s1371 + $0x78] sm:$0xe]
  %v1642 = vld [vmem:[%s1371 + $0x80] sm:$0xe]
  %v1643 = vld [vmem:[%s1371 + $0x88] sm:$0xe]
  %v1676 = vrot.slane %v1628, 5
  %v1677 = vrot.slane %v1676, 4
  %v1678 = vrot.slane %v1388, 5
  %v1679 = vsel %vm938, %v1677, %v1678
  %v1680 = vrot.slane %v1629, 5
  %v1681 = vrot.slane %v1680, 4
  %v1682 = vrot.slane %v1389, 5
  %v1683 = vsel %vm938, %v1681, %v1682
  %v1684 = vrot.slane %v1630, 5
  %v1685 = vrot.slane %v1684, 4
  %v1686 = vrot.slane %v1390, 5
  %v1687 = vsel %vm938, %v1685, %v1686
  %v1688 = vrot.slane %v1631, 5
  %v1689 = vrot.slane %v1688, 4
  %v1690 = vrot.slane %v1391, 5
  %v1691 = vsel %vm938, %v1689, %v1690
  %v1692 = vrot.slane %v1632, 5
  %v1693 = vrot.slane %v1692, 4
  %v1694 = vrot.slane %v1392, 5
  %v1695 = vsel %vm938, %v1693, %v1694
  %v1696 = vrot.slane %v1633, 5
  %v1697 = vrot.slane %v1696, 4
  %v1698 = vrot.slane %v1393, 5
  %v1699 = vsel %vm938, %v1697, %v1698
  %v1700 = vrot.slane %v1634, 5
  %v1701 = vrot.slane %v1700, 4
  %v1702 = vrot.slane %v1394, 5
  %v1703 = vsel %vm938, %v1701, %v1702
  %v1704 = vrot.slane %v1635, 5
  %v1705 = vrot.slane %v1704, 4
  %v1706 = vrot.slane %v1395, 5
  %v1707 = vsel %vm938, %v1705, %v1706
  %v1708 = vrot.slane %v1636, 5
  %v1709 = vrot.slane %v1708, 4
  %v1710 = vrot.slane %v1396, 5
  %v1711 = vsel %vm938, %v1709, %v1710
  %v1712 = vrot.slane %v1637, 5
  %v1713 = vrot.slane %v1712, 4
  %v1714 = vrot.slane %v1397, 5
  %v1715 = vsel %vm938, %v1713, %v1714
  %v1716 = vrot.slane %v1638, 5
  %v1717 = vrot.slane %v1716, 4
  %v1718 = vrot.slane %v1398, 5
  %v1719 = vsel %vm938, %v1717, %v1718
  %v1720 = vrot.slane %v1639, 5
  %v1721 = vrot.slane %v1720, 4
  %v1722 = vrot.slane %v1399, 5
  %v1723 = vsel %vm938, %v1721, %v1722
  %v1724 = vrot.slane %v1640, 5
  %v1725 = vrot.slane %v1724, 4
  %v1726 = vrot.slane %v1400, 5
  %v1727 = vsel %vm938, %v1725, %v1726
  %v1728 = vrot.slane %v1641, 5
  %v1729 = vrot.slane %v1728, 4
  %v1730 = vrot.slane %v1401, 5
  %v1731 = vsel %vm938, %v1729, %v1730
  %v1732 = vrot.slane %v1642, 5
  %v1733 = vrot.slane %v1732, 4
  %v1734 = vrot.slane %v1402, 5
  %v1735 = vsel %vm938, %v1733, %v1734
  %v1736 = vrot.slane %v1643, 5
  %v1737 = vrot.slane %v1736, 4
  %v1738 = vrot.slane %v1403, 5
  %v1739 = vsel %vm938, %v1737, %v1738
  %v1756 = vunpack.c.l.b16 %v629
  %v1757 = vunpack.c.l.b16 %v630
  %v1758 = vunpack.c.l.b16 %v631
  %v1759 = vunpack.c.l.b16 %v632
  %v1760 = vunpack.c.l.b16 %v633
  %v1761 = vunpack.c.l.b16 %v634
  %v1762 = vunpack.c.l.b16 %v635
  %v1763 = vunpack.c.l.b16 %v636
  %v1764 = vunpack.c.l.b16 %v637
  %v1765 = vunpack.c.l.b16 %v638
  %v1766 = vunpack.c.l.b16 %v639
  %v1767 = vunpack.c.l.b16 %v640
  %v1768 = vunpack.c.l.b16 %v641
  %v1769 = vunpack.c.l.b16 %v642
  %v1770 = vunpack.c.l.b16 %v643
  %v1771 = vunpack.c.l.b16 %v644
  %v1772 = vpack.c.b16 %v1757, %v1756
  %v1773 = vpack.c.b16 %v1759, %v1758
  %v1774 = vpack.c.b16 %v1761, %v1760
  %v1775 = vpack.c.b16 %v1763, %v1762
  %v1776 = vpack.c.b16 %v1765, %v1764
  %v1777 = vpack.c.b16 %v1767, %v1766
  %v1778 = vpack.c.b16 %v1769, %v1768
  %v1779 = vpack.c.b16 %v1771, %v1770
  %v1780 = vunpack.c.l.b16 %v677
  %v1781 = vunpack.c.l.b16 %v691
  %v1782 = vunpack.c.l.b16 %v705
  %v1783 = vunpack.c.l.b16 %v719
  %v1784 = vunpack.c.l.b16 %v733
  %v1785 = vunpack.c.l.b16 %v747
  %v1786 = vunpack.c.l.b16 %v761
  %v1787 = vunpack.c.l.b16 %v775
  %v1788 = vunpack.c.l.b16 %v789
  %v1789 = vunpack.c.l.b16 %v803
  %v1790 = vunpack.c.l.b16 %v817
  %v1791 = vunpack.c.l.b16 %v831
  %v1792 = vunpack.c.l.b16 %v845
  %v1793 = vunpack.c.l.b16 %v859
  %v1794 = vunpack.c.l.b16 %v873
  %v1795 = vunpack.c.l.b16 %v887
  %v1796 = vpack.c.b16 %v1781, %v1780
  %v1797 = vpack.c.b16 %v1783, %v1782
  %v1798 = vpack.c.b16 %v1785, %v1784
  %v1799 = vpack.c.b16 %v1787, %v1786
  %v1800 = vpack.c.b16 %v1789, %v1788
  %v1801 = vpack.c.b16 %v1791, %v1790
  %v1802 = vpack.c.b16 %v1793, %v1792
  %v1803 = vpack.c.b16 %v1795, %v1794
  %1804 = vrot.lane.b32.xlu0 %v1796, 16
  %v1805 = vpop.permute.xlu0 %1804
  %1806 = vrot.lane.b32.xlu0 %v1797, 16
  %v1807 = vpop.permute.xlu0 %1806
  %1808 = vrot.lane.b32.xlu0 %v1798, 16
  %v1809 = vpop.permute.xlu0 %1808
  %1810 = vrot.lane.b32.xlu0 %v1799, 16
  %v1811 = vpop.permute.xlu0 %1810
  %1812 = vrot.lane.b32.xlu0 %v1800, 16
  %v1813 = vpop.permute.xlu0 %1812
  %1814 = vrot.lane.b32.xlu0 %v1801, 16
  %v1815 = vpop.permute.xlu0 %1814
  %1816 = vrot.lane.b32.xlu0 %v1802, 16
  %v1817 = vpop.permute.xlu0 %1816
  %1818 = vrot.lane.b32.xlu0 %v1803, 16
  %v1819 = vpop.permute.xlu0 %1818
  %v1820 = vunpack.c.l.b16 %v942
  %v1821 = vunpack.c.l.b16 %v946
  %v1822 = vunpack.c.l.b16 %v950
  %v1823 = vunpack.c.l.b16 %v954
  %v1824 = vunpack.c.l.b16 %v958
  %v1825 = vunpack.c.l.b16 %v962
  %v1826 = vunpack.c.l.b16 %v966
  %v1827 = vunpack.c.l.b16 %v970
  %v1828 = vunpack.c.l.b16 %v974
  %v1829 = vunpack.c.l.b16 %v978
  %v1830 = vunpack.c.l.b16 %v982
  %v1831 = vunpack.c.l.b16 %v986
  %v1832 = vunpack.c.l.b16 %v990
  %v1833 = vunpack.c.l.b16 %v994
  %v1834 = vunpack.c.l.b16 %v998
  %v1835 = vunpack.c.l.b16 %v1002
  %v1836 = vpack.c.b16 %v1821, %v1820
  %v1837 = vpack.c.b16 %v1823, %v1822
  %v1838 = vpack.c.b16 %v1825, %v1824
  %v1839 = vpack.c.b16 %v1827, %v1826
  %v1840 = vpack.c.b16 %v1829, %v1828
  %v1841 = vpack.c.b16 %v1831, %v1830
  %v1842 = vpack.c.b16 %v1833, %v1832
  %v1843 = vpack.c.b16 %v1835, %v1834
  %1844 = vrot.lane.b32.xlu0 %v1836, 32
  %v1845 = vpop.permute.xlu0 %1844
  %1846 = vrot.lane.b32.xlu0 %v1837, 32
  %v1847 = vpop.permute.xlu0 %1846
  %1848 = vrot.lane.b32.xlu0 %v1838, 32
  %v1849 = vpop.permute.xlu0 %1848
  %1850 = vrot.lane.b32.xlu0 %v1839, 32
  %v1851 = vpop.permute.xlu0 %1850
  %1852 = vrot.lane.b32.xlu0 %v1840, 32
  %v1853 = vpop.permute.xlu0 %1852
  %1854 = vrot.lane.b32.xlu0 %v1841, 32
  %v1855 = vpop.permute.xlu0 %1854
  %1856 = vrot.lane.b32.xlu0 %v1842, 32
  %v1857 = vpop.permute.xlu0 %1856
  %1858 = vrot.lane.b32.xlu0 %v1843, 32
  %v1859 = vpop.permute.xlu0 %1858
  %v1876 = vunpack.c.l.b16 %v1003
  %v1877 = vunpack.c.l.b16 %v1004
  %v1878 = vunpack.c.l.b16 %v1005
  %v1879 = vunpack.c.l.b16 %v1006
  %v1880 = vunpack.c.l.b16 %v1007
  %v1881 = vunpack.c.l.b16 %v1008
  %v1882 = vunpack.c.l.b16 %v1009
  %v1883 = vunpack.c.l.b16 %v1010
  %v1884 = vunpack.c.l.b16 %v1011
  %v1885 = vunpack.c.l.b16 %v1012
  %v1886 = vunpack.c.l.b16 %v1013
  %v1887 = vunpack.c.l.b16 %v1014
  %v1888 = vunpack.c.l.b16 %v1015
  %v1889 = vunpack.c.l.b16 %v1016
  %v1890 = vunpack.c.l.b16 %v1017
  %v1891 = vunpack.c.l.b16 %v1018
  %v1892 = vpack.c.b16 %v1877, %v1876
  %v1893 = vpack.c.b16 %v1879, %v1878
  %v1894 = vpack.c.b16 %v1881, %v1880
  %v1895 = vpack.c.b16 %v1883, %v1882
  %v1896 = vpack.c.b16 %v1885, %v1884
  %v1897 = vpack.c.b16 %v1887, %v1886
  %v1898 = vpack.c.b16 %v1889, %v1888
  %v1899 = vpack.c.b16 %v1891, %v1890
  %1900 = vrot.lane.b32.xlu0 %v1892, 48
  %v1901 = vpop.permute.xlu0 %1900
  %1902 = vrot.lane.b32.xlu0 %v1893, 48
  %v1903 = vpop.permute.xlu0 %1902
  %1904 = vrot.lane.b32.xlu0 %v1894, 48
  %v1905 = vpop.permute.xlu0 %1904
  %1906 = vrot.lane.b32.xlu0 %v1895, 48
  %v1907 = vpop.permute.xlu0 %1906
  %1908 = vrot.lane.b32.xlu0 %v1896, 48
  %v1909 = vpop.permute.xlu0 %1908
  %1910 = vrot.lane.b32.xlu0 %v1897, 48
  %v1911 = vpop.permute.xlu0 %1910
  %1912 = vrot.lane.b32.xlu0 %v1898, 48
  %v1913 = vpop.permute.xlu0 %1912
  %1914 = vrot.lane.b32.xlu0 %v1899, 48
  %v1915 = vpop.permute.xlu0 %1914
  %v1916 = vunpack.c.l.b16 %v1048
  %v1917 = vunpack.c.l.b16 %v1062
  %v1918 = vunpack.c.l.b16 %v1076
  %v1919 = vunpack.c.l.b16 %v1090
  %v1920 = vunpack.c.l.b16 %v1104
  %v1921 = vunpack.c.l.b16 %v1118
  %v1922 = vunpack.c.l.b16 %v1132
  %v1923 = vunpack.c.l.b16 %v1146
  %v1924 = vunpack.c.l.b16 %v1160
  %v1925 = vunpack.c.l.b16 %v1174
  %v1926 = vunpack.c.l.b16 %v1188
  %v1927 = vunpack.c.l.b16 %v1202
  %v1928 = vunpack.c.l.b16 %v1216
  %v1929 = vunpack.c.l.b16 %v1230
  %v1930 = vunpack.c.l.b16 %v1244
  %v1931 = vunpack.c.l.b16 %v1258
  %v1932 = vpack.c.b16 %v1917, %v1916
  %v1933 = vpack.c.b16 %v1919, %v1918
  %v1934 = vpack.c.b16 %v1921, %v1920
  %v1935 = vpack.c.b16 %v1923, %v1922
  %v1936 = vpack.c.b16 %v1925, %v1924
  %v1937 = vpack.c.b16 %v1927, %v1926
  %v1938 = vpack.c.b16 %v1929, %v1928
  %v1939 = vpack.c.b16 %v1931, %v1930
  %1940 = vrot.lane.b32.xlu0 %v1932, 64
  %v1941 = vpop.permute.xlu0 %1940
  %1942 = vrot.lane.b32.xlu0 %v1933, 64
  %v1943 = vpop.permute.xlu0 %1942
  %1944 = vrot.lane.b32.xlu0 %v1934, 64
  %v1945 = vpop.permute.xlu0 %1944
  %1946 = vrot.lane.b32.xlu0 %v1935, 64
  %v1947 = vpop.permute.xlu0 %1946
  %1948 = vrot.lane.b32.xlu0 %v1936, 64
  %v1949 = vpop.permute.xlu0 %1948
  %1950 = vrot.lane.b32.xlu0 %v1937, 64
  %v1951 = vpop.permute.xlu0 %1950
  %1952 = vrot.lane.b32.xlu0 %v1938, 64
  %v1953 = vpop.permute.xlu0 %1952
  %1954 = vrot.lane.b32.xlu0 %v1939, 64
  %v1955 = vpop.permute.xlu0 %1954
  %v1956 = vunpack.c.l.b16 %v1310
  %v1957 = vunpack.c.l.b16 %v1314
  %v1958 = vunpack.c.l.b16 %v1318
  %v1959 = vunpack.c.l.b16 %v1322
  %v1960 = vunpack.c.l.b16 %v1326
  %v1961 = vunpack.c.l.b16 %v1330
  %v1962 = vunpack.c.l.b16 %v1334
  %v1963 = vunpack.c.l.b16 %v1338
  %v1964 = vunpack.c.l.b16 %v1342
  %v1965 = vunpack.c.l.b16 %v1346
  %v1966 = vunpack.c.l.b16 %v1350
  %v1967 = vunpack.c.l.b16 %v1354
  %v1968 = vunpack.c.l.b16 %v1358
  %v1969 = vunpack.c.l.b16 %v1362
  %v1970 = vunpack.c.l.b16 %v1366
  %v1971 = vunpack.c.l.b16 %v1370
  %v1972 = vpack.c.b16 %v1957, %v1956
  %v1973 = vpack.c.b16 %v1959, %v1958
  %v1974 = vpack.c.b16 %v1961, %v1960
  %v1975 = vpack.c.b16 %v1963, %v1962
  %v1976 = vpack.c.b16 %v1965, %v1964
  %v1977 = vpack.c.b16 %v1967, %v1966
  %v1978 = vpack.c.b16 %v1969, %v1968
  %v1979 = vpack.c.b16 %v1971, %v1970
  %1980 = vrot.lane.b32.xlu0 %v1972, 80
  %v1981 = vpop.permute.xlu0 %1980
  %1982 = vrot.lane.b32.xlu0 %v1973, 80
  %v1983 = vpop.permute.xlu0 %1982
  %1984 = vrot.lane.b32.xlu0 %v1974, 80
  %v1985 = vpop.permute.xlu0 %1984
  %1986 = vrot.lane.b32.xlu0 %v1975, 80
  %v1987 = vpop.permute.xlu0 %1986
  %1988 = vrot.lane.b32.xlu0 %v1976, 80
  %v1989 = vpop.permute.xlu0 %1988
  %1990 = vrot.lane.b32.xlu0 %v1977, 80
  %v1991 = vpop.permute.xlu0 %1990
  %1992 = vrot.lane.b32.xlu0 %v1978, 80
  %v1993 = vpop.permute.xlu0 %1992
  %1994 = vrot.lane.b32.xlu0 %v1979, 80
  %v1995 = vpop.permute.xlu0 %1994
  %v2012 = vunpack.c.l.b16 %v1372
  %v2013 = vunpack.c.l.b16 %v1373
  %v2014 = vunpack.c.l.b16 %v1374
  %v2015 = vunpack.c.l.b16 %v1375
  %v2016 = vunpack.c.l.b16 %v1376
  %v2017 = vunpack.c.l.b16 %v1377
  %v2018 = vunpack.c.l.b16 %v1378
  %v2019 = vunpack.c.l.b16 %v1379
  %v2020 = vunpack.c.l.b16 %v1380
  %v2021 = vunpack.c.l.b16 %v1381
  %v2022 = vunpack.c.l.b16 %v1382
  %v2023 = vunpack.c.l.b16 %v1383
  %v2024 = vunpack.c.l.b16 %v1384
  %v2025 = vunpack.c.l.b16 %v1385
  %v2026 = vunpack.c.l.b16 %v1386
  %v2027 = vunpack.c.l.b16 %v1387
  %v2028 = vpack.c.b16 %v2013, %v2012
  %v2029 = vpack.c.b16 %v2015, %v2014
  %v2030 = vpack.c.b16 %v2017, %v2016
  %v2031 = vpack.c.b16 %v2019, %v2018
  %v2032 = vpack.c.b16 %v2021, %v2020
  %v2033 = vpack.c.b16 %v2023, %v2022
  %v2034 = vpack.c.b16 %v2025, %v2024
  %v2035 = vpack.c.b16 %v2027, %v2026
  %2036 = vrot.lane.b32.xlu0 %v2028, 96
  %v2037 = vpop.permute.xlu0 %2036
  %2038 = vrot.lane.b32.xlu0 %v2029, 96
  %v2039 = vpop.permute.xlu0 %2038
  %2040 = vrot.lane.b32.xlu0 %v2030, 96
  %v2041 = vpop.permute.xlu0 %2040
  %2042 = vrot.lane.b32.xlu0 %v2031, 96
  %v2043 = vpop.permute.xlu0 %2042
  %2044 = vrot.lane.b32.xlu0 %v2032, 96
  %v2045 = vpop.permute.xlu0 %2044
  %2046 = vrot.lane.b32.xlu0 %v2033, 96
  %v2047 = vpop.permute.xlu0 %2046
  %2048 = vrot.lane.b32.xlu0 %v2034, 96
  %v2049 = vpop.permute.xlu0 %2048
  %2050 = vrot.lane.b32.xlu0 %v2035, 96
  %v2051 = vpop.permute.xlu0 %2050
  %v2052 = vunpack.c.l.b16 %v1417
  %v2053 = vunpack.c.l.b16 %v1431
  %v2054 = vunpack.c.l.b16 %v1445
  %v2055 = vunpack.c.l.b16 %v1459
  %v2056 = vunpack.c.l.b16 %v1473
  %v2057 = vunpack.c.l.b16 %v1487
  %v2058 = vunpack.c.l.b16 %v1501
  %v2059 = vunpack.c.l.b16 %v1515
  %v2060 = vunpack.c.l.b16 %v1529
  %v2061 = vunpack.c.l.b16 %v1543
  %v2062 = vunpack.c.l.b16 %v1557
  %v2063 = vunpack.c.l.b16 %v1571
  %v2064 = vunpack.c.l.b16 %v1585
  %v2065 = vunpack.c.l.b16 %v1599
  %v2066 = vunpack.c.l.b16 %v1613
  %v2067 = vunpack.c.l.b16 %v1627
  %v2068 = vpack.c.b16 %v2053, %v2052
  %v2069 = vpack.c.b16 %v2055, %v2054
  %v2070 = vpack.c.b16 %v2057, %v2056
  %v2071 = vpack.c.b16 %v2059, %v2058
  %v2072 = vpack.c.b16 %v2061, %v2060
  %v2073 = vpack.c.b16 %v2063, %v2062
  %v2074 = vpack.c.b16 %v2065, %v2064
  %v2075 = vpack.c.b16 %v2067, %v2066
  %2076 = vrot.lane.b32.xlu0 %v2068, 112
  %v2077 = vpop.permute.xlu0 %2076
  %2078 = vrot.lane.b32.xlu0 %v2069, 112
  %v2079 = vpop.permute.xlu0 %2078
  %2080 = vrot.lane.b32.xlu0 %v2070, 112
  %v2081 = vpop.permute.xlu0 %2080
  %2082 = vrot.lane.b32.xlu0 %v2071, 112
  %v2083 = vpop.permute.xlu0 %2082
  %2084 = vrot.lane.b32.xlu0 %v2072, 112
  %v2085 = vpop.permute.xlu0 %2084
  %2086 = vrot.lane.b32.xlu0 %v2073, 112
  %v2087 = vpop.permute.xlu0 %2086
  %2088 = vrot.lane.b32.xlu0 %v2074, 112
  %v2089 = vpop.permute.xlu0 %2088
  %2090 = vrot.lane.b32.xlu0 %v2075, 112
  %v2091 = vpop.permute.xlu0 %2090
  %v2092 = vunpack.c.l.b16 %v1679
  %v2093 = vunpack.c.l.b16 %v1683
  %v2094 = vunpack.c.l.b16 %v1687
  %v2095 = vunpack.c.l.b16 %v1691
  %v2096 = vunpack.c.l.b16 %v1695
  %v2097 = vunpack.c.l.b16 %v1699
  %v2098 = vunpack.c.l.b16 %v1703
  %v2099 = vunpack.c.l.b16 %v1707
  %v2100 = vunpack.c.l.b16 %v1711
  %v2101 = vunpack.c.l.b16 %v1715
  %v2102 = vunpack.c.l.b16 %v1719
  %v2103 = vunpack.c.l.b16 %v1723
  %v2104 = vunpack.c.l.b16 %v1727
  %v2105 = vunpack.c.l.b16 %v1731
  %v2106 = vunpack.c.l.b16 %v1735
  %v2107 = vunpack.c.l.b16 %v1739
  %v2108 = vpack.c.b16 %v2093, %v2092
  %v2109 = vpack.c.b16 %v2095, %v2094
  %v2110 = vpack.c.b16 %v2097, %v2096
  %v2111 = vpack.c.b16 %v2099, %v2098
  %v2112 = vpack.c.b16 %v2101, %v2100
  %v2113 = vpack.c.b16 %v2103, %v2102
  %v2114 = vpack.c.b16 %v2105, %v2104
  %v2115 = vpack.c.b16 %v2107, %v2106
  %vm2116 = vcmask 130048
  %v2119 = vsel %vm2116, %v1772, %v1805
  %v2122 = vsel %vm2116, %v1773, %v1807
  %v2125 = vsel %vm2116, %v1774, %v1809
  %v2128 = vsel %vm2116, %v1775, %v1811
  %v2131 = vsel %vm2116, %v1776, %v1813
  %v2134 = vsel %vm2116, %v1777, %v1815
  %v2137 = vsel %vm2116, %v1778, %v1817
  %v2140 = vsel %vm2116, %v1779, %v1819
  %vm2141 = vcmask 261120
  %v2143 = vsel %vm2141, %v2119, %v1845
  %v2145 = vsel %vm2141, %v2122, %v1847
  %v2147 = vsel %vm2141, %v2125, %v1849
  %v2149 = vsel %vm2141, %v2128, %v1851
  %v2151 = vsel %vm2141, %v2131, %v1853
  %v2153 = vsel %vm2141, %v2134, %v1855
  %v2155 = vsel %vm2141, %v2137, %v1857
  %v2157 = vsel %vm2141, %v2140, %v1859
  %vm2158 = vcmask 392192
  %v2160 = vsel %vm2158, %v2143, %v1901
  %v2162 = vsel %vm2158, %v2145, %v1903
  %v2164 = vsel %vm2158, %v2147, %v1905
  %v2166 = vsel %vm2158, %v2149, %v1907
  %v2168 = vsel %vm2158, %v2151, %v1909
  %v2170 = vsel %vm2158, %v2153, %v1911
  %v2172 = vsel %vm2158, %v2155, %v1913
  %v2174 = vsel %vm2158, %v2157, %v1915
  %v2176 = vsel %vm164, %v2160, %v1941
  %v2178 = vsel %vm164, %v2162, %v1943
  %v2180 = vsel %vm164, %v2164, %v1945
  %v2182 = vsel %vm164, %v2166, %v1947
  %v2184 = vsel %vm164, %v2168, %v1949
  %v2186 = vsel %vm164, %v2170, %v1951
  %v2188 = vsel %vm164, %v2172, %v1953
  %v2190 = vsel %vm164, %v2174, %v1955
  %vm2191 = vcmask 654336
  %v2193 = vsel %vm2191, %v2176, %v1981
  %v2195 = vsel %vm2191, %v2178, %v1983
  %v2197 = vsel %vm2191, %v2180, %v1985
  %v2199 = vsel %vm2191, %v2182, %v1987
  %v2201 = vsel %vm2191, %v2184, %v1989
  %v2203 = vsel %vm2191, %v2186, %v1991
  %v2205 = vsel %vm2191, %v2188, %v1993
  %v2207 = vsel %vm2191, %v2190, %v1995
  %vm2208 = vcmask 785408
  %v2210 = vsel %vm2208, %v2193, %v2037
  %v2212 = vsel %vm2208, %v2195, %v2039
  %v2214 = vsel %vm2208, %v2197, %v2041
  %v2216 = vsel %vm2208, %v2199, %v2043
  %v2218 = vsel %vm2208, %v2201, %v2045
  %v2220 = vsel %vm2208, %v2203, %v2047
  %v2222 = vsel %vm2208, %v2205, %v2049
  %v2224 = vsel %vm2208, %v2207, %v2051
  %vm2225 = vcmask 916480
  %v2227 = vsel %vm2225, %v2210, %v2077
  %v2230 = vsel %vm2225, %v2212, %v2079
  %v2233 = vsel %vm2225, %v2214, %v2081
  %v2236 = vsel %vm2225, %v2216, %v2083
  %v2239 = vsel %vm2225, %v2218, %v2085
  %v2242 = vsel %vm2225, %v2220, %v2087
  %v2245 = vsel %vm2225, %v2222, %v2089
  %v2248 = vsel %vm2225, %v2224, %v2091
  %v2250 = vld [vmem:[%s3] sm:$0xf]
  %v2251 = vld [vmem:[%s3 + $0x4] sm:$0xf]
  %v2252 = vld [vmem:[%s3 + $0x8] sm:$0xf]
  %v2253 = vld [vmem:[%s3 + $0xc] sm:$0xf]
  %v2254 = vld [vmem:[%s3 + $0x10] sm:$0xf]
  %v2255 = vld [vmem:[%s3 + $0x14] sm:$0xf]
  %v2256 = vld [vmem:[%s3 + $0x18] sm:$0xf]
  %v2257 = vld [vmem:[%s3 + $0x1c] sm:$0xf]
  %v2258 = vld [vmem:[%s3 + $0x20] sm:$0xf]
  %v2259 = vld [vmem:[%s3 + $0x24] sm:$0xf]
  %v2260 = vld [vmem:[%s3 + $0x28] sm:$0xf]
  %v2261 = vld [vmem:[%s3 + $0x2c] sm:$0xf]
  %v2262 = vld [vmem:[%s3 + $0x30] sm:$0xf]
  %v2263 = vld [vmem:[%s3 + $0x34] sm:$0xf]
  %v2264 = vld [vmem:[%s3 + $0x38] sm:$0xf]
  %v2265 = vld [vmem:[%s3 + $0x3c] sm:$0xf]
  %v2266 = vld [vmem:[%s3 + $0x40] sm:$0xf]
  %v2267 = vld [vmem:[%s3 + $0x44] sm:$0xf]
  %v2268 = vld [vmem:[%s4] sm:$0x1]
  %v2270 = vlaneseq
  %v2271 = vshrl.u32 %v2270, 7
  %v2272 = vsub.s32 0, %v2271
  %v2273 = vrot.slane %v2268, %v2272
  %v2293 = vunpack.c.l.b16 %v2250
  %v2294 = vunpack.c.l.b16 %v2251
  %v2295 = vunpack.c.l.b16 %v2252
  %v2296 = vunpack.c.l.b16 %v2253
  %v2297 = vunpack.c.l.b16 %v2254
  %v2298 = vunpack.c.l.b16 %v2255
  %v2299 = vunpack.c.l.b16 %v2256
  %v2300 = vunpack.c.l.b16 %v2257
  %v2301 = vunpack.c.l.b16 %v2258
  %v2302 = vunpack.c.l.b16 %v2259
  %v2303 = vunpack.c.l.b16 %v2260
  %v2304 = vunpack.c.l.b16 %v2261
  %v2305 = vunpack.c.l.b16 %v2262
  %v2306 = vunpack.c.l.b16 %v2263
  %v2307 = vunpack.c.l.b16 %v2264
  %v2308 = vunpack.c.l.b16 %v2265
  %v2309 = vunpack.c.l.b16 %v2266
  %v2310 = vunpack.c.l.b16 %v2267
  %v2311 = vpack.c.b16 %v2294, %v2293
  %v2312 = vpack.c.b16 %v2296, %v2295
  %v2313 = vpack.c.b16 %v2298, %v2297
  %v2314 = vpack.c.b16 %v2300, %v2299
  %v2315 = vpack.c.b16 %v2302, %v2301
  %v2316 = vpack.c.b16 %v2304, %v2303
  %v2317 = vpack.c.b16 %v2306, %v2305
  %v2318 = vpack.c.b16 %v2308, %v2307
  %v2319 = vpack.c.b16 %v2310, %v2309
  %v2330 = vsel %vm2116, %v2108, 0
  %v2333 = vsel %vm2116, %v2109, 0
  %v2336 = vsel %vm2116, %v2110, 0
  %v2339 = vsel %vm2116, %v2111, 0
  %v2342 = vsel %vm2116, %v2112, 0
  %v2345 = vsel %vm2116, %v2113, 0
  %v2348 = vsel %vm2116, %v2114, 0
  %v2351 = vsel %vm2116, %v2115, 0
  %2353 = vmatprep.subr.bf16.mxu0 0
  %2354 = vmatpush1.bf16.msra.mxu0 %v2311
  %2355 = vmatprep.subr.bf16.mxu0 0
  %2356 = vmatpush1.bf16.msra.mxu0 %v2312
  %2357 = vmatprep.subr.bf16.mxu0 0
  %2358 = vmatpush1.bf16.msra.mxu0 %v2313
  %2359 = vmatprep.subr.bf16.mxu0 0
  %2360 = vmatpush1.bf16.msra.mxu0 %v2314
  %2361 = vmatprep.subr.bf16.mxu0 0
  %2362 = vmatpush1.bf16.msra.mxu0 %v2315
  %2363 = vmatprep.subr.bf16.mxu0 0
  %2364 = vmatpush1.bf16.msra.mxu0 %v2316
  %2365 = vmatprep.subr.bf16.mxu0 0
  %2366 = vmatpush1.bf16.msra.mxu0 %v2317
  %2367 = vmatprep.subr.bf16.mxu0 0
  %2368 = vmatpush1.bf16.msra.mxu0 %v2318
  %2369 = vmatprep.subr.bf16.mxu0 0
  %2370 = vmatpush1.bf16.msra.mxu0 %v2319
  %2371 = vmatprep.subr.bf16.mxu0 0
  %2372 = vmatpush1.bf16.msra.mxu0 0
  %2373 = vmatprep.subr.bf16.mxu0 0
  %2374 = vmatpush1.bf16.msra.mxu0 0
  %2375 = vmatprep.subr.bf16.mxu0 0
  %2376 = vmatpush1.bf16.msra.mxu0 0
  %2377 = vmatprep.subr.bf16.mxu0 0
  %2378 = vmatpush1.bf16.msra.mxu0 0
  %2379 = vmatprep.subr.bf16.mxu0 0
  %2380 = vmatpush1.bf16.msra.mxu0 0
  %2381 = vmatprep.subr.bf16.mxu0 0
  %2382 = vmatpush1.bf16.msra.mxu0 0
  %2383 = vmatprep.subr.bf16.mxu0 0
  %2384 = vmatpush1.bf16.msra.mxu0 0
  %2385 = vmatprep.mubr.bf16.mxu0 %v2330
  %2386 = vmatmul.mubr.bf16.gmra.mrb[0].mxu0 %v2227
  %v2387 = vpop.f32.mrb[0].mxu0
  %v2388 = vadd.f32 %v2273, %v2387
  %v2389 = vpop.f32.mrb[0].mxu0
  %v2390 = vpop.f32.mrb[0].mxu0
  %v2391 = vadd.f32 %v2273, %v2390
  %v2392 = vpop.f32.mrb[0].mxu0
  %2393 = vmatprep.mubr.bf16.mxu0 %v2333
  %2394 = vmatmul.mubr.bf16.gmra.mrb[0].mxu0 %v2230
  %v2395 = vpop.f32.mrb[0].mxu0
  %v2396 = vadd.f32 %v2273, %v2395
  %v2397 = vpop.f32.mrb[0].mxu0
  %v2398 = vpop.f32.mrb[0].mxu0
  %v2399 = vadd.f32 %v2273, %v2398
  %v2400 = vpop.f32.mrb[0].mxu0
  %2401 = vmatprep.mubr.bf16.mxu0 %v2336
  %2402 = vmatmul.mubr.bf16.gmra.mrb[0].mxu0 %v2233
  %v2403 = vpop.f32.mrb[0].mxu0
  %v2404 = vadd.f32 %v2273, %v2403
  %v2405 = vpop.f32.mrb[0].mxu0
  %v2406 = vpop.f32.mrb[0].mxu0
  %v2407 = vadd.f32 %v2273, %v2406
  %v2408 = vpop.f32.mrb[0].mxu0
  %2409 = vmatprep.mubr.bf16.mxu0 %v2339
  %2410 = vmatmul.mubr.bf16.gmra.mrb[0].mxu0 %v2236
  %v2411 = vpop.f32.mrb[0].mxu0
  %v2412 = vadd.f32 %v2273, %v2411
  %v2413 = vpop.f32.mrb[0].mxu0
  %v2414 = vpop.f32.mrb[0].mxu0
  %v2415 = vadd.f32 %v2273, %v2414
  %v2416 = vpop.f32.mrb[0].mxu0
  %2417 = vmatprep.mubr.bf16.mxu0 %v2342
  %2418 = vmatmul.mubr.bf16.gmra.mrb[0].mxu0 %v2239
  %v2419 = vpop.f32.mrb[0].mxu0
  %v2420 = vadd.f32 %v2273, %v2419
  %v2421 = vpop.f32.mrb[0].mxu0
  %v2422 = vpop.f32.mrb[0].mxu0
  %v2423 = vadd.f32 %v2273, %v2422
  %v2424 = vpop.f32.mrb[0].mxu0
  %2425 = vmatprep.mubr.bf16.mxu0 %v2345
  %2426 = vmatmul.mubr.bf16.gmra.mrb[0].mxu0 %v2242
  %v2427 = vpop.f32.mrb[0].mxu0
  %v2428 = vadd.f32 %v2273, %v2427
  %v2429 = vpop.f32.mrb[0].mxu0
  %v2430 = vpop.f32.mrb[0].mxu0
  %v2431 = vadd.f32 %v2273, %v2430
  %v2432 = vpop.f32.mrb[0].mxu0
  %2433 = vmatprep.mubr.bf16.mxu0 %v2348
  %2434 = vmatmul.mubr.bf16.gmra.mrb[0].mxu0 %v2245
  %v2435 = vpop.f32.mrb[0].mxu0
  %v2436 = vadd.f32 %v2273, %v2435
  %v2437 = vpop.f32.mrb[0].mxu0
  %v2438 = vpop.f32.mrb[0].mxu0
  %v2439 = vadd.f32 %v2273, %v2438
  %v2440 = vpop.f32.mrb[0].mxu0
  %2441 = vmatprep.mubr.bf16.mxu0 %v2351
  %2442 = vmatmul.mubr.bf16.gmra.mrb[0].mxu0 %v2248
  %v2443 = vpop.f32.mrb[0].mxu0
  %v2444 = vadd.f32 %v2273, %v2443
  %v2445 = vpop.f32.mrb[0].mxu0
  %v2446 = vpop.f32.mrb[0].mxu0
  %v2447 = vadd.f32 %v2273, %v2446
  %v2448 = vpop.f32.mrb[0].mxu0
  %2449 = vdwg.mxu0
  %v2450 = vmax.f32 %v2388, 0.0
  %v2451 = vmax.f32 %v2391, 0.0
  %v2452 = vmax.f32 %v2396, 0.0
  %v2453 = vmax.f32 %v2399, 0.0
  %v2454 = vmax.f32 %v2404, 0.0
  %v2455 = vmax.f32 %v2407, 0.0
  %v2456 = vmax.f32 %v2412, 0.0
  %v2457 = vmax.f32 %v2415, 0.0
  %v2458 = vmax.f32 %v2420, 0.0
  %v2459 = vmax.f32 %v2423, 0.0
  %v2460 = vmax.f32 %v2428, 0.0
  %v2461 = vmax.f32 %v2431, 0.0
  %v2462 = vmax.f32 %v2436, 0.0
  %v2463 = vmax.f32 %v2439, 0.0
  %v2464 = vmax.f32 %v2444, 0.0
  %v2465 = vmax.f32 %v2447, 0.0
  %v2466 = vpack.c.bf16 %v2451, %v2450
  %v2467 = vpack.c.bf16 %v2453, %v2452
  %v2468 = vpack.c.bf16 %v2455, %v2454
  %v2469 = vpack.c.bf16 %v2457, %v2456
  %v2470 = vpack.c.bf16 %v2459, %v2458
  %v2471 = vpack.c.bf16 %v2461, %v2460
  %v2472 = vpack.c.bf16 %v2463, %v2462
  %v2473 = vpack.c.bf16 %v2465, %v2464
  %v2474 = vld [vmem:[%s5] sm:$0xf]
  %v2475 = vld [vmem:[%s5 + $0x4] sm:$0xf]
  %v2476 = vunpack.c.l.bf16 %v69
  %v2477 = vunpack.c.l.bf16 %v70
  %v2478 = vunpack.c.l.bf16 %v71
  %v2479 = vunpack.c.l.bf16 %v72
  %v2480 = vunpack.c.l.bf16 %v73
  %v2481 = vunpack.c.l.bf16 %v74
  %v2482 = vunpack.c.l.bf16 %v75
  %v2483 = vunpack.c.l.bf16 %v76
  %v2484 = vunpack.c.l.bf16 %v77
  %v2485 = vunpack.c.l.bf16 %v78
  %v2486 = vunpack.c.l.bf16 %v79
  %v2487 = vunpack.c.l.bf16 %v80
  %v2488 = vunpack.c.l.bf16 %v81
  %v2489 = vunpack.c.l.bf16 %v82
  %v2490 = vunpack.c.l.bf16 %v83
  %v2491 = vunpack.c.l.bf16 %v84
  %v2494 = vunpack.c.l.b16 %v2474
  %v2495 = vunpack.c.l.b16 %v2475
  %v2496 = vpack.c.b16 %v2495, %v2494
  %v2499 = vsel %vm2116, %v2466, 0
  %v2502 = vsel %vm2116, %v2467, 0
  %v2505 = vsel %vm2116, %v2468, 0
  %v2508 = vsel %vm2116, %v2469, 0
  %v2511 = vsel %vm2116, %v2470, 0
  %v2514 = vsel %vm2116, %v2471, 0
  %v2517 = vsel %vm2116, %v2472, 0
  %v2520 = vsel %vm2116, %v2473, 0
  %2522 = vmatprep.subr.bf16.mxu0 0
  %2523 = vmatpush1.bf16.msra.mxu0 %v2496
  %2524 = vmatprep.subr.bf16.mxu0 0
  %2525 = vmatpush1.bf16.msra.mxu0 0
  %2526 = vmatprep.subr.bf16.mxu0 0
  %2527 = vmatpush1.bf16.msra.mxu0 0
  %2528 = vmatprep.subr.bf16.mxu0 0
  %2529 = vmatpush1.bf16.msra.mxu0 0
  %2530 = vmatprep.subr.bf16.mxu0 0
  %2531 = vmatpush1.bf16.msra.mxu0 0
  %2532 = vmatprep.subr.bf16.mxu0 0
  %2533 = vmatpush1.bf16.msra.mxu0 0
  %2534 = vmatprep.subr.bf16.mxu0 0
  %2535 = vmatpush1.bf16.msra.mxu0 0
  %2536 = vmatprep.subr.bf16.mxu0 0
  %2537 = vmatpush1.bf16.msra.mxu0 0
  %2538 = vmatprep.subr.bf16.mxu0 0
  %2539 = vmatpush1.bf16.msra.mxu0 0
  %2540 = vmatprep.subr.bf16.mxu0 0
  %2541 = vmatpush1.bf16.msra.mxu0 0
  %2542 = vmatprep.subr.bf16.mxu0 0
  %2543 = vmatpush1.bf16.msra.mxu0 0
  %2544 = vmatprep.subr.bf16.mxu0 0
  %2545 = vmatpush1.bf16.msra.mxu0 0
  %2546 = vmatprep.subr.bf16.mxu0 0
  %2547 = vmatpush1.bf16.msra.mxu0 0
  %2548 = vmatprep.subr.bf16.mxu0 0
  %2549 = vmatpush1.bf16.msra.mxu0 0
  %2550 = vmatprep.subr.bf16.mxu0 0
  %2551 = vmatpush1.bf16.msra.mxu0 0
  %2552 = vmatprep.subr.bf16.mxu0 0
  %2553 = vmatpush1.bf16.msra.mxu0 0
  %2554 = vmatprep.mubr.bf16.mxu0 0
  %2555 = vmatmul.mubr.bf16.gmra.mrb[0].mxu0 %v2499
  %v2556 = vpop.f32.mrb[0].mxu0
  %v2557 = vadd.f32 %v2476, %v2556
  %v2558 = vpop.f32.mrb[0].mxu0
  %v2559 = vpop.f32.mrb[0].mxu0
  %v2560 = vadd.f32 %v2477, %v2559
  %v2561 = vpop.f32.mrb[0].mxu0
  %2562 = vmatprep.mubr.bf16.mxu0 0
  %2563 = vmatmul.mubr.bf16.gmra.mrb[0].mxu0 %v2502
  %v2564 = vpop.f32.mrb[0].mxu0
  %v2565 = vadd.f32 %v2478, %v2564
  %v2566 = vpop.f32.mrb[0].mxu0
  %v2567 = vpop.f32.mrb[0].mxu0
  %v2568 = vadd.f32 %v2479, %v2567
  %v2569 = vpop.f32.mrb[0].mxu0
  %2570 = vmatprep.mubr.bf16.mxu0 0
  %2571 = vmatmul.mubr.bf16.gmra.mrb[0].mxu0 %v2505
  %v2572 = vpop.f32.mrb[0].mxu0
  %v2573 = vadd.f32 %v2480, %v2572
  %v2574 = vpop.f32.mrb[0].mxu0
  %v2575 = vpop.f32.mrb[0].mxu0
  %v2576 = vadd.f32 %v2481, %v2575
  %v2577 = vpop.f32.mrb[0].mxu0
  %2578 = vmatprep.mubr.bf16.mxu0 0
  %2579 = vmatmul.mubr.bf16.gmra.mrb[0].mxu0 %v2508
  %v2580 = vpop.f32.mrb[0].mxu0
  %v2581 = vadd.f32 %v2482, %v2580
  %v2582 = vpop.f32.mrb[0].mxu0
  %v2583 = vpop.f32.mrb[0].mxu0
  %v2584 = vadd.f32 %v2483, %v2583
  %v2585 = vpop.f32.mrb[0].mxu0
  %2586 = vmatprep.mubr.bf16.mxu0 0
  %2587 = vmatmul.mubr.bf16.gmra.mrb[0].mxu0 %v2511
  %v2588 = vpop.f32.mrb[0].mxu0
  %v2589 = vadd.f32 %v2484, %v2588
  %v2590 = vpop.f32.mrb[0].mxu0
  %v2591 = vpop.f32.mrb[0].mxu0
  %v2592 = vadd.f32 %v2485, %v2591
  %v2593 = vpop.f32.mrb[0].mxu0
  %2594 = vmatprep.mubr.bf16.mxu0 0
  %2595 = vmatmul.mubr.bf16.gmra.mrb[0].mxu0 %v2514
  %v2596 = vpop.f32.mrb[0].mxu0
  %v2597 = vadd.f32 %v2486, %v2596
  %v2598 = vpop.f32.mrb[0].mxu0
  %v2599 = vpop.f32.mrb[0].mxu0
  %v2600 = vadd.f32 %v2487, %v2599
  %v2601 = vpop.f32.mrb[0].mxu0
  %2602 = vmatprep.mubr.bf16.mxu0 0
  %2603 = vmatmul.mubr.bf16.gmra.mrb[0].mxu0 %v2517
  %v2604 = vpop.f32.mrb[0].mxu0
  %v2605 = vadd.f32 %v2488, %v2604
  %v2606 = vpop.f32.mrb[0].mxu0
  %v2607 = vpop.f32.mrb[0].mxu0
  %v2608 = vadd.f32 %v2489, %v2607
  %v2609 = vpop.f32.mrb[0].mxu0
  %2610 = vmatprep.mubr.bf16.mxu0 0
  %2611 = vmatmul.mubr.bf16.gmra.mrb[0].mxu0 %v2520
  %v2612 = vpop.f32.mrb[0].mxu0
  %v2613 = vadd.f32 %v2490, %v2612
  %v2614 = vpop.f32.mrb[0].mxu0
  %v2615 = vpop.f32.mrb[0].mxu0
  %v2616 = vadd.f32 %v2491, %v2615
  %v2617 = vpop.f32.mrb[0].mxu0
  %2618 = vdwg.mxu0
  %v2619 = vld [vmem:[%s6] sm:$0x1]
  %v2621 = vlaneseq
  %v2622 = vshrl.u32 %v2621, 7
  %v2623 = vsub.s32 0, %v2622
  %v2624 = vrot.slane %v2619, %v2623
  %v2626 = vadd.f32 %v2557, %v2624
  %v2627 = vadd.f32 %v2560, %v2624
  %v2628 = vadd.f32 %v2565, %v2624
  %v2629 = vadd.f32 %v2568, %v2624
  %v2630 = vadd.f32 %v2573, %v2624
  %v2631 = vadd.f32 %v2576, %v2624
  %v2632 = vadd.f32 %v2581, %v2624
  %v2633 = vadd.f32 %v2584, %v2624
  %v2634 = vadd.f32 %v2589, %v2624
  %v2635 = vadd.f32 %v2592, %v2624
  %v2636 = vadd.f32 %v2597, %v2624
  %v2637 = vadd.f32 %v2600, %v2624
  %v2638 = vadd.f32 %v2605, %v2624
  %v2639 = vadd.f32 %v2608, %v2624
  %v2640 = vadd.f32 %v2613, %v2624
  %v2641 = vadd.f32 %v2616, %v2624
  %v2642 = vmax.f32 %v2626, 0.0
  %v2643 = vmax.f32 %v2627, 0.0
  %v2644 = vmax.f32 %v2628, 0.0
  %v2645 = vmax.f32 %v2629, 0.0
  %v2646 = vmax.f32 %v2630, 0.0
  %v2647 = vmax.f32 %v2631, 0.0
  %v2648 = vmax.f32 %v2632, 0.0
  %v2649 = vmax.f32 %v2633, 0.0
  %v2650 = vmax.f32 %v2634, 0.0
  %v2651 = vmax.f32 %v2635, 0.0
  %v2652 = vmax.f32 %v2636, 0.0
  %v2653 = vmax.f32 %v2637, 0.0
  %v2654 = vmax.f32 %v2638, 0.0
  %v2655 = vmax.f32 %v2639, 0.0
  %v2656 = vmax.f32 %v2640, 0.0
  %v2657 = vmax.f32 %v2641, 0.0
  %v2658 = vpack.c.bf16 %v2642, %v2642
  %v2659 = vpack.c.bf16 %v2643, %v2643
  %v2660 = vpack.c.bf16 %v2644, %v2644
  %v2661 = vpack.c.bf16 %v2645, %v2645
  %v2662 = vpack.c.bf16 %v2646, %v2646
  %v2663 = vpack.c.bf16 %v2647, %v2647
  %v2664 = vpack.c.bf16 %v2648, %v2648
  %v2665 = vpack.c.bf16 %v2649, %v2649
  %v2666 = vpack.c.bf16 %v2650, %v2650
  %v2667 = vpack.c.bf16 %v2651, %v2651
  %v2668 = vpack.c.bf16 %v2652, %v2652
  %v2669 = vpack.c.bf16 %v2653, %v2653
  %v2670 = vpack.c.bf16 %v2654, %v2654
  %v2671 = vpack.c.bf16 %v2655, %v2655
  %v2672 = vpack.c.bf16 %v2656, %v2656
  %v2673 = vpack.c.bf16 %v2657, %v2657
  %vm2674 = vcmask 519168
  %2675 = vst.msk [vmem:[%s7] sm:$0xf] %vm2674, %v2658
  %2676 = vst.msk [vmem:[%s7 + $0x4] sm:$0xf] %vm2674, %v2659
  %2677 = vst.msk [vmem:[%s7 + $0x8] sm:$0xf] %vm2674, %v2660
  %2678 = vst.msk [vmem:[%s7 + $0xc] sm:$0xf] %vm2674, %v2661
  %2679 = vst.msk [vmem:[%s7 + $0x10] sm:$0xf] %vm2674, %v2662
  %2680 = vst.msk [vmem:[%s7 + $0x14] sm:$0xf] %vm2674, %v2663
  %2681 = vst.msk [vmem:[%s7 + $0x18] sm:$0xf] %vm2674, %v2664
  %2682 = vst.msk [vmem:[%s7 + $0x1c] sm:$0xf] %vm2674, %v2665
  %2683 = vst.msk [vmem:[%s7 + $0x20] sm:$0xf] %vm2674, %v2666
  %2684 = vst.msk [vmem:[%s7 + $0x24] sm:$0xf] %vm2674, %v2667
  %2685 = vst.msk [vmem:[%s7 + $0x28] sm:$0xf] %vm2674, %v2668
  %2686 = vst.msk [vmem:[%s7 + $0x2c] sm:$0xf] %vm2674, %v2669
  %2687 = vst.msk [vmem:[%s7 + $0x30] sm:$0xf] %vm2674, %v2670
  %2688 = vst.msk [vmem:[%s7 + $0x34] sm:$0xf] %vm2674, %v2671
  %2689 = vst.msk [vmem:[%s7 + $0x38] sm:$0xf] %vm2674, %v2672
  %2690 = vst.msk [vmem:[%s7 + $0x3c] sm:$0xf] %vm2674, %v2673
  // Predicated region
  $region30: #{_lambda_.3} parent=0 // pred_check
    _
  $region31: #{_lambda_.3} parent=0 // pred_check_branch
    %2692 = sbr.rel (0) target = $region33
  $region32: #{_lambda_.3} parent=0 // pred_region
    _
  $region33: #{_lambda_.3} parent=0 // pred_fallthru
    _
  // Predicated region
  $region34: #{_lambda_.3} parent=0 // pred_check
    _
  $region35: #{_lambda_.3} parent=0 // pred_check_branch
    %2694 = sbr.rel (0) target = $region37
  $region36: #{_lambda_.3} parent=0 // pred_region
    _
  $region37: #{_lambda_.3} parent=0 // pred_fallthru
    _

</llo_original>
